<compile_context>
chip_gen: v5e
topology: v5e:2x2
jax: 0.10.0
libtpu: 0.0.40
codegen_flags: <defaults>
</compile_context>

<pallas_src>
import math

import jax
import jax.numpy as jnp
from jax.experimental import pallas as pl
from jax.experimental.pallas import tpu as pltpu


# ----------------------------------------------------------------------------
# Fused decoder-layer kernel: single invocation, everything VMEM-resident.
# ----------------------------------------------------------------------------
def _decoder_layer_kernel(
    # activations (batch-major)
    tgt_ref, qpos_ref, mem_ref, pos_ref,
    # self-attention params (per-head weight stacks; softmax scale folded into Wq/bq)
    sa_wq, sa_bq, sa_wk, sa_bk, sa_wv, sa_bv, sa_wo, sa_bo,
    # cross-attention params
    ca_wq, ca_bq, ca_wk, ca_bk, ca_wv, ca_bv, ca_wo, ca_bo,
    # feed-forward params
    w1_ref, b1_ref, w2_ref, b2_ref,
    # outputs
    out_ref, attn_ref,
):
    f32, bf16 = jnp.float32, jnp.bfloat16
    B, L, D = tgt_ref.shape
    S = mem_ref.shape[1]
    H = sa_wq.shape[0]
    hd = sa_wq.shape[2]

    def mha(q_in, k_in, v_in, wq, bq, wk, bk, wv, bv, wo, bo, want_probs):
        """q_in/k_in/v_in: (B, Lq/Lk, D) f32 -> ((B, Lq, D) f32, head-mean probs)."""
        Lq, Lk = q_in.shape[1], k_in.shape[1]
        # Hoisted bf16 casts: each activation cast exactly once per call.
        # MXU operands bf16, f32 accumulation; all elementwise math stays f32.
        q2 = q_in.reshape(B * Lq, D).astype(bf16)
        k2 = q2 if k_in is q_in else k_in.reshape(B * Lk, D).astype(bf16)
        v2 = v_in.reshape(B * Lk, D).astype(bf16)

        acc = None      # (B*Lq, D) f32: accumulated per-head output projection
        p_sum = None    # (B, Lq, Lk) f32: accumulated probs for head-mean output
        for h in range(H):  # static unroll; per-head weight stacks -> no lane slicing
            qh = (jnp.dot(q2, wq[h], preferred_element_type=f32) + bq[h]
                  ).reshape(B, Lq, hd).astype(bf16)
            kh = (jnp.dot(k2, wk[h], preferred_element_type=f32) + bk[h]
                  ).reshape(B, Lk, hd).astype(bf16)
            vh = (jnp.dot(v2, wv[h], preferred_element_type=f32) + bv[h]
                  ).reshape(B, Lk, hd).astype(bf16)
            # batched over B, contracting last dims -> no in-kernel key transpose
            s = jnp.einsum("bqd,bkd->bqk", qh, kh, preferred_element_type=f32)
            s = s - jnp.max(s, axis=-1, keepdims=True)
            e = jnp.exp(s)
            p = e * pl.reciprocal(jnp.sum(e, axis=-1, keepdims=True), approx=True)
            oh = jnp.einsum("bqk,bkd->bqd", p.astype(bf16), vh,
                            preferred_element_type=f32)            # (B, Lq, hd) f32
            # accumulated per-head output projection (replaces concat + big Wo matmul)
            contrib = jnp.dot(oh.reshape(B * Lq, hd).astype(bf16), wo[h],
                              preferred_element_type=f32)          # (B*Lq, D) f32
            acc = contrib if acc is None else acc + contrib
            if want_probs:
                p_sum = p if p_sum is None else p_sum + p
        return (acc + bo[...]).reshape(B, Lq, D), p_sum

    x = tgt_ref[...]        # (B, L, D) f32
    qp = qpos_ref[...]      # (B, L, D)
    mem = mem_ref[...]      # (B, S, D)
    mp = pos_ref[...]       # (B, S, D)

    # ---- self-attention + residual (dropout1 == identity at inference) ----
    qk_in = x + qp
    sa_out, _ = mha(qk_in, qk_in, x,
                    sa_wq, sa_bq, sa_wk, sa_bk, sa_wv, sa_bv, sa_wo, sa_bo,
                    want_probs=False)
    x = x + sa_out

    # ---- cross-attention + residual; head-mean of probs accumulated in-kernel ----
    ca_out, p_sum = mha(x + qp, mem + mp, mem,
                        ca_wq, ca_bq, ca_wk, ca_bk, ca_wv, ca_bv, ca_wo, ca_bo,
                        want_probs=True)
    x = x + ca_out
    attn_ref[...] = p_sum * (1.0 / H)

    # ---- feed-forward + residual (relu / adds stay f32) ----
    x2 = x.reshape(B * L, D)
    h1 = jnp.maximum(
        jnp.dot(x2.astype(bf16), w1_ref[...], preferred_element_type=f32) + b1_ref[...],
        0.0)
    ff = jnp.dot(h1.astype(bf16), w2_ref[...], preferred_element_type=f32) + b2_ref[...]
    out_ref[...] = x2 + ff          # (B*L, D); wrapper reshapes back to (L, B, D)


# ----------------------------------------------------------------------------
# One-time host-side parameter preparation
#   * split in_proj into per-head q/k/v weight stacks (H, D, hd) -> kernel never
#     lane-slices activations to extract a head
#   * split the output projection into per-head row blocks (H, hd, D) -> kernel
#     accumulates per-head contributions instead of concatenating heads
#   * fold the 1/sqrt(head_dim) softmax scale into Wq / bq
#   * MXU operands (weights) in bf16, biases in f32
# ----------------------------------------------------------------------------
def prepare_params(raw, nhead):
    d_model = raw["sa_out_w"].shape[0]
    head_dim = d_model // nhead
    scale = 1.0 / math.sqrt(head_dim)

    def split_qkv(w, b, s):
        # w: (d_model, d_model) PyTorch (out, in); kernel computes x @ W.T per head.
        wt = (w.T * s).reshape(d_model, nhead, head_dim)          # (D, H, hd)
        wh = jnp.transpose(wt, (1, 0, 2)).astype(jnp.bfloat16)    # (H, D, hd)
        bh = (b * s).reshape(nhead, 1, head_dim).astype(jnp.float32)  # (H, 1, hd)
        return wh, bh

    def attn_pack(in_w, in_b, out_w, out_b):
        wq, wk, wv = in_w[:d_model], in_w[d_model:2 * d_model], in_w[2 * d_model:]
        bq, bk, bv = in_b[:d_model], in_b[d_model:2 * d_model], in_b[2 * d_model:]
        wq_h, bq_h = split_qkv(wq, bq, scale)   # scale folded into Wq / bq
        wk_h, bk_h = split_qkv(wk, bk, 1.0)
        wv_h, bv_h = split_qkv(wv, bv, 1.0)
        wo_h = out_w.T.reshape(nhead, head_dim, d_model).astype(jnp.bfloat16)  # (H, hd, D)
        bo = out_b.reshape(1, d_model).astype(jnp.float32)
        return (wq_h, bq_h, wk_h, bk_h, wv_h, bv_h, wo_h, bo)

    return (
        attn_pack(raw["sa_in_w"], raw["sa_in_b"], raw["sa_out_w"], raw["sa_out_b"])
        + attn_pack(raw["ca_in_w"], raw["ca_in_b"], raw["ca_out_w"], raw["ca_out_b"])
        + (
            raw["lin1_w"].T.astype(jnp.bfloat16),
            raw["lin1_b"].reshape(1, -1).astype(jnp.float32),
            raw["lin2_w"].T.astype(jnp.bfloat16),
            raw["lin2_b"].reshape(1, -1).astype(jnp.float32),
        )
    )


# ----------------------------------------------------------------------------
# Forward wrapper: one fused pallas_call, no grid.
# ----------------------------------------------------------------------------
@jax.jit
def decoder_layer_forward(prep_params, tgt, memory, pos=None, query_pos=None):
    L, B, D = tgt.shape
    S = memory.shape[0]
    if query_pos is None:
        query_pos = jnp.zeros_like(tgt)
    if pos is None:
        pos = jnp.zeros_like(memory)

    # Batch-major slabs for the kernel.
    # TODO(synk): at production sizes keep activations batch-major end-to-end upstream
    # so these transposes (a full HBM read+write each) disappear.
    tgt_b = jnp.transpose(tgt, (1, 0, 2))          # (B, L, D)
    qpos_b = jnp.transpose(query_pos, (1, 0, 2))   # (B, L, D)
    mem_b = jnp.transpose(memory, (1, 0, 2))       # (B, S, D)
    pos_b = jnp.transpose(pos, (1, 0, 2))          # (B, S, D)

    H = prep_params[0].shape[0]
    hd = prep_params[0].shape[2]
    Ff = prep_params[16].shape[1]

    # Advisory cost estimate for the XLA scheduler around the fused custom call.
    mm = lambda m, k, n: 2 * m * k * n
    flops = (
        4 * mm(B * L, D, D) + 2 * B * H * mm(L, hd, L)                      # self-attn
        + 2 * mm(B * L, D, D) + 2 * mm(B * S, D, D) + 2 * B * H * mm(L, hd, S)  # cross
        + mm(B * L, D, Ff) + mm(B * L, Ff, D)                               # FFN
    )
    transcendentals = B * H * (L * L + L * S)
    bytes_accessed = (
        4 * (2 * B * L * D + 2 * B * S * D)
        + sum(int(w.size) * w.dtype.itemsize for w in prep_params)
        + 4 * (B * L * D + B * L * S)
    )

    out_flat, attn = pl.pallas_call(
        _decoder_layer_kernel,
        out_shape=(
            jax.ShapeDtypeStruct((B * L, D), jnp.float32),
            jax.ShapeDtypeStruct((B, L, S), jnp.float32),
        ),
        cost_estimate=pl.CostEstimate(
            flops=flops, transcendentals=transcendentals, bytes_accessed=bytes_accessed),
        compiler_params=pltpu.CompilerParams(
            # generous at toy sizes; must be re-budgeted (<= ~48 MiB) for v7x tiling
            vmem_limit_bytes=32 * 1024 * 1024),
    )(tgt_b, qpos_b, mem_b, pos_b, *prep_params)

    out = jnp.transpose(out_flat.reshape(B, L, D), (1, 0, 2))   # back to (L, B, D)
    return out, attn


# ----------------------------------------------------------------------------
# Pure-JAX f32 reference (PyTorch semantics) for correctness check
# ----------------------------------------------------------------------------
def _ref_mha(query, key, value, in_w, in_b, out_w, out_b, nhead):
    L, B, D = query.shape
    S = key.shape[0]
    hd = D // nhead
    wq, wk, wv = in_w[:D], in_w[D:2 * D], in_w[2 * D:]
    bq, bk, bv = in_b[:D], in_b[D:2 * D], in_b[2 * D:]
    q = (query.reshape(L * B, D) @ wq.T + bq).reshape(L, B * nhead, hd).transpose(1, 0, 2)
    k = (key.reshape(S * B, D) @ wk.T + bk).reshape(S, B * nhead, hd).transpose(1, 0, 2)
    v = (value.reshape(S * B, D) @ wv.T + bv).reshape(S, B * nhead, hd).transpose(1, 0, 2)
    s = jnp.einsum("bld,bsd->bls", q * (1.0 / math.sqrt(hd)), k)
    p = jax.nn.softmax(s, axis=-1)
    o = jnp.einsum("bls,bsd->bld", p, v)
    o = o.transpose(1, 0, 2).reshape(L * B, D) @ out_w.T + out_b
    return o.reshape(L, B, D), p.reshape(B, nhead, L, S).mean(axis=1)


def _ref_forward(params, tgt, memory, pos, query_pos, nhead):
    L, B, D = tgt.shape
    qk = tgt + query_pos
    t2, _ = _ref_mha(qk, qk, tgt, params["sa_in_w"], params["sa_in_b"],
                     params["sa_out_w"], params["sa_out_b"], nhead)
    tgt = tgt + t2
    t2, att = _ref_mha(tgt + query_pos, memory + pos, memory,
                       params["ca_in_w"], params["ca_in_b"],
                       params["ca_out_w"], params["ca_out_b"], nhead)
    tgt = tgt + t2
    h = jnp.maximum(tgt.reshape(L * B, D) @ params["lin1_w"].T + params["lin1_b"], 0.0)
    ff = (h @ params["lin2_w"].T + params["lin2_b"]).reshape(L, B, D)
    return tgt + ff, att


# ----------------------------------------------------------------------------
# main
# ----------------------------------------------------------------------------
if __name__ == "__main__":
    d_model, nhead, dim_ff = 32, 4, 64
    L, S, B = 8, 16, 2

    key = jax.random.PRNGKey(0)
    ks = jax.random.split(key, 16)

    def init(k, shape, scale=0.05):
        return (scale * jax.random.normal(k, shape)).astype(jnp.float32)

    raw = {
        # self-attention
        "sa_in_w": init(ks[0], (3 * d_model, d_model)),
        "sa_in_b": init(ks[1], (3 * d_model,)),
        "sa_out_w": init(ks[2], (d_model, d_model)),
        "sa_out_b": init(ks[3], (d_model,)),
        # cross-attention
        "ca_in_w": init(ks[4], (3 * d_model, d_model)),
        "ca_in_b": init(ks[5], (3 * d_model,)),
        "ca_out_w": init(ks[6], (d_model, d_model)),
        "ca_out_b": init(ks[7], (d_model,)),
        # feed-forward
        "lin1_w": init(ks[8], (dim_ff, d_model)),
        "lin1_b": init(ks[9], (dim_ff,)),
        "lin2_w": init(ks[10], (d_model, dim_ff)),
        "lin2_b": init(ks[11], (d_model,)),
    }

    tgt = init(ks[12], (L, B, d_model), scale=1.0)
    memory = init(ks[13], (S, B, d_model), scale=1.0)
    query_pos = init(ks[14], (L, B, d_model), scale=1.0)
    pos = init(ks[15], (S, B, d_model), scale=1.0)

    prep = prepare_params(raw, nhead)

    out, attn = decoder_layer_forward(prep, tgt, memory, pos, query_pos)
    jax.block_until_ready((out, attn))

    ref_out, ref_attn = _ref_forward(raw, tgt, memory, pos, query_pos, nhead)
    assert out.shape == (L, B, d_model) and attn.shape == (B, L, S)
    # bf16 MXU operands + approx reciprocal vs. a pure-f32 reference -> relaxed tolerance.
    assert jnp.allclose(out, ref_out, rtol=2e-2, atol=2e-2), \
        float(jnp.max(jnp.abs(out - ref_out)))
    assert jnp.allclose(attn, ref_attn, rtol=2e-2, atol=2e-2), \
        float(jnp.max(jnp.abs(attn - ref_attn)))

    print("KERNEL_OK")
</pallas_src>

<mosaic_0001>
module attributes {stable_mosaic.version = 11 : i64} {
  func.func @_decoder_layer_kernel(%arg0: memref<2x8x32xf32, #tpu.memory_space<vmem>>, %arg1: memref<2x8x32xf32, #tpu.memory_space<vmem>>, %arg2: memref<2x16x32xf32, #tpu.memory_space<vmem>>, %arg3: memref<2x16x32xf32, #tpu.memory_space<vmem>>, %arg4: memref<4x32x8xbf16, #tpu.memory_space<vmem>>, %arg5: memref<4x1x8xf32, #tpu.memory_space<vmem>>, %arg6: memref<4x32x8xbf16, #tpu.memory_space<vmem>>, %arg7: memref<4x1x8xf32, #tpu.memory_space<vmem>>, %arg8: memref<4x32x8xbf16, #tpu.memory_space<vmem>>, %arg9: memref<4x1x8xf32, #tpu.memory_space<vmem>>, %arg10: memref<4x8x32xbf16, #tpu.memory_space<vmem>>, %arg11: memref<1x32xf32, #tpu.memory_space<vmem>>, %arg12: memref<4x32x8xbf16, #tpu.memory_space<vmem>>, %arg13: memref<4x1x8xf32, #tpu.memory_space<vmem>>, %arg14: memref<4x32x8xbf16, #tpu.memory_space<vmem>>, %arg15: memref<4x1x8xf32, #tpu.memory_space<vmem>>, %arg16: memref<4x32x8xbf16, #tpu.memory_space<vmem>>, %arg17: memref<4x1x8xf32, #tpu.memory_space<vmem>>, %arg18: memref<4x8x32xbf16, #tpu.memory_space<vmem>>, %arg19: memref<1x32xf32, #tpu.memory_space<vmem>>, %arg20: memref<32x64xbf16, #tpu.memory_space<vmem>>, %arg21: memref<1x64xf32, #tpu.memory_space<vmem>>, %arg22: memref<64x32xbf16, #tpu.memory_space<vmem>>, %arg23: memref<1x32xf32, #tpu.memory_space<vmem>>, %arg24: memref<16x32xf32, #tpu.memory_space<vmem>>, %arg25: memref<2x8x16xf32, #tpu.memory_space<vmem>>) attributes {dimension_semantics = [], scalar_prefetch = 0 : i64, scratch_operands = 0 : i64, tpu.core_type = #tpu.core_type<tc>} {
    %c0 = arith.constant 0 : index
    %c0_0 = arith.constant 0 : index
    %c0_1 = arith.constant 0 : index
    %0 = vector.load %arg0[%c0, %c0_0, %c0_1] : memref<2x8x32xf32, #tpu.memory_space<vmem>>, vector<2x8x32xf32>
    %c0_2 = arith.constant 0 : index
    %c0_3 = arith.constant 0 : index
    %c0_4 = arith.constant 0 : index
    %1 = vector.load %arg1[%c0_2, %c0_3, %c0_4] : memref<2x8x32xf32, #tpu.memory_space<vmem>>, vector<2x8x32xf32>
    %c0_5 = arith.constant 0 : index
    %c0_6 = arith.constant 0 : index
    %c0_7 = arith.constant 0 : index
    %2 = vector.load %arg2[%c0_5, %c0_6, %c0_7] : memref<2x16x32xf32, #tpu.memory_space<vmem>>, vector<2x16x32xf32>
    %c0_8 = arith.constant 0 : index
    %c0_9 = arith.constant 0 : index
    %c0_10 = arith.constant 0 : index
    %3 = vector.load %arg3[%c0_8, %c0_9, %c0_10] : memref<2x16x32xf32, #tpu.memory_space<vmem>>, vector<2x16x32xf32>
    %4 = arith.addf %0, %1 : vector<2x8x32xf32>
    %5 = vector.shape_cast %4 : vector<2x8x32xf32> to vector<16x32xf32>
    %6 = arith.truncf %5 : vector<16x32xf32> to vector<16x32xbf16>
    %7 = vector.shape_cast %0 : vector<2x8x32xf32> to vector<16x32xf32>
    %8 = arith.truncf %7 : vector<16x32xf32> to vector<16x32xbf16>
    %c0_11 = arith.constant 0 : index
    %c0_12 = arith.constant 0 : index
    %c0_13 = arith.constant 0 : index
    %9 = vector.load %arg4[%c0_11, %c0_12, %c0_13] : memref<4x32x8xbf16, #tpu.memory_space<vmem>>, vector<1x32x8xbf16>
    %10 = vector.shape_cast %9 : vector<1x32x8xbf16> to vector<32x8xbf16>
    %cst = arith.constant dense<0.000000e+00> : vector<16x8xf32>
    %11 = tpu.matmul %6, %10, %cst {dimension_numbers = #tpu.dot_dimension_numbers<[1], [0], [0], [1], [0, 0, 1, 1], [], []>} : vector<16x32xbf16>, vector<32x8xbf16>, vector<16x8xf32> -> vector<16x8xf32>
    %c0_14 = arith.constant 0 : index
    %c0_15 = arith.constant 0 : index
    %c0_16 = arith.constant 0 : index
    %12 = vector.load %arg5[%c0_14, %c0_15, %c0_16] : memref<4x1x8xf32, #tpu.memory_space<vmem>>, vector<1x1x8xf32>
    %13 = vector.shape_cast %12 : vector<1x1x8xf32> to vector<1x8xf32>
    %14 = vector.broadcast %13 : vector<1x8xf32> to vector<16x8xf32>
    %15 = arith.addf %11, %14 : vector<16x8xf32>
    %16 = vector.shape_cast %15 : vector<16x8xf32> to vector<2x8x8xf32>
    %17 = arith.truncf %16 : vector<2x8x8xf32> to vector<2x8x8xbf16>
    %c0_17 = arith.constant 0 : index
    %c0_18 = arith.constant 0 : index
    %c0_19 = arith.constant 0 : index
    %18 = vector.load %arg6[%c0_17, %c0_18, %c0_19] : memref<4x32x8xbf16, #tpu.memory_space<vmem>>, vector<1x32x8xbf16>
    %19 = vector.shape_cast %18 : vector<1x32x8xbf16> to vector<32x8xbf16>
    %cst_20 = arith.constant dense<0.000000e+00> : vector<16x8xf32>
    %20 = tpu.matmul %6, %19, %cst_20 {dimension_numbers = #tpu.dot_dimension_numbers<[1], [0], [0], [1], [0, 0, 1, 1], [], []>} : vector<16x32xbf16>, vector<32x8xbf16>, vector<16x8xf32> -> vector<16x8xf32>
    %c0_21 = arith.constant 0 : index
    %c0_22 = arith.constant 0 : index
    %c0_23 = arith.constant 0 : index
    %21 = vector.load %arg7[%c0_21, %c0_22, %c0_23] : memref<4x1x8xf32, #tpu.memory_space<vmem>>, vector<1x1x8xf32>
    %22 = vector.shape_cast %21 : vector<1x1x8xf32> to vector<1x8xf32>
    %23 = vector.broadcast %22 : vector<1x8xf32> to vector<16x8xf32>
    %24 = arith.addf %20, %23 : vector<16x8xf32>
    %25 = vector.shape_cast %24 : vector<16x8xf32> to vector<2x8x8xf32>
    %26 = arith.truncf %25 : vector<2x8x8xf32> to vector<2x8x8xbf16>
    %c0_24 = arith.constant 0 : index
    %c0_25 = arith.constant 0 : index
    %c0_26 = arith.constant 0 : index
    %27 = vector.load %arg8[%c0_24, %c0_25, %c0_26] : memref<4x32x8xbf16, #tpu.memory_space<vmem>>, vector<1x32x8xbf16>
    %28 = vector.shape_cast %27 : vector<1x32x8xbf16> to vector<32x8xbf16>
    %cst_27 = arith.constant dense<0.000000e+00> : vector<16x8xf32>
    %29 = tpu.matmul %8, %28, %cst_27 {dimension_numbers = #tpu.dot_dimension_numbers<[1], [0], [0], [1], [0, 0, 1, 1], [], []>} : vector<16x32xbf16>, vector<32x8xbf16>, vector<16x8xf32> -> vector<16x8xf32>
    %c0_28 = arith.constant 0 : index
    %c0_29 = arith.constant 0 : index
    %c0_30 = arith.constant 0 : index
    %30 = vector.load %arg9[%c0_28, %c0_29, %c0_30] : memref<4x1x8xf32, #tpu.memory_space<vmem>>, vector<1x1x8xf32>
    %31 = vector.shape_cast %30 : vector<1x1x8xf32> to vector<1x8xf32>
    %32 = vector.broadcast %31 : vector<1x8xf32> to vector<16x8xf32>
    %33 = arith.addf %29, %32 : vector<16x8xf32>
    %34 = vector.shape_cast %33 : vector<16x8xf32> to vector<2x8x8xf32>
    %35 = arith.truncf %34 : vector<2x8x8xf32> to vector<2x8x8xbf16>
    "tpu.trace_start"() <{level = 10 : i32, message = "bqd,bkd->bqk"}> : () -> ()
    %cst_31 = arith.constant dense<0.000000e+00> : vector<2x8x8xf32>
    %36 = tpu.matmul %17, %26, %cst_31 {dimension_numbers = #tpu.dot_dimension_numbers<[2], [2], [1], [1], [0, 0, 0, 1, 1, 1], [0], [0]>} : vector<2x8x8xbf16>, vector<2x8x8xbf16>, vector<2x8x8xf32> -> vector<2x8x8xf32>
    "tpu.trace_stop"() : () -> ()
    %cst_32 = arith.constant dense<0xFF800000> : vector<2x8xf32>
    %37 = vector.multi_reduction <maximumf>, %36, %cst_32 [2] : vector<2x8x8xf32> to vector<2x8xf32>
    %38 = vector.shape_cast %37 : vector<2x8xf32> to vector<2x8x1xf32>
    %39 = vector.broadcast %38 : vector<2x8x1xf32> to vector<2x8x8xf32>
    %40 = arith.subf %36, %39 : vector<2x8x8xf32>
    %41 = math.exp %40 : vector<2x8x8xf32>
    %cst_33 = arith.constant dense<0.000000e+00> : vector<2x8xf32>
    %42 = vector.multi_reduction <add>, %41, %cst_33 [2] : vector<2x8x8xf32> to vector<2x8xf32>
    %43 = vector.shape_cast %42 : vector<2x8xf32> to vector<2x8x1xf32>
    %44 = tpu.reciprocal %43 {approx = true} : vector<2x8x1xf32> -> vector<2x8x1xf32>
    %45 = vector.broadcast %44 : vector<2x8x1xf32> to vector<2x8x8xf32>
    %46 = arith.mulf %41, %45 : vector<2x8x8xf32>
    %47 = arith.truncf %46 : vector<2x8x8xf32> to vector<2x8x8xbf16>
    "tpu.trace_start"() <{level = 10 : i32, message = "bqk,bkd->bqd"}> : () -> ()
    %cst_34 = arith.constant dense<0.000000e+00> : vector<2x8x8xf32>
    %48 = tpu.matmul %47, %35, %cst_34 {dimension_numbers = #tpu.dot_dimension_numbers<[2], [1], [1], [2], [0, 0, 0, 1, 1, 2], [0], [0]>} : vector<2x8x8xbf16>, vector<2x8x8xbf16>, vector<2x8x8xf32> -> vector<2x8x8xf32>
    "tpu.trace_stop"() : () -> ()
    %49 = vector.shape_cast %48 : vector<2x8x8xf32> to vector<16x8xf32>
    %50 = arith.truncf %49 : vector<16x8xf32> to vector<16x8xbf16>
    %c0_35 = arith.constant 0 : index
    %c0_36 = arith.constant 0 : index
    %c0_37 = arith.constant 0 : index
    %51 = vector.load %arg10[%c0_35, %c0_36, %c0_37] : memref<4x8x32xbf16, #tpu.memory_space<vmem>>, vector<1x8x32xbf16>
    %52 = vector.shape_cast %51 : vector<1x8x32xbf16> to vector<8x32xbf16>
    %cst_38 = arith.constant dense<0.000000e+00> : vector<16x32xf32>
    %53 = tpu.matmul %50, %52, %cst_38 {dimension_numbers = #tpu.dot_dimension_numbers<[1], [0], [0], [1], [0, 0, 1, 1], [], []>} : vector<16x8xbf16>, vector<8x32xbf16>, vector<16x32xf32> -> vector<16x32xf32>
    %c1 = arith.constant 1 : index
    %c0_39 = arith.constant 0 : index
    %c0_40 = arith.constant 0 : index
    %54 = vector.load %arg4[%c1, %c0_39, %c0_40] : memref<4x32x8xbf16, #tpu.memory_space<vmem>>, vector<1x32x8xbf16>
    %55 = vector.shape_cast %54 : vector<1x32x8xbf16> to vector<32x8xbf16>
    %cst_41 = arith.constant dense<0.000000e+00> : vector<16x8xf32>
    %56 = tpu.matmul %6, %55, %cst_41 {dimension_numbers = #tpu.dot_dimension_numbers<[1], [0], [0], [1], [0, 0, 1, 1], [], []>} : vector<16x32xbf16>, vector<32x8xbf16>, vector<16x8xf32> -> vector<16x8xf32>
    %c1_42 = arith.constant 1 : index
    %c0_43 = arith.constant 0 : index
    %c0_44 = arith.constant 0 : index
    %57 = vector.load %arg5[%c1_42, %c0_43, %c0_44] : memref<4x1x8xf32, #tpu.memory_space<vmem>>, vector<1x1x8xf32>
    %58 = vector.shape_cast %57 : vector<1x1x8xf32> to vector<1x8xf32>
    %59 = vector.broadcast %58 : vector<1x8xf32> to vector<16x8xf32>
    %60 = arith.addf %56, %59 : vector<16x8xf32>
    %61 = vector.shape_cast %60 : vector<16x8xf32> to vector<2x8x8xf32>
    %62 = arith.truncf %61 : vector<2x8x8xf32> to vector<2x8x8xbf16>
    %c1_45 = arith.constant 1 : index
    %c0_46 = arith.constant 0 : index
    %c0_47 = arith.constant 0 : index
    %63 = vector.load %arg6[%c1_45, %c0_46, %c0_47] : memref<4x32x8xbf16, #tpu.memory_space<vmem>>, vector<1x32x8xbf16>
    %64 = vector.shape_cast %63 : vector<1x32x8xbf16> to vector<32x8xbf16>
    %cst_48 = arith.constant dense<0.000000e+00> : vector<16x8xf32>
    %65 = tpu.matmul %6, %64, %cst_48 {dimension_numbers = #tpu.dot_dimension_numbers<[1], [0], [0], [1], [0, 0, 1, 1], [], []>} : vector<16x32xbf16>, vector<32x8xbf16>, vector<16x8xf32> -> vector<16x8xf32>
    %c1_49 = arith.constant 1 : index
    %c0_50 = arith.constant 0 : index
    %c0_51 = arith.constant 0 : index
    %66 = vector.load %arg7[%c1_49, %c0_50, %c0_51] : memref<4x1x8xf32, #tpu.memory_space<vmem>>, vector<1x1x8xf32>
    %67 = vector.shape_cast %66 : vector<1x1x8xf32> to vector<1x8xf32>
    %68 = vector.broadcast %67 : vector<1x8xf32> to vector<16x8xf32>
    %69 = arith.addf %65, %68 : vector<16x8xf32>
    %70 = vector.shape_cast %69 : vector<16x8xf32> to vector<2x8x8xf32>
    %71 = arith.truncf %70 : vector<2x8x8xf32> to vector<2x8x8xbf16>
    %c1_52 = arith.constant 1 : index
    %c0_53 = arith.constant 0 : index
    %c0_54 = arith.constant 0 : index
    %72 = vector.load %arg8[%c1_52, %c0_53, %c0_54] : memref<4x32x8xbf16, #tpu.memory_space<vmem>>, vector<1x32x8xbf16>
    %73 = vector.shape_cast %72 : vector<1x32x8xbf16> to vector<32x8xbf16>
    %cst_55 = arith.constant dense<0.000000e+00> : vector<16x8xf32>
    %74 = tpu.matmul %8, %73, %cst_55 {dimension_numbers = #tpu.dot_dimension_numbers<[1], [0], [0], [1], [0, 0, 1, 1], [], []>} : vector<16x32xbf16>, vector<32x8xbf16>, vector<16x8xf32> -> vector<16x8xf32>
    %c1_56 = arith.constant 1 : index
    %c0_57 = arith.constant 0 : index
    %c0_58 = arith.constant 0 : index
    %75 = vector.load %arg9[%c1_56, %c0_57, %c0_58] : memref<4x1x8xf32, #tpu.memory_space<vmem>>, vector<1x1x8xf32>
    %76 = vector.shape_cast %75 : vector<1x1x8xf32> to vector<1x8xf32>
    %77 = vector.broadcast %76 : vector<1x8xf32> to vector<16x8xf32>
    %78 = arith.addf %74, %77 : vector<16x8xf32>
    %79 = vector.shape_cast %78 : vector<16x8xf32> to vector<2x8x8xf32>
    %80 = arith.truncf %79 : vector<2x8x8xf32> to vector<2x8x8xbf16>
    "tpu.trace_start"() <{level = 10 : i32, message = "bqd,bkd->bqk"}> : () -> ()
    %cst_59 = arith.constant dense<0.000000e+00> : vector<2x8x8xf32>
    %81 = tpu.matmul %62, %71, %cst_59 {dimension_numbers = #tpu.dot_dimension_numbers<[2], [2], [1], [1], [0, 0, 0, 1, 1, 1], [0], [0]>} : vector<2x8x8xbf16>, vector<2x8x8xbf16>, vector<2x8x8xf32> -> vector<2x8x8xf32>
    "tpu.trace_stop"() : () -> ()
    %cst_60 = arith.constant dense<0xFF800000> : vector<2x8xf32>
    %82 = vector.multi_reduction <maximumf>, %81, %cst_60 [2] : vector<2x8x8xf32> to vector<2x8xf32>
    %83 = vector.shape_cast %82 : vector<2x8xf32> to vector<2x8x1xf32>
    %84 = vector.broadcast %83 : vector<2x8x1xf32> to vector<2x8x8xf32>
    %85 = arith.subf %81, %84 : vector<2x8x8xf32>
    %86 = math.exp %85 : vector<2x8x8xf32>
    %cst_61 = arith.constant dense<0.000000e+00> : vector<2x8xf32>
    %87 = vector.multi_reduction <add>, %86, %cst_61 [2] : vector<2x8x8xf32> to vector<2x8xf32>
    %88 = vector.shape_cast %87 : vector<2x8xf32> to vector<2x8x1xf32>
    %89 = tpu.reciprocal %88 {approx = true} : vector<2x8x1xf32> -> vector<2x8x1xf32>
    %90 = vector.broadcast %89 : vector<2x8x1xf32> to vector<2x8x8xf32>
    %91 = arith.mulf %86, %90 : vector<2x8x8xf32>
    %92 = arith.truncf %91 : vector<2x8x8xf32> to vector<2x8x8xbf16>
    "tpu.trace_start"() <{level = 10 : i32, message = "bqk,bkd->bqd"}> : () -> ()
    %cst_62 = arith.constant dense<0.000000e+00> : vector<2x8x8xf32>
    %93 = tpu.matmul %92, %80, %cst_62 {dimension_numbers = #tpu.dot_dimension_numbers<[2], [1], [1], [2], [0, 0, 0, 1, 1, 2], [0], [0]>} : vector<2x8x8xbf16>, vector<2x8x8xbf16>, vector<2x8x8xf32> -> vector<2x8x8xf32>
    "tpu.trace_stop"() : () -> ()
    %94 = vector.shape_cast %93 : vector<2x8x8xf32> to vector<16x8xf32>
    %95 = arith.truncf %94 : vector<16x8xf32> to vector<16x8xbf16>
    %c1_63 = arith.constant 1 : index
    %c0_64 = arith.constant 0 : index
    %c0_65 = arith.constant 0 : index
    %96 = vector.load %arg10[%c1_63, %c0_64, %c0_65] : memref<4x8x32xbf16, #tpu.memory_space<vmem>>, vector<1x8x32xbf16>
    %97 = vector.shape_cast %96 : vector<1x8x32xbf16> to vector<8x32xbf16>
    %cst_66 = arith.constant dense<0.000000e+00> : vector<16x32xf32>
    %98 = tpu.matmul %95, %97, %cst_66 {dimension_numbers = #tpu.dot_dimension_numbers<[1], [0], [0], [1], [0, 0, 1, 1], [], []>} : vector<16x8xbf16>, vector<8x32xbf16>, vector<16x32xf32> -> vector<16x32xf32>
    %99 = arith.addf %53, %98 : vector<16x32xf32>
    %c2 = arith.constant 2 : index
    %c0_67 = arith.constant 0 : index
    %c0_68 = arith.constant 0 : index
    %100 = vector.load %arg4[%c2, %c0_67, %c0_68] : memref<4x32x8xbf16, #tpu.memory_space<vmem>>, vector<1x32x8xbf16>
    %101 = vector.shape_cast %100 : vector<1x32x8xbf16> to vector<32x8xbf16>
    %cst_69 = arith.constant dense<0.000000e+00> : vector<16x8xf32>
    %102 = tpu.matmul %6, %101, %cst_69 {dimension_numbers = #tpu.dot_dimension_numbers<[1], [0], [0], [1], [0, 0, 1, 1], [], []>} : vector<16x32xbf16>, vector<32x8xbf16>, vector<16x8xf32> -> vector<16x8xf32>
    %c2_70 = arith.constant 2 : index
    %c0_71 = arith.constant 0 : index
    %c0_72 = arith.constant 0 : index
    %103 = vector.load %arg5[%c2_70, %c0_71, %c0_72] : memref<4x1x8xf32, #tpu.memory_space<vmem>>, vector<1x1x8xf32>
    %104 = vector.shape_cast %103 : vector<1x1x8xf32> to vector<1x8xf32>
    %105 = vector.broadcast %104 : vector<1x8xf32> to vector<16x8xf32>
    %106 = arith.addf %102, %105 : vector<16x8xf32>
    %107 = vector.shape_cast %106 : vector<16x8xf32> to vector<2x8x8xf32>
    %108 = arith.truncf %107 : vector<2x8x8xf32> to vector<2x8x8xbf16>
    %c2_73 = arith.constant 2 : index
    %c0_74 = arith.constant 0 : index
    %c0_75 = arith.constant 0 : index
    %109 = vector.load %arg6[%c2_73, %c0_74, %c0_75] : memref<4x32x8xbf16, #tpu.memory_space<vmem>>, vector<1x32x8xbf16>
    %110 = vector.shape_cast %109 : vector<1x32x8xbf16> to vector<32x8xbf16>
    %cst_76 = arith.constant dense<0.000000e+00> : vector<16x8xf32>
    %111 = tpu.matmul %6, %110, %cst_76 {dimension_numbers = #tpu.dot_dimension_numbers<[1], [0], [0], [1], [0, 0, 1, 1], [], []>} : vector<16x32xbf16>, vector<32x8xbf16>, vector<16x8xf32> -> vector<16x8xf32>
    %c2_77 = arith.constant 2 : index
    %c0_78 = arith.constant 0 : index
    %c0_79 = arith.constant 0 : index
    %112 = vector.load %arg7[%c2_77, %c0_78, %c0_79] : memref<4x1x8xf32, #tpu.memory_space<vmem>>, vector<1x1x8xf32>
    %113 = vector.shape_cast %112 : vector<1x1x8xf32> to vector<1x8xf32>
    %114 = vector.broadcast %113 : vector<1x8xf32> to vector<16x8xf32>
    %115 = arith.addf %111, %114 : vector<16x8xf32>
    %116 = vector.shape_cast %115 : vector<16x8xf32> to vector<2x8x8xf32>
    %117 = arith.truncf %116 : vector<2x8x8xf32> to vector<2x8x8xbf16>
    %c2_80 = arith.constant 2 : index
    %c0_81 = arith.constant 0 : index
    %c0_82 = arith.constant 0 : index
    %118 = vector.load %arg8[%c2_80, %c0_81, %c0_82] : memref<4x32x8xbf16, #tpu.memory_space<vmem>>, vector<1x32x8xbf16>
    %119 = vector.shape_cast %118 : vector<1x32x8xbf16> to vector<32x8xbf16>
    %cst_83 = arith.constant dense<0.000000e+00> : vector<16x8xf32>
    %120 = tpu.matmul %8, %119, %cst_83 {dimension_numbers = #tpu.dot_dimension_numbers<[1], [0], [0], [1], [0, 0, 1, 1], [], []>} : vector<16x32xbf16>, vector<32x8xbf16>, vector<16x8xf32> -> vector<16x8xf32>
    %c2_84 = arith.constant 2 : index
    %c0_85 = arith.constant 0 : index
    %c0_86 = arith.constant 0 : index
    %121 = vector.load %arg9[%c2_84, %c0_85, %c0_86] : memref<4x1x8xf32, #tpu.memory_space<vmem>>, vector<1x1x8xf32>
    %122 = vector.shape_cast %121 : vector<1x1x8xf32> to vector<1x8xf32>
    %123 = vector.broadcast %122 : vector<1x8xf32> to vector<16x8xf32>
    %124 = arith.addf %120, %123 : vector<16x8xf32>
    %125 = vector.shape_cast %124 : vector<16x8xf32> to vector<2x8x8xf32>
    %126 = arith.truncf %125 : vector<2x8x8xf32> to vector<2x8x8xbf16>
    "tpu.trace_start"() <{level = 10 : i32, message = "bqd,bkd->bqk"}> : () -> ()
    %cst_87 = arith.constant dense<0.000000e+00> : vector<2x8x8xf32>
    %127 = tpu.matmul %108, %117, %cst_87 {dimension_numbers = #tpu.dot_dimension_numbers<[2], [2], [1], [1], [0, 0, 0, 1, 1, 1], [0], [0]>} : vector<2x8x8xbf16>, vector<2x8x8xbf16>, vector<2x8x8xf32> -> vector<2x8x8xf32>
    "tpu.trace_stop"() : () -> ()
    %cst_88 = arith.constant dense<0xFF800000> : vector<2x8xf32>
    %128 = vector.multi_reduction <maximumf>, %127, %cst_88 [2] : vector<2x8x8xf32> to vector<2x8xf32>
    %129 = vector.shape_cast %128 : vector<2x8xf32> to vector<2x8x1xf32>
    %130 = vector.broadcast %129 : vector<2x8x1xf32> to vector<2x8x8xf32>
    %131 = arith.subf %127, %130 : vector<2x8x8xf32>
    %132 = math.exp %131 : vector<2x8x8xf32>
    %cst_89 = arith.constant dense<0.000000e+00> : vector<2x8xf32>
    %133 = vector.multi_reduction <add>, %132, %cst_89 [2] : vector<2x8x8xf32> to vector<2x8xf32>
    %134 = vector.shape_cast %133 : vector<2x8xf32> to vector<2x8x1xf32>
    %135 = tpu.reciprocal %134 {approx = true} : vector<2x8x1xf32> -> vector<2x8x1xf32>
    %136 = vector.broadcast %135 : vector<2x8x1xf32> to vector<2x8x8xf32>
    %137 = arith.mulf %132, %136 : vector<2x8x8xf32>
    %138 = arith.truncf %137 : vector<2x8x8xf32> to vector<2x8x8xbf16>
    "tpu.trace_start"() <{level = 10 : i32, message = "bqk,bkd->bqd"}> : () -> ()
    %cst_90 = arith.constant dense<0.000000e+00> : vector<2x8x8xf32>
    %139 = tpu.matmul %138, %126, %cst_90 {dimension_numbers = #tpu.dot_dimension_numbers<[2], [1], [1], [2], [0, 0, 0, 1, 1, 2], [0], [0]>} : vector<2x8x8xbf16>, vector<2x8x8xbf16>, vector<2x8x8xf32> -> vector<2x8x8xf32>
    "tpu.trace_stop"() : () -> ()
    %140 = vector.shape_cast %139 : vector<2x8x8xf32> to vector<16x8xf32>
    %141 = arith.truncf %140 : vector<16x8xf32> to vector<16x8xbf16>
    %c2_91 = arith.constant 2 : index
    %c0_92 = arith.constant 0 : index
    %c0_93 = arith.constant 0 : index
    %142 = vector.load %arg10[%c2_91, %c0_92, %c0_93] : memref<4x8x32xbf16, #tpu.memory_space<vmem>>, vector<1x8x32xbf16>
    %143 = vector.shape_cast %142 : vector<1x8x32xbf16> to vector<8x32xbf16>
    %cst_94 = arith.constant dense<0.000000e+00> : vector<16x32xf32>
    %144 = tpu.matmul %141, %143, %cst_94 {dimension_numbers = #tpu.dot_dimension_numbers<[1], [0], [0], [1], [0, 0, 1, 1], [], []>} : vector<16x8xbf16>, vector<8x32xbf16>, vector<16x32xf32> -> vector<16x32xf32>
    %145 = arith.addf %99, %144 : vector<16x32xf32>
    %c3 = arith.constant 3 : index
    %c0_95 = arith.constant 0 : index
    %c0_96 = arith.constant 0 : index
    %146 = vector.load %arg4[%c3, %c0_95, %c0_96] : memref<4x32x8xbf16, #tpu.memory_space<vmem>>, vector<1x32x8xbf16>
    %147 = vector.shape_cast %146 : vector<1x32x8xbf16> to vector<32x8xbf16>
    %cst_97 = arith.constant dense<0.000000e+00> : vector<16x8xf32>
    %148 = tpu.matmul %6, %147, %cst_97 {dimension_numbers = #tpu.dot_dimension_numbers<[1], [0], [0], [1], [0, 0, 1, 1], [], []>} : vector<16x32xbf16>, vector<32x8xbf16>, vector<16x8xf32> -> vector<16x8xf32>
    %c3_98 = arith.constant 3 : index
    %c0_99 = arith.constant 0 : index
    %c0_100 = arith.constant 0 : index
    %149 = vector.load %arg5[%c3_98, %c0_99, %c0_100] : memref<4x1x8xf32, #tpu.memory_space<vmem>>, vector<1x1x8xf32>
    %150 = vector.shape_cast %149 : vector<1x1x8xf32> to vector<1x8xf32>
    %151 = vector.broadcast %150 : vector<1x8xf32> to vector<16x8xf32>
    %152 = arith.addf %148, %151 : vector<16x8xf32>
    %153 = vector.shape_cast %152 : vector<16x8xf32> to vector<2x8x8xf32>
    %154 = arith.truncf %153 : vector<2x8x8xf32> to vector<2x8x8xbf16>
    %c3_101 = arith.constant 3 : index
    %c0_102 = arith.constant 0 : index
    %c0_103 = arith.constant 0 : index
    %155 = vector.load %arg6[%c3_101, %c0_102, %c0_103] : memref<4x32x8xbf16, #tpu.memory_space<vmem>>, vector<1x32x8xbf16>
    %156 = vector.shape_cast %155 : vector<1x32x8xbf16> to vector<32x8xbf16>
    %cst_104 = arith.constant dense<0.000000e+00> : vector<16x8xf32>
    %157 = tpu.matmul %6, %156, %cst_104 {dimension_numbers = #tpu.dot_dimension_numbers<[1], [0], [0], [1], [0, 0, 1, 1], [], []>} : vector<16x32xbf16>, vector<32x8xbf16>, vector<16x8xf32> -> vector<16x8xf32>
    %c3_105 = arith.constant 3 : index
    %c0_106 = arith.constant 0 : index
    %c0_107 = arith.constant 0 : index
    %158 = vector.load %arg7[%c3_105, %c0_106, %c0_107] : memref<4x1x8xf32, #tpu.memory_space<vmem>>, vector<1x1x8xf32>
    %159 = vector.shape_cast %158 : vector<1x1x8xf32> to vector<1x8xf32>
    %160 = vector.broadcast %159 : vector<1x8xf32> to vector<16x8xf32>
    %161 = arith.addf %157, %160 : vector<16x8xf32>
    %162 = vector.shape_cast %161 : vector<16x8xf32> to vector<2x8x8xf32>
    %163 = arith.truncf %162 : vector<2x8x8xf32> to vector<2x8x8xbf16>
    %c3_108 = arith.constant 3 : index
    %c0_109 = arith.constant 0 : index
    %c0_110 = arith.constant 0 : index
    %164 = vector.load %arg8[%c3_108, %c0_109, %c0_110] : memref<4x32x8xbf16, #tpu.memory_space<vmem>>, vector<1x32x8xbf16>
    %165 = vector.shape_cast %164 : vector<1x32x8xbf16> to vector<32x8xbf16>
    %cst_111 = arith.constant dense<0.000000e+00> : vector<16x8xf32>
    %166 = tpu.matmul %8, %165, %cst_111 {dimension_numbers = #tpu.dot_dimension_numbers<[1], [0], [0], [1], [0, 0, 1, 1], [], []>} : vector<16x32xbf16>, vector<32x8xbf16>, vector<16x8xf32> -> vector<16x8xf32>
    %c3_112 = arith.constant 3 : index
    %c0_113 = arith.constant 0 : index
    %c0_114 = arith.constant 0 : index
    %167 = vector.load %arg9[%c3_112, %c0_113, %c0_114] : memref<4x1x8xf32, #tpu.memory_space<vmem>>, vector<1x1x8xf32>
    %168 = vector.shape_cast %167 : vector<1x1x8xf32> to vector<1x8xf32>
    %169 = vector.broadcast %168 : vector<1x8xf32> to vector<16x8xf32>
    %170 = arith.addf %166, %169 : vector<16x8xf32>
    %171 = vector.shape_cast %170 : vector<16x8xf32> to vector<2x8x8xf32>
    %172 = arith.truncf %171 : vector<2x8x8xf32> to vector<2x8x8xbf16>
    "tpu.trace_start"() <{level = 10 : i32, message = "bqd,bkd->bqk"}> : () -> ()
    %cst_115 = arith.constant dense<0.000000e+00> : vector<2x8x8xf32>
    %173 = tpu.matmul %154, %163, %cst_115 {dimension_numbers = #tpu.dot_dimension_numbers<[2], [2], [1], [1], [0, 0, 0, 1, 1, 1], [0], [0]>} : vector<2x8x8xbf16>, vector<2x8x8xbf16>, vector<2x8x8xf32> -> vector<2x8x8xf32>
    "tpu.trace_stop"() : () -> ()
    %cst_116 = arith.constant dense<0xFF800000> : vector<2x8xf32>
    %174 = vector.multi_reduction <maximumf>, %173, %cst_116 [2] : vector<2x8x8xf32> to vector<2x8xf32>
    %175 = vector.shape_cast %174 : vector<2x8xf32> to vector<2x8x1xf32>
    %176 = vector.broadcast %175 : vector<2x8x1xf32> to vector<2x8x8xf32>
    %177 = arith.subf %173, %176 : vector<2x8x8xf32>
    %178 = math.exp %177 : vector<2x8x8xf32>
    %cst_117 = arith.constant dense<0.000000e+00> : vector<2x8xf32>
    %179 = vector.multi_reduction <add>, %178, %cst_117 [2] : vector<2x8x8xf32> to vector<2x8xf32>
    %180 = vector.shape_cast %179 : vector<2x8xf32> to vector<2x8x1xf32>
    %181 = tpu.reciprocal %180 {approx = true} : vector<2x8x1xf32> -> vector<2x8x1xf32>
    %182 = vector.broadcast %181 : vector<2x8x1xf32> to vector<2x8x8xf32>
    %183 = arith.mulf %178, %182 : vector<2x8x8xf32>
    %184 = arith.truncf %183 : vector<2x8x8xf32> to vector<2x8x8xbf16>
    "tpu.trace_start"() <{level = 10 : i32, message = "bqk,bkd->bqd"}> : () -> ()
    %cst_118 = arith.constant dense<0.000000e+00> : vector<2x8x8xf32>
    %185 = tpu.matmul %184, %172, %cst_118 {dimension_numbers = #tpu.dot_dimension_numbers<[2], [1], [1], [2], [0, 0, 0, 1, 1, 2], [0], [0]>} : vector<2x8x8xbf16>, vector<2x8x8xbf16>, vector<2x8x8xf32> -> vector<2x8x8xf32>
    "tpu.trace_stop"() : () -> ()
    %186 = vector.shape_cast %185 : vector<2x8x8xf32> to vector<16x8xf32>
    %187 = arith.truncf %186 : vector<16x8xf32> to vector<16x8xbf16>
    %c3_119 = arith.constant 3 : index
    %c0_120 = arith.constant 0 : index
    %c0_121 = arith.constant 0 : index
    %188 = vector.load %arg10[%c3_119, %c0_120, %c0_121] : memref<4x8x32xbf16, #tpu.memory_space<vmem>>, vector<1x8x32xbf16>
    %189 = vector.shape_cast %188 : vector<1x8x32xbf16> to vector<8x32xbf16>
    %cst_122 = arith.constant dense<0.000000e+00> : vector<16x32xf32>
    %190 = tpu.matmul %187, %189, %cst_122 {dimension_numbers = #tpu.dot_dimension_numbers<[1], [0], [0], [1], [0, 0, 1, 1], [], []>} : vector<16x8xbf16>, vector<8x32xbf16>, vector<16x32xf32> -> vector<16x32xf32>
    %191 = arith.addf %145, %190 : vector<16x32xf32>
    %c0_123 = arith.constant 0 : index
    %c0_124 = arith.constant 0 : index
    %192 = vector.load %arg11[%c0_123, %c0_124] : memref<1x32xf32, #tpu.memory_space<vmem>>, vector<1x32xf32>
    %193 = vector.broadcast %192 : vector<1x32xf32> to vector<16x32xf32>
    %194 = arith.addf %191, %193 : vector<16x32xf32>
    %195 = vector.shape_cast %194 : vector<16x32xf32> to vector<2x8x32xf32>
    %196 = arith.addf %0, %195 : vector<2x8x32xf32>
    %197 = arith.addf %196, %1 : vector<2x8x32xf32>
    %198 = arith.addf %2, %3 : vector<2x16x32xf32>
    %199 = vector.shape_cast %197 : vector<2x8x32xf32> to vector<16x32xf32>
    %200 = arith.truncf %199 : vector<16x32xf32> to vector<16x32xbf16>
    %201 = vector.shape_cast %198 : vector<2x16x32xf32> to vector<32x32xf32>
    %202 = arith.truncf %201 : vector<32x32xf32> to vector<32x32xbf16>
    %203 = vector.shape_cast %2 : vector<2x16x32xf32> to vector<32x32xf32>
    %204 = arith.truncf %203 : vector<32x32xf32> to vector<32x32xbf16>
    %c0_125 = arith.constant 0 : index
    %c0_126 = arith.constant 0 : index
    %c0_127 = arith.constant 0 : index
    %205 = vector.load %arg12[%c0_125, %c0_126, %c0_127] : memref<4x32x8xbf16, #tpu.memory_space<vmem>>, vector<1x32x8xbf16>
    %206 = vector.shape_cast %205 : vector<1x32x8xbf16> to vector<32x8xbf16>
    %cst_128 = arith.constant dense<0.000000e+00> : vector<16x8xf32>
    %207 = tpu.matmul %200, %206, %cst_128 {dimension_numbers = #tpu.dot_dimension_numbers<[1], [0], [0], [1], [0, 0, 1, 1], [], []>} : vector<16x32xbf16>, vector<32x8xbf16>, vector<16x8xf32> -> vector<16x8xf32>
    %c0_129 = arith.constant 0 : index
    %c0_130 = arith.constant 0 : index
    %c0_131 = arith.constant 0 : index
    %208 = vector.load %arg13[%c0_129, %c0_130, %c0_131] : memref<4x1x8xf32, #tpu.memory_space<vmem>>, vector<1x1x8xf32>
    %209 = vector.shape_cast %208 : vector<1x1x8xf32> to vector<1x8xf32>
    %210 = vector.broadcast %209 : vector<1x8xf32> to vector<16x8xf32>
    %211 = arith.addf %207, %210 : vector<16x8xf32>
    %212 = vector.shape_cast %211 : vector<16x8xf32> to vector<2x8x8xf32>
    %213 = arith.truncf %212 : vector<2x8x8xf32> to vector<2x8x8xbf16>
    %c0_132 = arith.constant 0 : index
    %c0_133 = arith.constant 0 : index
    %c0_134 = arith.constant 0 : index
    %214 = vector.load %arg14[%c0_132, %c0_133, %c0_134] : memref<4x32x8xbf16, #tpu.memory_space<vmem>>, vector<1x32x8xbf16>
    %215 = vector.shape_cast %214 : vector<1x32x8xbf16> to vector<32x8xbf16>
    %cst_135 = arith.constant dense<0.000000e+00> : vector<32x8xf32>
    %216 = tpu.matmul %202, %215, %cst_135 {dimension_numbers = #tpu.dot_dimension_numbers<[1], [0], [0], [1], [0, 0, 1, 1], [], []>} : vector<32x32xbf16>, vector<32x8xbf16>, vector<32x8xf32> -> vector<32x8xf32>
    %c0_136 = arith.constant 0 : index
    %c0_137 = arith.constant 0 : index
    %c0_138 = arith.constant 0 : index
    %217 = vector.load %arg15[%c0_136, %c0_137, %c0_138] : memref<4x1x8xf32, #tpu.memory_space<vmem>>, vector<1x1x8xf32>
    %218 = vector.shape_cast %217 : vector<1x1x8xf32> to vector<1x8xf32>
    %219 = vector.broadcast %218 : vector<1x8xf32> to vector<32x8xf32>
    %220 = arith.addf %216, %219 : vector<32x8xf32>
    %221 = vector.shape_cast %220 : vector<32x8xf32> to vector<2x16x8xf32>
    %222 = arith.truncf %221 : vector<2x16x8xf32> to vector<2x16x8xbf16>
    %c0_139 = arith.constant 0 : index
    %c0_140 = arith.constant 0 : index
    %c0_141 = arith.constant 0 : index
    %223 = vector.load %arg16[%c0_139, %c0_140, %c0_141] : memref<4x32x8xbf16, #tpu.memory_space<vmem>>, vector<1x32x8xbf16>
    %224 = vector.shape_cast %223 : vector<1x32x8xbf16> to vector<32x8xbf16>
    %cst_142 = arith.constant dense<0.000000e+00> : vector<32x8xf32>
    %225 = tpu.matmul %204, %224, %cst_142 {dimension_numbers = #tpu.dot_dimension_numbers<[1], [0], [0], [1], [0, 0, 1, 1], [], []>} : vector<32x32xbf16>, vector<32x8xbf16>, vector<32x8xf32> -> vector<32x8xf32>
    %c0_143 = arith.constant 0 : index
    %c0_144 = arith.constant 0 : index
    %c0_145 = arith.constant 0 : index
    %226 = vector.load %arg17[%c0_143, %c0_144, %c0_145] : memref<4x1x8xf32, #tpu.memory_space<vmem>>, vector<1x1x8xf32>
    %227 = vector.shape_cast %226 : vector<1x1x8xf32> to vector<1x8xf32>
    %228 = vector.broadcast %227 : vector<1x8xf32> to vector<32x8xf32>
    %229 = arith.addf %225, %228 : vector<32x8xf32>
    %230 = vector.shape_cast %229 : vector<32x8xf32> to vector<2x16x8xf32>
    %231 = arith.truncf %230 : vector<2x16x8xf32> to vector<2x16x8xbf16>
    "tpu.trace_start"() <{level = 10 : i32, message = "bqd,bkd->bqk"}> : () -> ()
    %cst_146 = arith.constant dense<0.000000e+00> : vector<2x8x16xf32>
    %232 = tpu.matmul %213, %222, %cst_146 {dimension_numbers = #tpu.dot_dimension_numbers<[2], [2], [1], [1], [0, 0, 0, 1, 1, 1], [0], [0]>} : vector<2x8x8xbf16>, vector<2x16x8xbf16>, vector<2x8x16xf32> -> vector<2x8x16xf32>
    "tpu.trace_stop"() : () -> ()
    %cst_147 = arith.constant dense<0xFF800000> : vector<2x8xf32>
    %233 = vector.multi_reduction <maximumf>, %232, %cst_147 [2] : vector<2x8x16xf32> to vector<2x8xf32>
    %234 = vector.shape_cast %233 : vector<2x8xf32> to vector<2x8x1xf32>
    %235 = vector.broadcast %234 : vector<2x8x1xf32> to vector<2x8x16xf32>
    %236 = arith.subf %232, %235 : vector<2x8x16xf32>
    %237 = math.exp %236 : vector<2x8x16xf32>
    %cst_148 = arith.constant dense<0.000000e+00> : vector<2x8xf32>
    %238 = vector.multi_reduction <add>, %237, %cst_148 [2] : vector<2x8x16xf32> to vector<2x8xf32>
    %239 = vector.shape_cast %238 : vector<2x8xf32> to vector<2x8x1xf32>
    %240 = tpu.reciprocal %239 {approx = true} : vector<2x8x1xf32> -> vector<2x8x1xf32>
    %241 = vector.broadcast %240 : vector<2x8x1xf32> to vector<2x8x16xf32>
    %242 = arith.mulf %237, %241 : vector<2x8x16xf32>
    %243 = arith.truncf %242 : vector<2x8x16xf32> to vector<2x8x16xbf16>
    "tpu.trace_start"() <{level = 10 : i32, message = "bqk,bkd->bqd"}> : () -> ()
    %cst_149 = arith.constant dense<0.000000e+00> : vector<2x8x8xf32>
    %244 = tpu.matmul %243, %231, %cst_149 {dimension_numbers = #tpu.dot_dimension_numbers<[2], [1], [1], [2], [0, 0, 0, 1, 1, 2], [0], [0]>} : vector<2x8x16xbf16>, vector<2x16x8xbf16>, vector<2x8x8xf32> -> vector<2x8x8xf32>
    "tpu.trace_stop"() : () -> ()
    %245 = vector.shape_cast %244 : vector<2x8x8xf32> to vector<16x8xf32>
    %246 = arith.truncf %245 : vector<16x8xf32> to vector<16x8xbf16>
    %c0_150 = arith.constant 0 : index
    %c0_151 = arith.constant 0 : index
    %c0_152 = arith.constant 0 : index
    %247 = vector.load %arg18[%c0_150, %c0_151, %c0_152] : memref<4x8x32xbf16, #tpu.memory_space<vmem>>, vector<1x8x32xbf16>
    %248 = vector.shape_cast %247 : vector<1x8x32xbf16> to vector<8x32xbf16>
    %cst_153 = arith.constant dense<0.000000e+00> : vector<16x32xf32>
    %249 = tpu.matmul %246, %248, %cst_153 {dimension_numbers = #tpu.dot_dimension_numbers<[1], [0], [0], [1], [0, 0, 1, 1], [], []>} : vector<16x8xbf16>, vector<8x32xbf16>, vector<16x32xf32> -> vector<16x32xf32>
    %c1_154 = arith.constant 1 : index
    %c0_155 = arith.constant 0 : index
    %c0_156 = arith.constant 0 : index
    %250 = vector.load %arg12[%c1_154, %c0_155, %c0_156] : memref<4x32x8xbf16, #tpu.memory_space<vmem>>, vector<1x32x8xbf16>
    %251 = vector.shape_cast %250 : vector<1x32x8xbf16> to vector<32x8xbf16>
    %cst_157 = arith.constant dense<0.000000e+00> : vector<16x8xf32>
    %252 = tpu.matmul %200, %251, %cst_157 {dimension_numbers = #tpu.dot_dimension_numbers<[1], [0], [0], [1], [0, 0, 1, 1], [], []>} : vector<16x32xbf16>, vector<32x8xbf16>, vector<16x8xf32> -> vector<16x8xf32>
    %c1_158 = arith.constant 1 : index
    %c0_159 = arith.constant 0 : index
    %c0_160 = arith.constant 0 : index
    %253 = vector.load %arg13[%c1_158, %c0_159, %c0_160] : memref<4x1x8xf32, #tpu.memory_space<vmem>>, vector<1x1x8xf32>
    %254 = vector.shape_cast %253 : vector<1x1x8xf32> to vector<1x8xf32>
    %255 = vector.broadcast %254 : vector<1x8xf32> to vector<16x8xf32>
    %256 = arith.addf %252, %255 : vector<16x8xf32>
    %257 = vector.shape_cast %256 : vector<16x8xf32> to vector<2x8x8xf32>
    %258 = arith.truncf %257 : vector<2x8x8xf32> to vector<2x8x8xbf16>
    %c1_161 = arith.constant 1 : index
    %c0_162 = arith.constant 0 : index
    %c0_163 = arith.constant 0 : index
    %259 = vector.load %arg14[%c1_161, %c0_162, %c0_163] : memref<4x32x8xbf16, #tpu.memory_space<vmem>>, vector<1x32x8xbf16>
    %260 = vector.shape_cast %259 : vector<1x32x8xbf16> to vector<32x8xbf16>
    %cst_164 = arith.constant dense<0.000000e+00> : vector<32x8xf32>
    %261 = tpu.matmul %202, %260, %cst_164 {dimension_numbers = #tpu.dot_dimension_numbers<[1], [0], [0], [1], [0, 0, 1, 1], [], []>} : vector<32x32xbf16>, vector<32x8xbf16>, vector<32x8xf32> -> vector<32x8xf32>
    %c1_165 = arith.constant 1 : index
    %c0_166 = arith.constant 0 : index
    %c0_167 = arith.constant 0 : index
    %262 = vector.load %arg15[%c1_165, %c0_166, %c0_167] : memref<4x1x8xf32, #tpu.memory_space<vmem>>, vector<1x1x8xf32>
    %263 = vector.shape_cast %262 : vector<1x1x8xf32> to vector<1x8xf32>
    %264 = vector.broadcast %263 : vector<1x8xf32> to vector<32x8xf32>
    %265 = arith.addf %261, %264 : vector<32x8xf32>
    %266 = vector.shape_cast %265 : vector<32x8xf32> to vector<2x16x8xf32>
    %267 = arith.truncf %266 : vector<2x16x8xf32> to vector<2x16x8xbf16>
    %c1_168 = arith.constant 1 : index
    %c0_169 = arith.constant 0 : index
    %c0_170 = arith.constant 0 : index
    %268 = vector.load %arg16[%c1_168, %c0_169, %c0_170] : memref<4x32x8xbf16, #tpu.memory_space<vmem>>, vector<1x32x8xbf16>
    %269 = vector.shape_cast %268 : vector<1x32x8xbf16> to vector<32x8xbf16>
    %cst_171 = arith.constant dense<0.000000e+00> : vector<32x8xf32>
    %270 = tpu.matmul %204, %269, %cst_171 {dimension_numbers = #tpu.dot_dimension_numbers<[1], [0], [0], [1], [0, 0, 1, 1], [], []>} : vector<32x32xbf16>, vector<32x8xbf16>, vector<32x8xf32> -> vector<32x8xf32>
    %c1_172 = arith.constant 1 : index
    %c0_173 = arith.constant 0 : index
    %c0_174 = arith.constant 0 : index
    %271 = vector.load %arg17[%c1_172, %c0_173, %c0_174] : memref<4x1x8xf32, #tpu.memory_space<vmem>>, vector<1x1x8xf32>
    %272 = vector.shape_cast %271 : vector<1x1x8xf32> to vector<1x8xf32>
    %273 = vector.broadcast %272 : vector<1x8xf32> to vector<32x8xf32>
    %274 = arith.addf %270, %273 : vector<32x8xf32>
    %275 = vector.shape_cast %274 : vector<32x8xf32> to vector<2x16x8xf32>
    %276 = arith.truncf %275 : vector<2x16x8xf32> to vector<2x16x8xbf16>
    "tpu.trace_start"() <{level = 10 : i32, message = "bqd,bkd->bqk"}> : () -> ()
    %cst_175 = arith.constant dense<0.000000e+00> : vector<2x8x16xf32>
    %277 = tpu.matmul %258, %267, %cst_175 {dimension_numbers = #tpu.dot_dimension_numbers<[2], [2], [1], [1], [0, 0, 0, 1, 1, 1], [0], [0]>} : vector<2x8x8xbf16>, vector<2x16x8xbf16>, vector<2x8x16xf32> -> vector<2x8x16xf32>
    "tpu.trace_stop"() : () -> ()
    %cst_176 = arith.constant dense<0xFF800000> : vector<2x8xf32>
    %278 = vector.multi_reduction <maximumf>, %277, %cst_176 [2] : vector<2x8x16xf32> to vector<2x8xf32>
    %279 = vector.shape_cast %278 : vector<2x8xf32> to vector<2x8x1xf32>
    %280 = vector.broadcast %279 : vector<2x8x1xf32> to vector<2x8x16xf32>
    %281 = arith.subf %277, %280 : vector<2x8x16xf32>
    %282 = math.exp %281 : vector<2x8x16xf32>
    %cst_177 = arith.constant dense<0.000000e+00> : vector<2x8xf32>
    %283 = vector.multi_reduction <add>, %282, %cst_177 [2] : vector<2x8x16xf32> to vector<2x8xf32>
    %284 = vector.shape_cast %283 : vector<2x8xf32> to vector<2x8x1xf32>
    %285 = tpu.reciprocal %284 {approx = true} : vector<2x8x1xf32> -> vector<2x8x1xf32>
    %286 = vector.broadcast %285 : vector<2x8x1xf32> to vector<2x8x16xf32>
    %287 = arith.mulf %282, %286 : vector<2x8x16xf32>
    %288 = arith.truncf %287 : vector<2x8x16xf32> to vector<2x8x16xbf16>
    "tpu.trace_start"() <{level = 10 : i32, message = "bqk,bkd->bqd"}> : () -> ()
    %cst_178 = arith.constant dense<0.000000e+00> : vector<2x8x8xf32>
    %289 = tpu.matmul %288, %276, %cst_178 {dimension_numbers = #tpu.dot_dimension_numbers<[2], [1], [1], [2], [0, 0, 0, 1, 1, 2], [0], [0]>} : vector<2x8x16xbf16>, vector<2x16x8xbf16>, vector<2x8x8xf32> -> vector<2x8x8xf32>
    "tpu.trace_stop"() : () -> ()
    %290 = vector.shape_cast %289 : vector<2x8x8xf32> to vector<16x8xf32>
    %291 = arith.truncf %290 : vector<16x8xf32> to vector<16x8xbf16>
    %c1_179 = arith.constant 1 : index
    %c0_180 = arith.constant 0 : index
    %c0_181 = arith.constant 0 : index
    %292 = vector.load %arg18[%c1_179, %c0_180, %c0_181] : memref<4x8x32xbf16, #tpu.memory_space<vmem>>, vector<1x8x32xbf16>
    %293 = vector.shape_cast %292 : vector<1x8x32xbf16> to vector<8x32xbf16>
    %cst_182 = arith.constant dense<0.000000e+00> : vector<16x32xf32>
    %294 = tpu.matmul %291, %293, %cst_182 {dimension_numbers = #tpu.dot_dimension_numbers<[1], [0], [0], [1], [0, 0, 1, 1], [], []>} : vector<16x8xbf16>, vector<8x32xbf16>, vector<16x32xf32> -> vector<16x32xf32>
    %295 = arith.addf %249, %294 : vector<16x32xf32>
    %296 = arith.addf %242, %287 : vector<2x8x16xf32>
    %c2_183 = arith.constant 2 : index
    %c0_184 = arith.constant 0 : index
    %c0_185 = arith.constant 0 : index
    %297 = vector.load %arg12[%c2_183, %c0_184, %c0_185] : memref<4x32x8xbf16, #tpu.memory_space<vmem>>, vector<1x32x8xbf16>
    %298 = vector.shape_cast %297 : vector<1x32x8xbf16> to vector<32x8xbf16>
    %cst_186 = arith.constant dense<0.000000e+00> : vector<16x8xf32>
    %299 = tpu.matmul %200, %298, %cst_186 {dimension_numbers = #tpu.dot_dimension_numbers<[1], [0], [0], [1], [0, 0, 1, 1], [], []>} : vector<16x32xbf16>, vector<32x8xbf16>, vector<16x8xf32> -> vector<16x8xf32>
    %c2_187 = arith.constant 2 : index
    %c0_188 = arith.constant 0 : index
    %c0_189 = arith.constant 0 : index
    %300 = vector.load %arg13[%c2_187, %c0_188, %c0_189] : memref<4x1x8xf32, #tpu.memory_space<vmem>>, vector<1x1x8xf32>
    %301 = vector.shape_cast %300 : vector<1x1x8xf32> to vector<1x8xf32>
    %302 = vector.broadcast %301 : vector<1x8xf32> to vector<16x8xf32>
    %303 = arith.addf %299, %302 : vector<16x8xf32>
    %304 = vector.shape_cast %303 : vector<16x8xf32> to vector<2x8x8xf32>
    %305 = arith.truncf %304 : vector<2x8x8xf32> to vector<2x8x8xbf16>
    %c2_190 = arith.constant 2 : index
    %c0_191 = arith.constant 0 : index
    %c0_192 = arith.constant 0 : index
    %306 = vector.load %arg14[%c2_190, %c0_191, %c0_192] : memref<4x32x8xbf16, #tpu.memory_space<vmem>>, vector<1x32x8xbf16>
    %307 = vector.shape_cast %306 : vector<1x32x8xbf16> to vector<32x8xbf16>
    %cst_193 = arith.constant dense<0.000000e+00> : vector<32x8xf32>
    %308 = tpu.matmul %202, %307, %cst_193 {dimension_numbers = #tpu.dot_dimension_numbers<[1], [0], [0], [1], [0, 0, 1, 1], [], []>} : vector<32x32xbf16>, vector<32x8xbf16>, vector<32x8xf32> -> vector<32x8xf32>
    %c2_194 = arith.constant 2 : index
    %c0_195 = arith.constant 0 : index
    %c0_196 = arith.constant 0 : index
    %309 = vector.load %arg15[%c2_194, %c0_195, %c0_196] : memref<4x1x8xf32, #tpu.memory_space<vmem>>, vector<1x1x8xf32>
    %310 = vector.shape_cast %309 : vector<1x1x8xf32> to vector<1x8xf32>
    %311 = vector.broadcast %310 : vector<1x8xf32> to vector<32x8xf32>
    %312 = arith.addf %308, %311 : vector<32x8xf32>
    %313 = vector.shape_cast %312 : vector<32x8xf32> to vector<2x16x8xf32>
    %314 = arith.truncf %313 : vector<2x16x8xf32> to vector<2x16x8xbf16>
    %c2_197 = arith.constant 2 : index
    %c0_198 = arith.constant 0 : index
    %c0_199 = arith.constant 0 : index
    %315 = vector.load %arg16[%c2_197, %c0_198, %c0_199] : memref<4x32x8xbf16, #tpu.memory_space<vmem>>, vector<1x32x8xbf16>
    %316 = vector.shape_cast %315 : vector<1x32x8xbf16> to vector<32x8xbf16>
    %cst_200 = arith.constant dense<0.000000e+00> : vector<32x8xf32>
    %317 = tpu.matmul %204, %316, %cst_200 {dimension_numbers = #tpu.dot_dimension_numbers<[1], [0], [0], [1], [0, 0, 1, 1], [], []>} : vector<32x32xbf16>, vector<32x8xbf16>, vector<32x8xf32> -> vector<32x8xf32>
    %c2_201 = arith.constant 2 : index
    %c0_202 = arith.constant 0 : index
    %c0_203 = arith.constant 0 : index
    %318 = vector.load %arg17[%c2_201, %c0_202, %c0_203] : memref<4x1x8xf32, #tpu.memory_space<vmem>>, vector<1x1x8xf32>
    %319 = vector.shape_cast %318 : vector<1x1x8xf32> to vector<1x8xf32>
    %320 = vector.broadcast %319 : vector<1x8xf32> to vector<32x8xf32>
    %321 = arith.addf %317, %320 : vector<32x8xf32>
    %322 = vector.shape_cast %321 : vector<32x8xf32> to vector<2x16x8xf32>
    %323 = arith.truncf %322 : vector<2x16x8xf32> to vector<2x16x8xbf16>
    "tpu.trace_start"() <{level = 10 : i32, message = "bqd,bkd->bqk"}> : () -> ()
    %cst_204 = arith.constant dense<0.000000e+00> : vector<2x8x16xf32>
    %324 = tpu.matmul %305, %314, %cst_204 {dimension_numbers = #tpu.dot_dimension_numbers<[2], [2], [1], [1], [0, 0, 0, 1, 1, 1], [0], [0]>} : vector<2x8x8xbf16>, vector<2x16x8xbf16>, vector<2x8x16xf32> -> vector<2x8x16xf32>
    "tpu.trace_stop"() : () -> ()
    %cst_205 = arith.constant dense<0xFF800000> : vector<2x8xf32>
    %325 = vector.multi_reduction <maximumf>, %324, %cst_205 [2] : vector<2x8x16xf32> to vector<2x8xf32>
    %326 = vector.shape_cast %325 : vector<2x8xf32> to vector<2x8x1xf32>
    %327 = vector.broadcast %326 : vector<2x8x1xf32> to vector<2x8x16xf32>
    %328 = arith.subf %324, %327 : vector<2x8x16xf32>
    %329 = math.exp %328 : vector<2x8x16xf32>
    %cst_206 = arith.constant dense<0.000000e+00> : vector<2x8xf32>
    %330 = vector.multi_reduction <add>, %329, %cst_206 [2] : vector<2x8x16xf32> to vector<2x8xf32>
    %331 = vector.shape_cast %330 : vector<2x8xf32> to vector<2x8x1xf32>
    %332 = tpu.reciprocal %331 {approx = true} : vector<2x8x1xf32> -> vector<2x8x1xf32>
    %333 = vector.broadcast %332 : vector<2x8x1xf32> to vector<2x8x16xf32>
    %334 = arith.mulf %329, %333 : vector<2x8x16xf32>
    %335 = arith.truncf %334 : vector<2x8x16xf32> to vector<2x8x16xbf16>
    "tpu.trace_start"() <{level = 10 : i32, message = "bqk,bkd->bqd"}> : () -> ()
    %cst_207 = arith.constant dense<0.000000e+00> : vector<2x8x8xf32>
    %336 = tpu.matmul %335, %323, %cst_207 {dimension_numbers = #tpu.dot_dimension_numbers<[2], [1], [1], [2], [0, 0, 0, 1, 1, 2], [0], [0]>} : vector<2x8x16xbf16>, vector<2x16x8xbf16>, vector<2x8x8xf32> -> vector<2x8x8xf32>
    "tpu.trace_stop"() : () -> ()
    %337 = vector.shape_cast %336 : vector<2x8x8xf32> to vector<16x8xf32>
    %338 = arith.truncf %337 : vector<16x8xf32> to vector<16x8xbf16>
    %c2_208 = arith.constant 2 : index
    %c0_209 = arith.constant 0 : index
    %c0_210 = arith.constant 0 : index
    %339 = vector.load %arg18[%c2_208, %c0_209, %c0_210] : memref<4x8x32xbf16, #tpu.memory_space<vmem>>, vector<1x8x32xbf16>
    %340 = vector.shape_cast %339 : vector<1x8x32xbf16> to vector<8x32xbf16>
    %cst_211 = arith.constant dense<0.000000e+00> : vector<16x32xf32>
    %341 = tpu.matmul %338, %340, %cst_211 {dimension_numbers = #tpu.dot_dimension_numbers<[1], [0], [0], [1], [0, 0, 1, 1], [], []>} : vector<16x8xbf16>, vector<8x32xbf16>, vector<16x32xf32> -> vector<16x32xf32>
    %342 = arith.addf %295, %341 : vector<16x32xf32>
    %343 = arith.addf %296, %334 : vector<2x8x16xf32>
    %c3_212 = arith.constant 3 : index
    %c0_213 = arith.constant 0 : index
    %c0_214 = arith.constant 0 : index
    %344 = vector.load %arg12[%c3_212, %c0_213, %c0_214] : memref<4x32x8xbf16, #tpu.memory_space<vmem>>, vector<1x32x8xbf16>
    %345 = vector.shape_cast %344 : vector<1x32x8xbf16> to vector<32x8xbf16>
    %cst_215 = arith.constant dense<0.000000e+00> : vector<16x8xf32>
    %346 = tpu.matmul %200, %345, %cst_215 {dimension_numbers = #tpu.dot_dimension_numbers<[1], [0], [0], [1], [0, 0, 1, 1], [], []>} : vector<16x32xbf16>, vector<32x8xbf16>, vector<16x8xf32> -> vector<16x8xf32>
    %c3_216 = arith.constant 3 : index
    %c0_217 = arith.constant 0 : index
    %c0_218 = arith.constant 0 : index
    %347 = vector.load %arg13[%c3_216, %c0_217, %c0_218] : memref<4x1x8xf32, #tpu.memory_space<vmem>>, vector<1x1x8xf32>
    %348 = vector.shape_cast %347 : vector<1x1x8xf32> to vector<1x8xf32>
    %349 = vector.broadcast %348 : vector<1x8xf32> to vector<16x8xf32>
    %350 = arith.addf %346, %349 : vector<16x8xf32>
    %351 = vector.shape_cast %350 : vector<16x8xf32> to vector<2x8x8xf32>
    %352 = arith.truncf %351 : vector<2x8x8xf32> to vector<2x8x8xbf16>
    %c3_219 = arith.constant 3 : index
    %c0_220 = arith.constant 0 : index
    %c0_221 = arith.constant 0 : index
    %353 = vector.load %arg14[%c3_219, %c0_220, %c0_221] : memref<4x32x8xbf16, #tpu.memory_space<vmem>>, vector<1x32x8xbf16>
    %354 = vector.shape_cast %353 : vector<1x32x8xbf16> to vector<32x8xbf16>
    %cst_222 = arith.constant dense<0.000000e+00> : vector<32x8xf32>
    %355 = tpu.matmul %202, %354, %cst_222 {dimension_numbers = #tpu.dot_dimension_numbers<[1], [0], [0], [1], [0, 0, 1, 1], [], []>} : vector<32x32xbf16>, vector<32x8xbf16>, vector<32x8xf32> -> vector<32x8xf32>
    %c3_223 = arith.constant 3 : index
    %c0_224 = arith.constant 0 : index
    %c0_225 = arith.constant 0 : index
    %356 = vector.load %arg15[%c3_223, %c0_224, %c0_225] : memref<4x1x8xf32, #tpu.memory_space<vmem>>, vector<1x1x8xf32>
    %357 = vector.shape_cast %356 : vector<1x1x8xf32> to vector<1x8xf32>
    %358 = vector.broadcast %357 : vector<1x8xf32> to vector<32x8xf32>
    %359 = arith.addf %355, %358 : vector<32x8xf32>
    %360 = vector.shape_cast %359 : vector<32x8xf32> to vector<2x16x8xf32>
    %361 = arith.truncf %360 : vector<2x16x8xf32> to vector<2x16x8xbf16>
    %c3_226 = arith.constant 3 : index
    %c0_227 = arith.constant 0 : index
    %c0_228 = arith.constant 0 : index
    %362 = vector.load %arg16[%c3_226, %c0_227, %c0_228] : memref<4x32x8xbf16, #tpu.memory_space<vmem>>, vector<1x32x8xbf16>
    %363 = vector.shape_cast %362 : vector<1x32x8xbf16> to vector<32x8xbf16>
    %cst_229 = arith.constant dense<0.000000e+00> : vector<32x8xf32>
    %364 = tpu.matmul %204, %363, %cst_229 {dimension_numbers = #tpu.dot_dimension_numbers<[1], [0], [0], [1], [0, 0, 1, 1], [], []>} : vector<32x32xbf16>, vector<32x8xbf16>, vector<32x8xf32> -> vector<32x8xf32>
    %c3_230 = arith.constant 3 : index
    %c0_231 = arith.constant 0 : index
    %c0_232 = arith.constant 0 : index
    %365 = vector.load %arg17[%c3_230, %c0_231, %c0_232] : memref<4x1x8xf32, #tpu.memory_space<vmem>>, vector<1x1x8xf32>
    %366 = vector.shape_cast %365 : vector<1x1x8xf32> to vector<1x8xf32>
    %367 = vector.broadcast %366 : vector<1x8xf32> to vector<32x8xf32>
    %368 = arith.addf %364, %367 : vector<32x8xf32>
    %369 = vector.shape_cast %368 : vector<32x8xf32> to vector<2x16x8xf32>
    %370 = arith.truncf %369 : vector<2x16x8xf32> to vector<2x16x8xbf16>
    "tpu.trace_start"() <{level = 10 : i32, message = "bqd,bkd->bqk"}> : () -> ()
    %cst_233 = arith.constant dense<0.000000e+00> : vector<2x8x16xf32>
    %371 = tpu.matmul %352, %361, %cst_233 {dimension_numbers = #tpu.dot_dimension_numbers<[2], [2], [1], [1], [0, 0, 0, 1, 1, 1], [0], [0]>} : vector<2x8x8xbf16>, vector<2x16x8xbf16>, vector<2x8x16xf32> -> vector<2x8x16xf32>
    "tpu.trace_stop"() : () -> ()
    %cst_234 = arith.constant dense<0xFF800000> : vector<2x8xf32>
    %372 = vector.multi_reduction <maximumf>, %371, %cst_234 [2] : vector<2x8x16xf32> to vector<2x8xf32>
    %373 = vector.shape_cast %372 : vector<2x8xf32> to vector<2x8x1xf32>
    %374 = vector.broadcast %373 : vector<2x8x1xf32> to vector<2x8x16xf32>
    %375 = arith.subf %371, %374 : vector<2x8x16xf32>
    %376 = math.exp %375 : vector<2x8x16xf32>
    %cst_235 = arith.constant dense<0.000000e+00> : vector<2x8xf32>
    %377 = vector.multi_reduction <add>, %376, %cst_235 [2] : vector<2x8x16xf32> to vector<2x8xf32>
    %378 = vector.shape_cast %377 : vector<2x8xf32> to vector<2x8x1xf32>
    %379 = tpu.reciprocal %378 {approx = true} : vector<2x8x1xf32> -> vector<2x8x1xf32>
    %380 = vector.broadcast %379 : vector<2x8x1xf32> to vector<2x8x16xf32>
    %381 = arith.mulf %376, %380 : vector<2x8x16xf32>
    %382 = arith.truncf %381 : vector<2x8x16xf32> to vector<2x8x16xbf16>
    "tpu.trace_start"() <{level = 10 : i32, message = "bqk,bkd->bqd"}> : () -> ()
    %cst_236 = arith.constant dense<0.000000e+00> : vector<2x8x8xf32>
    %383 = tpu.matmul %382, %370, %cst_236 {dimension_numbers = #tpu.dot_dimension_numbers<[2], [1], [1], [2], [0, 0, 0, 1, 1, 2], [0], [0]>} : vector<2x8x16xbf16>, vector<2x16x8xbf16>, vector<2x8x8xf32> -> vector<2x8x8xf32>
    "tpu.trace_stop"() : () -> ()
    %384 = vector.shape_cast %383 : vector<2x8x8xf32> to vector<16x8xf32>
    %385 = arith.truncf %384 : vector<16x8xf32> to vector<16x8xbf16>
    %c3_237 = arith.constant 3 : index
    %c0_238 = arith.constant 0 : index
    %c0_239 = arith.constant 0 : index
    %386 = vector.load %arg18[%c3_237, %c0_238, %c0_239] : memref<4x8x32xbf16, #tpu.memory_space<vmem>>, vector<1x8x32xbf16>
    %387 = vector.shape_cast %386 : vector<1x8x32xbf16> to vector<8x32xbf16>
    %cst_240 = arith.constant dense<0.000000e+00> : vector<16x32xf32>
    %388 = tpu.matmul %385, %387, %cst_240 {dimension_numbers = #tpu.dot_dimension_numbers<[1], [0], [0], [1], [0, 0, 1, 1], [], []>} : vector<16x8xbf16>, vector<8x32xbf16>, vector<16x32xf32> -> vector<16x32xf32>
    %389 = arith.addf %342, %388 : vector<16x32xf32>
    %390 = arith.addf %343, %381 : vector<2x8x16xf32>
    %c0_241 = arith.constant 0 : index
    %c0_242 = arith.constant 0 : index
    %391 = vector.load %arg19[%c0_241, %c0_242] : memref<1x32xf32, #tpu.memory_space<vmem>>, vector<1x32xf32>
    %392 = vector.broadcast %391 : vector<1x32xf32> to vector<16x32xf32>
    %393 = arith.addf %389, %392 : vector<16x32xf32>
    %394 = vector.shape_cast %393 : vector<16x32xf32> to vector<2x8x32xf32>
    %395 = arith.addf %196, %394 : vector<2x8x32xf32>
    %cst_243 = arith.constant 2.500000e-01 : f32
    %396 = vector.broadcast %cst_243 : f32 to vector<2x8x16xf32>
    %397 = arith.mulf %390, %396 : vector<2x8x16xf32>
    %c0_244 = arith.constant 0 : index
    %c0_245 = arith.constant 0 : index
    %c0_246 = arith.constant 0 : index
    %398 = vector.load %arg25[%c0_244, %c0_245, %c0_246] : memref<2x8x16xf32, #tpu.memory_space<vmem>>, vector<2x8x16xf32>
    tpu.vector_store %arg25[%c0_244, %c0_245, %c0_246], %397 {strides = array<i32>} : memref<2x8x16xf32, #tpu.memory_space<vmem>>, vector<2x8x16xf32>,
    %399 = vector.shape_cast %395 : vector<2x8x32xf32> to vector<16x32xf32>
    %400 = arith.truncf %399 : vector<16x32xf32> to vector<16x32xbf16>
    %c0_247 = arith.constant 0 : index
    %c0_248 = arith.constant 0 : index
    %401 = vector.load %arg20[%c0_247, %c0_248] : memref<32x64xbf16, #tpu.memory_space<vmem>>, vector<32x64xbf16>
    %cst_249 = arith.constant dense<0.000000e+00> : vector<16x64xf32>
    %402 = tpu.matmul %400, %401, %cst_249 {dimension_numbers = #tpu.dot_dimension_numbers<[1], [0], [0], [1], [0, 0, 1, 1], [], []>} : vector<16x32xbf16>, vector<32x64xbf16>, vector<16x64xf32> -> vector<16x64xf32>
    %c0_250 = arith.constant 0 : index
    %c0_251 = arith.constant 0 : index
    %403 = vector.load %arg21[%c0_250, %c0_251] : memref<1x64xf32, #tpu.memory_space<vmem>>, vector<1x64xf32>
    %404 = vector.broadcast %403 : vector<1x64xf32> to vector<16x64xf32>
    %405 = arith.addf %402, %404 : vector<16x64xf32>
    %cst_252 = arith.constant 0.000000e+00 : f32
    %406 = vector.broadcast %cst_252 : f32 to vector<16x64xf32>
    %407 = arith.maximumf %405, %406 : vector<16x64xf32>
    %408 = arith.truncf %407 : vector<16x64xf32> to vector<16x64xbf16>
    %c0_253 = arith.constant 0 : index
    %c0_254 = arith.constant 0 : index
    %409 = vector.load %arg22[%c0_253, %c0_254] : memref<64x32xbf16, #tpu.memory_space<vmem>>, vector<64x32xbf16>
    %cst_255 = arith.constant dense<0.000000e+00> : vector<16x32xf32>
    %410 = tpu.matmul %408, %409, %cst_255 {dimension_numbers = #tpu.dot_dimension_numbers<[1], [0], [0], [1], [0, 0, 1, 1], [], []>} : vector<16x64xbf16>, vector<64x32xbf16>, vector<16x32xf32> -> vector<16x32xf32>
    %c0_256 = arith.constant 0 : index
    %c0_257 = arith.constant 0 : index
    %411 = vector.load %arg23[%c0_256, %c0_257] : memref<1x32xf32, #tpu.memory_space<vmem>>, vector<1x32xf32>
    %412 = vector.broadcast %411 : vector<1x32xf32> to vector<16x32xf32>
    %413 = arith.addf %410, %412 : vector<16x32xf32>
    %414 = arith.addf %399, %413 : vector<16x32xf32>
    %c0_258 = arith.constant 0 : index
    %c0_259 = arith.constant 0 : index
    %415 = vector.load %arg24[%c0_258, %c0_259] : memref<16x32xf32, #tpu.memory_space<vmem>>, vector<16x32xf32>
    tpu.vector_store %arg24[%c0_258, %c0_259], %414 {strides = array<i32>} : memref<16x32xf32, #tpu.memory_space<vmem>>, vector<16x32xf32>,
    return
  }
}

</mosaic_0001>

<llo_original>
// kernel: decoder_layer_forward.1
$region0: #{decoder_layer_forward.1}
  #allocation0 [shape = 'u32[]', space=smem, size = 0x4, offset = 0x4, fixed_abs, tag = 'smem constant byte address 0x4 - core index']
  #allocation1 [shape = 'u32[72,128]{1,0:T(1,128)}', space=vmem, size = 0x9000, scoped, tag = 'internal scratch']
  %s0 = inlined_call_operand.vmem [shape: f32[2,8,32], index: 0, kind: input, shape index: {}]
  %s1 = inlined_call_operand.vmem [shape: f32[2,8,32], index: 1, kind: input, shape index: {}]
  %s2 = inlined_call_operand.vmem [shape: f32[2,16,32], index: 2, kind: input, shape index: {}]
  %s3 = inlined_call_operand.vmem [shape: f32[2,16,32], index: 3, kind: input, shape index: {}]
  %s4 = inlined_call_operand.vmem [shape: bf16[4,32,8], index: 4, kind: input, shape index: {}]
  %s5 = inlined_call_operand.vmem [shape: f32[4,1,8], index: 5, kind: input, shape index: {}]
  %s6 = inlined_call_operand.vmem [shape: bf16[4,32,8], index: 6, kind: input, shape index: {}]
  %s7 = inlined_call_operand.vmem [shape: f32[4,1,8], index: 7, kind: input, shape index: {}]
  %s8 = inlined_call_operand.vmem [shape: bf16[4,32,8], index: 8, kind: input, shape index: {}]
  %s9 = inlined_call_operand.vmem [shape: f32[4,1,8], index: 9, kind: input, shape index: {}]
  %s10 = inlined_call_operand.vmem [shape: bf16[4,8,32], index: 10, kind: input, shape index: {}]
  %s11 = inlined_call_operand.vmem [shape: f32[1,32], index: 11, kind: input, shape index: {}]
  %s12 = inlined_call_operand.vmem [shape: bf16[4,32,8], index: 12, kind: input, shape index: {}]
  %s13 = inlined_call_operand.vmem [shape: f32[4,1,8], index: 13, kind: input, shape index: {}]
  %s14 = inlined_call_operand.vmem [shape: bf16[4,32,8], index: 14, kind: input, shape index: {}]
  %s15 = inlined_call_operand.vmem [shape: f32[4,1,8], index: 15, kind: input, shape index: {}]
  %s16 = inlined_call_operand.vmem [shape: bf16[4,32,8], index: 16, kind: input, shape index: {}]
  %s17 = inlined_call_operand.vmem [shape: f32[4,1,8], index: 17, kind: input, shape index: {}]
  %s18 = inlined_call_operand.vmem [shape: bf16[4,8,32], index: 18, kind: input, shape index: {}]
  %s19 = inlined_call_operand.vmem [shape: f32[1,32], index: 19, kind: input, shape index: {}]
  %s20 = inlined_call_operand.vmem [shape: bf16[32,64], index: 20, kind: input, shape index: {}]
  %s21 = inlined_call_operand.vmem [shape: f32[1,64], index: 21, kind: input, shape index: {}]
  %s22 = inlined_call_operand.vmem [shape: bf16[64,32], index: 22, kind: input, shape index: {}]
  %s23 = inlined_call_operand.vmem [shape: f32[1,32], index: 23, kind: input, shape index: {}]
  %s24 = inlined_call_operand.vmem [shape: f32[16,32], index: 24, kind: output, shape index: {0}]
  %s25 = inlined_call_operand.hbm [shape: f32[2,8,16], index: 25, kind: output, shape index: {1}]
  %26 = xla_tuple %s24, %s25
  %s27 = sld [smem:[#allocation0]]
  $region114: #{decoder_layer_forward.1} parent=0
    _
  %s29 = ssub.s32 1, %s27
  %s30 = scalar_select 0, %s29, %s27
  $region1: #{decoder_layer_forward.1} parent=0
    #allocation2 [shape = 'u8[8192]{0}', space=vmem, size = 0x2000, scoped, tag = 'output window, operand 1, single buffered']
    #allocation3 [shape = 's32[1]{0}', space=sflag, size = 0x4, scoped, tag = 'scoped memory for decoder_layer_forward.1']
    %31 = vsyncpa [#allocation3], 0
    // Predicated region
    $region2: #{decoder_layer_forward.1} parent=1 // pred_check
      _
    $region3: #{decoder_layer_forward.1} parent=1 // pred_check_branch
      %33 = sbr.rel (0) target = $region5
    $region4: #{decoder_layer_forward.1} parent=1 // pred_region
      _
    $region5: #{decoder_layer_forward.1} parent=1 // pred_fallthru
      _
    // Predicated region
    $region6: #{decoder_layer_forward.1} parent=1 // pred_check
      _
    $region7: #{decoder_layer_forward.1} parent=1 // pred_check_branch
      %35 = sbr.rel (0) target = $region9
    $region8: #{decoder_layer_forward.1} parent=1 // pred_region
      _
    $region9: #{decoder_layer_forward.1} parent=1 // pred_fallthru
      _
    // Predicated region
    $region10: #{decoder_layer_forward.1} parent=1 // pred_check
      _
    $region11: #{decoder_layer_forward.1} parent=1 // pred_check_branch
      %37 = sbr.rel (0) target = $region13
    $region12: #{decoder_layer_forward.1} parent=1 // pred_region
      _
    $region13: #{decoder_layer_forward.1} parent=1 // pred_fallthru
      _
    // Predicated region
    $region14: #{decoder_layer_forward.1} parent=1 // pred_check
      _
    $region15: #{decoder_layer_forward.1} parent=1 // pred_check_branch
      %39 = sbr.rel (0) target = $region17
    $region16: #{decoder_layer_forward.1} parent=1 // pred_region
      _
    $region17: #{decoder_layer_forward.1} parent=1 // pred_fallthru
      _
    // Predicated region
    $region18: #{decoder_layer_forward.1} parent=1 // pred_check
      _
    $region19: #{decoder_layer_forward.1} parent=1 // pred_check_branch
      %41 = sbr.rel (0) target = $region21
    $region20: #{decoder_layer_forward.1} parent=1 // pred_region
      _
    $region21: #{decoder_layer_forward.1} parent=1 // pred_fallthru
      _
    // Predicated region
    $region22: #{decoder_layer_forward.1} parent=1 // pred_check
      _
    $region23: #{decoder_layer_forward.1} parent=1 // pred_check_branch
      %43 = sbr.rel (0) target = $region25
    $region24: #{decoder_layer_forward.1} parent=1 // pred_region
      _
    $region25: #{decoder_layer_forward.1} parent=1 // pred_fallthru
      _
    // Predicated region
    $region26: #{decoder_layer_forward.1} parent=1 // pred_check
      _
    $region27: #{decoder_layer_forward.1} parent=1 // pred_check_branch
      %45 = sbr.rel (0) target = $region29
    $region28: #{decoder_layer_forward.1} parent=1 // pred_region
      _
    $region29: #{decoder_layer_forward.1} parent=1 // pred_fallthru
      _
    // Predicated region
    $region30: #{decoder_layer_forward.1} parent=1 // pred_check
      _
    $region31: #{decoder_layer_forward.1} parent=1 // pred_check_branch
      %47 = sbr.rel (0) target = $region33
    $region32: #{decoder_layer_forward.1} parent=1 // pred_region
      _
    $region33: #{decoder_layer_forward.1} parent=1 // pred_fallthru
      _
    // Predicated region
    $region34: #{decoder_layer_forward.1} parent=1 // pred_check
      _
    $region35: #{decoder_layer_forward.1} parent=1 // pred_check_branch
      %49 = sbr.rel (0) target = $region37
    $region36: #{decoder_layer_forward.1} parent=1 // pred_region
      _
    $region37: #{decoder_layer_forward.1} parent=1 // pred_fallthru
      _
    // Predicated region
    $region38: #{decoder_layer_forward.1} parent=1 // pred_check
      _
    $region39: #{decoder_layer_forward.1} parent=1 // pred_check_branch
      %51 = sbr.rel (0) target = $region41
    $region40: #{decoder_layer_forward.1} parent=1 // pred_region
      _
    $region41: #{decoder_layer_forward.1} parent=1 // pred_fallthru
      _
    // Predicated region
    $region42: #{decoder_layer_forward.1} parent=1 // pred_check
      _
    $region43: #{decoder_layer_forward.1} parent=1 // pred_check_branch
      %53 = sbr.rel (0) target = $region45
    $region44: #{decoder_layer_forward.1} parent=1 // pred_region
      _
    $region45: #{decoder_layer_forward.1} parent=1 // pred_fallthru
      _
    // Predicated region
    $region46: #{decoder_layer_forward.1} parent=1 // pred_check
      _
    $region47: #{decoder_layer_forward.1} parent=1 // pred_check_branch
      %55 = sbr.rel (0) target = $region49
    $region48: #{decoder_layer_forward.1} parent=1 // pred_region
      _
    $region49: #{decoder_layer_forward.1} parent=1 // pred_fallthru
      _
    // Predicated region
    $region50: #{decoder_layer_forward.1} parent=1 // pred_check
      _
    $region51: #{decoder_layer_forward.1} parent=1 // pred_check_branch
      %57 = sbr.rel (0) target = $region53
    $region52: #{decoder_layer_forward.1} parent=1 // pred_region
      _
    $region53: #{decoder_layer_forward.1} parent=1 // pred_fallthru
      _
    // Predicated region
    $region54: #{decoder_layer_forward.1} parent=1 // pred_check
      _
    $region55: #{decoder_layer_forward.1} parent=1 // pred_check_branch
      %59 = sbr.rel (0) target = $region57
    $region56: #{decoder_layer_forward.1} parent=1 // pred_region
      _
    $region57: #{decoder_layer_forward.1} parent=1 // pred_fallthru
      _
    // Predicated region
    $region58: #{decoder_layer_forward.1} parent=1 // pred_check
      _
    $region59: #{decoder_layer_forward.1} parent=1 // pred_check_branch
      %61 = sbr.rel (0) target = $region61
    $region60: #{decoder_layer_forward.1} parent=1 // pred_region
      _
    $region61: #{decoder_layer_forward.1} parent=1 // pred_fallthru
      _
    // Predicated region
    $region62: #{decoder_layer_forward.1} parent=1 // pred_check
      _
    $region63: #{decoder_layer_forward.1} parent=1 // pred_check_branch
      %63 = sbr.rel (0) target = $region65
    $region64: #{decoder_layer_forward.1} parent=1 // pred_region
      _
    $region65: #{decoder_layer_forward.1} parent=1 // pred_fallthru
      _
    // Predicated region
    $region66: #{decoder_layer_forward.1} parent=1 // pred_check
      _
    $region67: #{decoder_layer_forward.1} parent=1 // pred_check_branch
      %65 = sbr.rel (0) target = $region69
    $region68: #{decoder_layer_forward.1} parent=1 // pred_region
      _
    $region69: #{decoder_layer_forward.1} parent=1 // pred_fallthru
      _
    // Predicated region
    $region70: #{decoder_layer_forward.1} parent=1 // pred_check
      _
    $region71: #{decoder_layer_forward.1} parent=1 // pred_check_branch
      %67 = sbr.rel (0) target = $region73
    $region72: #{decoder_layer_forward.1} parent=1 // pred_region
      _
    $region73: #{decoder_layer_forward.1} parent=1 // pred_fallthru
      _
    // Predicated region
    $region74: #{decoder_layer_forward.1} parent=1 // pred_check
      _
    $region75: #{decoder_layer_forward.1} parent=1 // pred_check_branch
      %69 = sbr.rel (0) target = $region77
    $region76: #{decoder_layer_forward.1} parent=1 // pred_region
      _
    $region77: #{decoder_layer_forward.1} parent=1 // pred_fallthru
      _
    // Predicated region
    $region78: #{decoder_layer_forward.1} parent=1 // pred_check
      _
    $region79: #{decoder_layer_forward.1} parent=1 // pred_check_branch
      %71 = sbr.rel (0) target = $region81
    $region80: #{decoder_layer_forward.1} parent=1 // pred_region
      _
    $region81: #{decoder_layer_forward.1} parent=1 // pred_fallthru
      _
    // Predicated region
    $region82: #{decoder_layer_forward.1} parent=1 // pred_check
      _
    $region83: #{decoder_layer_forward.1} parent=1 // pred_check_branch
      %73 = sbr.rel (0) target = $region85
    $region84: #{decoder_layer_forward.1} parent=1 // pred_region
      _
    $region85: #{decoder_layer_forward.1} parent=1 // pred_fallthru
      _
    // Predicated region
    $region86: #{decoder_layer_forward.1} parent=1 // pred_check
      _
    $region87: #{decoder_layer_forward.1} parent=1 // pred_check_branch
      %75 = sbr.rel (0) target = $region89
    $region88: #{decoder_layer_forward.1} parent=1 // pred_region
      _
    $region89: #{decoder_layer_forward.1} parent=1 // pred_fallthru
      _
    // Predicated region
    $region90: #{decoder_layer_forward.1} parent=1 // pred_check
      _
    $region91: #{decoder_layer_forward.1} parent=1 // pred_check_branch
      %77 = sbr.rel (0) target = $region93
    $region92: #{decoder_layer_forward.1} parent=1 // pred_region
      _
    $region93: #{decoder_layer_forward.1} parent=1 // pred_fallthru
      _
    // Predicated region
    $region94: #{decoder_layer_forward.1} parent=1 // pred_check
      _
    $region95: #{decoder_layer_forward.1} parent=1 // pred_check_branch
      %79 = sbr.rel (0) target = $region97
    $region96: #{decoder_layer_forward.1} parent=1 // pred_region
      _
    $region97: #{decoder_layer_forward.1} parent=1 // pred_fallthru
      _
    %v81 = vld [vmem:[%s0] sm:$0xff]
    %v82 = vld [vmem:[%s0 + $0x8] sm:$0xff]
    %v83 = vld [vmem:[%s1] sm:$0xff]
    %v84 = vld [vmem:[%s1 + $0x8] sm:$0xff]
    %v85 = vld [vmem:[%s2] sm:$0xff]
    %v86 = vld [vmem:[%s2 + $0x8] sm:$0xff]
    %v87 = vld [vmem:[%s2 + $0x10] sm:$0xff]
    %v88 = vld [vmem:[%s2 + $0x18] sm:$0xff]
    %v89 = vld [vmem:[%s3] sm:$0xff]
    %v90 = vld [vmem:[%s3 + $0x8] sm:$0xff]
    %v91 = vld [vmem:[%s3 + $0x10] sm:$0xff]
    %v92 = vld [vmem:[%s3 + $0x18] sm:$0xff]
    %v93 = vadd.f32 %v81, %v83
    %v94 = vadd.f32 %v82, %v84
    %v95 = vpack.c.bf16 %v94, %v93
    %v96 = vpack.c.bf16 %v82, %v81
    %v97 = vld [vmem:[%s4] sm:$0xf]
    %v98 = vld [vmem:[%s4 + $0x4] sm:$0xf]
    %v99 = vld [vmem:[%s4 + $0x8] sm:$0xf]
    %v100 = vld [vmem:[%s4 + $0xc] sm:$0xf]
    %v101 = vld [vmem:[%s5] sm:$0x1]
    %v103 = vperm.slane %v101, 0
    %v109 = vunpack.c.l.b16 %v97
    %v110 = vunpack.c.l.b16 %v98
    %v111 = vunpack.c.l.b16 %v99
    %v112 = vunpack.c.l.b16 %v100
    %v113 = vpack.c.b16 %v110, %v109
    %v114 = vpack.c.b16 %v112, %v111
    %vm117 = vcmask 261120
    %v119 = vsel %vm117, %v95, 0
    %121 = vmatpush.bf16.msra.mxu0 0
    %122 = vmatpush.bf16.msra.mxu0 0
    %123 = vmatpush.bf16.msra.mxu0 0
    %124 = vmatpush.bf16.msra.mxu0 0
    %125 = vmatpush.bf16.msra.mxu0 0
    %126 = vmatpush.bf16.msra.mxu0 0
    %127 = vmatpush.bf16.msra.mxu0 %v114
    %128 = vmatpush.bf16.msra.mxu0 %v113
    %129 = vmatmul.bf16.gmra.mxu0 %v119
    %v130 = vpop.f32.mrf.mxu0
    %v131 = vadd.f32 %v103, %v130
    %v132 = vpop.f32.mrf.mxu0
    %v133 = vadd.f32 %v103, %v132
    %134 = vdwg.mxu0
    %v135 = vpack.c.bf16 %v131, %v131
    %v136 = vpack.c.bf16 %v133, %v133
    %v137 = vld [vmem:[%s6] sm:$0xf]
    %v138 = vld [vmem:[%s6 + $0x4] sm:$0xf]
    %v139 = vld [vmem:[%s6 + $0x8] sm:$0xf]
    %v140 = vld [vmem:[%s6 + $0xc] sm:$0xf]
    %v141 = vld [vmem:[%s7] sm:$0x1]
    %v143 = vperm.slane %v141, 0
    %v149 = vunpack.c.l.b16 %v137
    %v150 = vunpack.c.l.b16 %v138
    %v151 = vunpack.c.l.b16 %v139
    %v152 = vunpack.c.l.b16 %v140
    %v153 = vpack.c.b16 %v150, %v149
    %v154 = vpack.c.b16 %v152, %v151
    %157 = vmatpush.bf16.msra.mxu0 0
    %158 = vmatpush.bf16.msra.mxu0 0
    %159 = vmatpush.bf16.msra.mxu0 0
    %160 = vmatpush.bf16.msra.mxu0 0
    %161 = vmatpush.bf16.msra.mxu0 0
    %162 = vmatpush.bf16.msra.mxu0 0
    %163 = vmatpush.bf16.msra.mxu0 %v154
    %164 = vmatpush.bf16.msra.mxu0 %v153
    %165 = vmatmul.bf16.gmra.mxu0 %v119
    %v166 = vpop.f32.mrf.mxu0
    %v167 = vadd.f32 %v143, %v166
    %v168 = vpop.f32.mrf.mxu0
    %v169 = vadd.f32 %v143, %v168
    %170 = vdwg.mxu0
    %v171 = vpack.c.bf16 %v167, %v167
    %v172 = vpack.c.bf16 %v169, %v169
    %v173 = vld [vmem:[%s8] sm:$0xf]
    %v174 = vld [vmem:[%s8 + $0x4] sm:$0xf]
    %v175 = vld [vmem:[%s8 + $0x8] sm:$0xf]
    %v176 = vld [vmem:[%s8 + $0xc] sm:$0xf]
    %v177 = vld [vmem:[%s9] sm:$0x1]
    %v179 = vperm.slane %v177, 0
    %v185 = vunpack.c.l.b16 %v173
    %v186 = vunpack.c.l.b16 %v174
    %v187 = vunpack.c.l.b16 %v175
    %v188 = vunpack.c.l.b16 %v176
    %v189 = vpack.c.b16 %v186, %v185
    %v190 = vpack.c.b16 %v188, %v187
    %v194 = vsel %vm117, %v96, 0
    %196 = vmatpush.bf16.msra.mxu0 0
    %197 = vmatpush.bf16.msra.mxu0 0
    %198 = vmatpush.bf16.msra.mxu0 0
    %199 = vmatpush.bf16.msra.mxu0 0
    %200 = vmatpush.bf16.msra.mxu0 0
    %201 = vmatpush.bf16.msra.mxu0 0
    %202 = vmatpush.bf16.msra.mxu0 %v190
    %203 = vmatpush.bf16.msra.mxu0 %v189
    %204 = vmatmul.bf16.gmra.mxu0 %v194
    %v205 = vpop.f32.mrf.mxu0
    %v206 = vadd.f32 %v179, %v205
    %v207 = vpop.f32.mrf.mxu0
    %v208 = vadd.f32 %v179, %v207
    %209 = vdwg.mxu0
    %v210 = vpack.c.bf16 %v206, %v206
    %v211 = vpack.c.bf16 %v208, %v208
    %vm212 = vcmask 64512
    %v214 = vsel %vm212, %v135, 0
    %v217 = vsel %vm212, %v171, 0
    %219 = vmatpush.bf16.xpose.msra.mxu0 0
    %220 = vmatpush.bf16.xpose.msra.mxu0 0
    %221 = vmatpush.bf16.xpose.msra.mxu0 0
    %222 = vmatpush.bf16.xpose.msra.mxu0 0
    %223 = vmatpush.bf16.xpose.msra.mxu0 0
    %224 = vmatpush.bf16.xpose.msra.mxu0 0
    %225 = vmatpush.bf16.xpose.msra.mxu0 0
    %226 = vmatpush.bf16.xpose.msra.mxu0 %v217
    %227 = vmatmul.bf16.gmra.mxu0 %v214
    %v228 = vpop.f32.mrf.mxu0
    %v229 = vadd.f32 0.0, %v228
    %v230 = vpop.f32.mrf.mxu0
    %231 = vdwg.mxu0
    %v233 = vsel %vm212, %v136, 0
    %v236 = vsel %vm212, %v172, 0
    %238 = vmatpush.bf16.xpose.msra.mxu0 0
    %239 = vmatpush.bf16.xpose.msra.mxu0 0
    %240 = vmatpush.bf16.xpose.msra.mxu0 0
    %241 = vmatpush.bf16.xpose.msra.mxu0 0
    %242 = vmatpush.bf16.xpose.msra.mxu0 0
    %243 = vmatpush.bf16.xpose.msra.mxu0 0
    %244 = vmatpush.bf16.xpose.msra.mxu0 0
    %245 = vmatpush.bf16.xpose.msra.mxu0 %v236
    %246 = vmatmul.bf16.gmra.mxu0 %v233
    %v247 = vpop.f32.mrf.mxu0
    %v248 = vadd.f32 0.0, %v247
    %v249 = vpop.f32.mrf.mxu0
    %250 = vdwg.mxu0
    %v251 = vsel %vm212, %v229, -inf
    %252 = vmax.xlane.f32.xlu0 %v251
    %v253 = vpop.xlane.xlu0 %252
    %v254 = vsel %vm212, %v248, -inf
    %255 = vmax.xlane.f32.xlu0 %v254
    %v256 = vpop.xlane.xlu0 %255
    %v257 = vsub.f32 %v229, %v253
    %v258 = vsub.f32 %v248, %v256
    %v259 = vmul.f32 %v257, 1.442695
    %v260 = vpow.pop %v259
    %v261 = vmul.f32 %v258, 1.442695
    %v262 = vpow.pop %v261
    %v263 = vsel %vm212, %v260, 0.0
    %264 = vadd.xlane.f32.xlu0 %v263
    %v265 = vpop.xlane.xlu0 %264
    %v266 = vsel %vm212, %v262, 0.0
    %267 = vadd.xlane.f32.xlu0 %v266
    %v268 = vpop.xlane.xlu0 %267
    %v269 = vrcp.pop %v265
    %v270 = vrcp.pop %v268
    %v271 = vmul.f32 %v260, %v269
    %v272 = vmul.f32 %v262, %v270
    %v273 = vpack.c.bf16 %v271, %v271
    %v274 = vpack.c.bf16 %v272, %v272
    %v276 = vsel %vm212, %v273, 0
    %vm278 = vcmask 1043456
    %v280 = vsel %vm278, %v210, 0
    %282 = vmatpush.bf16.msra.mxu0 0
    %283 = vmatpush.bf16.msra.mxu0 0
    %284 = vmatpush.bf16.msra.mxu0 0
    %285 = vmatpush.bf16.msra.mxu0 0
    %286 = vmatpush.bf16.msra.mxu0 0
    %287 = vmatpush.bf16.msra.mxu0 0
    %288 = vmatpush.bf16.msra.mxu0 0
    %289 = vmatpush.bf16.msra.mxu0 %v280
    %290 = vmatmul.bf16.gmra.mxu0 %v276
    %v291 = vpop.f32.mrf.mxu0
    %v292 = vadd.f32 0.0, %v291
    %v293 = vpop.f32.mrf.mxu0
    %294 = vdwg.mxu0
    %v296 = vsel %vm212, %v274, 0
    %v299 = vsel %vm278, %v211, 0
    %301 = vmatpush.bf16.msra.mxu0 0
    %302 = vmatpush.bf16.msra.mxu0 0
    %303 = vmatpush.bf16.msra.mxu0 0
    %304 = vmatpush.bf16.msra.mxu0 0
    %305 = vmatpush.bf16.msra.mxu0 0
    %306 = vmatpush.bf16.msra.mxu0 0
    %307 = vmatpush.bf16.msra.mxu0 0
    %308 = vmatpush.bf16.msra.mxu0 %v299
    %309 = vmatmul.bf16.gmra.mxu0 %v296
    %v310 = vpop.f32.mrf.mxu0
    %v311 = vadd.f32 0.0, %v310
    %v312 = vpop.f32.mrf.mxu0
    %313 = vdwg.mxu0
    %v314 = vpack.c.bf16 %v311, %v292
    %v315 = vld [vmem:[%s10] sm:$0xf]
    %s316 = scalar_lea.vmem %s4, 16
    %v317 = vld [vmem:[%s316] sm:$0xf]
    %v318 = vld [vmem:[%s316 + $0x4] sm:$0xf]
    %v319 = vld [vmem:[%s316 + $0x8] sm:$0xf]
    %v320 = vld [vmem:[%s316 + $0xc] sm:$0xf]
    %s321 = scalar_lea.vmem %s5, 1
    %v322 = vld [vmem:[%s321] sm:$0x1]
    %v324 = vperm.slane %v322, 0
    %v330 = vunpack.c.l.b16 %v317
    %v331 = vunpack.c.l.b16 %v318
    %v332 = vunpack.c.l.b16 %v319
    %v333 = vunpack.c.l.b16 %v320
    %v334 = vpack.c.b16 %v331, %v330
    %v335 = vpack.c.b16 %v333, %v332
    %338 = vmatpush.bf16.msra.mxu0 0
    %339 = vmatpush.bf16.msra.mxu0 0
    %340 = vmatpush.bf16.msra.mxu0 0
    %341 = vmatpush.bf16.msra.mxu0 0
    %342 = vmatpush.bf16.msra.mxu0 0
    %343 = vmatpush.bf16.msra.mxu0 0
    %344 = vmatpush.bf16.msra.mxu0 %v335
    %345 = vmatpush.bf16.msra.mxu0 %v334
    %346 = vmatmul.bf16.gmra.mxu0 %v119
    %v347 = vpop.f32.mrf.mxu0
    %v348 = vadd.f32 %v324, %v347
    %v349 = vpop.f32.mrf.mxu0
    %v350 = vadd.f32 %v324, %v349
    %351 = vdwg.mxu0
    %v352 = vpack.c.bf16 %v348, %v348
    %v353 = vpack.c.bf16 %v350, %v350
    %s354 = scalar_lea.vmem %s6, 16
    %v355 = vld [vmem:[%s354] sm:$0xf]
    %v356 = vld [vmem:[%s354 + $0x4] sm:$0xf]
    %v357 = vld [vmem:[%s354 + $0x8] sm:$0xf]
    %v358 = vld [vmem:[%s354 + $0xc] sm:$0xf]
    %s359 = scalar_lea.vmem %s7, 1
    %v360 = vld [vmem:[%s359] sm:$0x1]
    %v362 = vperm.slane %v360, 0
    %v368 = vunpack.c.l.b16 %v355
    %v369 = vunpack.c.l.b16 %v356
    %v370 = vunpack.c.l.b16 %v357
    %v371 = vunpack.c.l.b16 %v358
    %v372 = vpack.c.b16 %v369, %v368
    %v373 = vpack.c.b16 %v371, %v370
    %376 = vmatpush.bf16.msra.mxu0 0
    %377 = vmatpush.bf16.msra.mxu0 0
    %378 = vmatpush.bf16.msra.mxu0 0
    %379 = vmatpush.bf16.msra.mxu0 0
    %380 = vmatpush.bf16.msra.mxu0 0
    %381 = vmatpush.bf16.msra.mxu0 0
    %382 = vmatpush.bf16.msra.mxu0 %v373
    %383 = vmatpush.bf16.msra.mxu0 %v372
    %384 = vmatmul.bf16.gmra.mxu0 %v119
    %v385 = vpop.f32.mrf.mxu0
    %v386 = vadd.f32 %v362, %v385
    %v387 = vpop.f32.mrf.mxu0
    %v388 = vadd.f32 %v362, %v387
    %389 = vdwg.mxu0
    %v390 = vpack.c.bf16 %v386, %v386
    %v391 = vpack.c.bf16 %v388, %v388
    %s392 = scalar_lea.vmem %s8, 16
    %v393 = vld [vmem:[%s392] sm:$0xf]
    %v394 = vld [vmem:[%s392 + $0x4] sm:$0xf]
    %v395 = vld [vmem:[%s392 + $0x8] sm:$0xf]
    %v396 = vld [vmem:[%s392 + $0xc] sm:$0xf]
    %s397 = scalar_lea.vmem %s9, 1
    %v398 = vld [vmem:[%s397] sm:$0x1]
    %v400 = vperm.slane %v398, 0
    %v406 = vunpack.c.l.b16 %v393
    %v407 = vunpack.c.l.b16 %v394
    %v408 = vunpack.c.l.b16 %v395
    %v409 = vunpack.c.l.b16 %v396
    %v410 = vpack.c.b16 %v407, %v406
    %v411 = vpack.c.b16 %v409, %v408
    %414 = vmatpush.bf16.msra.mxu0 0
    %415 = vmatpush.bf16.msra.mxu0 0
    %416 = vmatpush.bf16.msra.mxu0 0
    %417 = vmatpush.bf16.msra.mxu0 0
    %418 = vmatpush.bf16.msra.mxu0 0
    %419 = vmatpush.bf16.msra.mxu0 0
    %420 = vmatpush.bf16.msra.mxu0 %v411
    %421 = vmatpush.bf16.msra.mxu0 %v410
    %422 = vmatmul.bf16.gmra.mxu0 %v194
    %v423 = vpop.f32.mrf.mxu0
    %v424 = vadd.f32 %v400, %v423
    %v425 = vpop.f32.mrf.mxu0
    %v426 = vadd.f32 %v400, %v425
    %427 = vdwg.mxu0
    %v428 = vpack.c.bf16 %v424, %v424
    %v429 = vpack.c.bf16 %v426, %v426
    %v431 = vsel %vm212, %v352, 0
    %v434 = vsel %vm212, %v390, 0
    %436 = vmatpush.bf16.xpose.msra.mxu0 0
    %437 = vmatpush.bf16.xpose.msra.mxu0 0
    %438 = vmatpush.bf16.xpose.msra.mxu0 0
    %439 = vmatpush.bf16.xpose.msra.mxu0 0
    %440 = vmatpush.bf16.xpose.msra.mxu0 0
    %441 = vmatpush.bf16.xpose.msra.mxu0 0
    %442 = vmatpush.bf16.xpose.msra.mxu0 0
    %443 = vmatpush.bf16.xpose.msra.mxu0 %v434
    %444 = vmatmul.bf16.gmra.mxu0 %v431
    %v445 = vpop.f32.mrf.mxu0
    %v446 = vadd.f32 0.0, %v445
    %v447 = vpop.f32.mrf.mxu0
    %448 = vdwg.mxu0
    %v450 = vsel %vm212, %v353, 0
    %v453 = vsel %vm212, %v391, 0
    %455 = vmatpush.bf16.xpose.msra.mxu0 0
    %456 = vmatpush.bf16.xpose.msra.mxu0 0
    %457 = vmatpush.bf16.xpose.msra.mxu0 0
    %458 = vmatpush.bf16.xpose.msra.mxu0 0
    %459 = vmatpush.bf16.xpose.msra.mxu0 0
    %460 = vmatpush.bf16.xpose.msra.mxu0 0
    %461 = vmatpush.bf16.xpose.msra.mxu0 0
    %462 = vmatpush.bf16.xpose.msra.mxu0 %v453
    %463 = vmatmul.bf16.gmra.mxu0 %v450
    %v464 = vpop.f32.mrf.mxu0
    %v465 = vadd.f32 0.0, %v464
    %v466 = vpop.f32.mrf.mxu0
    %467 = vdwg.mxu0
    %v468 = vsel %vm212, %v446, -inf
    %469 = vmax.xlane.f32.xlu0 %v468
    %v470 = vpop.xlane.xlu0 %469
    %v471 = vsel %vm212, %v465, -inf
    %472 = vmax.xlane.f32.xlu0 %v471
    %v473 = vpop.xlane.xlu0 %472
    %v474 = vsub.f32 %v446, %v470
    %v475 = vsub.f32 %v465, %v473
    %v476 = vmul.f32 %v474, 1.442695
    %v477 = vpow.pop %v476
    %v478 = vmul.f32 %v475, 1.442695
    %v479 = vpow.pop %v478
    %v480 = vsel %vm212, %v477, 0.0
    %481 = vadd.xlane.f32.xlu0 %v480
    %v482 = vpop.xlane.xlu0 %481
    %v483 = vsel %vm212, %v479, 0.0
    %484 = vadd.xlane.f32.xlu0 %v483
    %v485 = vpop.xlane.xlu0 %484
    %v486 = vrcp.pop %v482
    %v487 = vrcp.pop %v485
    %v488 = vmul.f32 %v477, %v486
    %v489 = vmul.f32 %v479, %v487
    %v490 = vpack.c.bf16 %v488, %v488
    %v491 = vpack.c.bf16 %v489, %v489
    %v493 = vsel %vm212, %v490, 0
    %v496 = vsel %vm278, %v428, 0
    %498 = vmatpush.bf16.msra.mxu0 0
    %499 = vmatpush.bf16.msra.mxu0 0
    %500 = vmatpush.bf16.msra.mxu0 0
    %501 = vmatpush.bf16.msra.mxu0 0
    %502 = vmatpush.bf16.msra.mxu0 0
    %503 = vmatpush.bf16.msra.mxu0 0
    %504 = vmatpush.bf16.msra.mxu0 0
    %505 = vmatpush.bf16.msra.mxu0 %v496
    %506 = vmatmul.bf16.gmra.mxu0 %v493
    %v507 = vpop.f32.mrf.mxu0
    %v508 = vadd.f32 0.0, %v507
    %v509 = vpop.f32.mrf.mxu0
    %510 = vdwg.mxu0
    %v512 = vsel %vm212, %v491, 0
    %v515 = vsel %vm278, %v429, 0
    %517 = vmatpush.bf16.msra.mxu0 0
    %518 = vmatpush.bf16.msra.mxu0 0
    %519 = vmatpush.bf16.msra.mxu0 0
    %520 = vmatpush.bf16.msra.mxu0 0
    %521 = vmatpush.bf16.msra.mxu0 0
    %522 = vmatpush.bf16.msra.mxu0 0
    %523 = vmatpush.bf16.msra.mxu0 0
    %524 = vmatpush.bf16.msra.mxu0 %v515
    %525 = vmatmul.bf16.gmra.mxu0 %v512
    %v526 = vpop.f32.mrf.mxu0
    %v527 = vadd.f32 0.0, %v526
    %v528 = vpop.f32.mrf.mxu0
    %529 = vdwg.mxu0
    %v530 = vpack.c.bf16 %v527, %v508
    %s531 = scalar_lea.vmem %s10, 4
    %v532 = vld [vmem:[%s531] sm:$0xf]
    %v534 = vsel %vm212, %v530, 0
    %v537 = vsel %vm278, %v532, 0
    %539 = vmatpush.bf16.msra.mxu0 0
    %540 = vmatpush.bf16.msra.mxu0 0
    %541 = vmatpush.bf16.msra.mxu0 0
    %542 = vmatpush.bf16.msra.mxu0 0
    %543 = vmatpush.bf16.msra.mxu0 0
    %544 = vmatpush.bf16.msra.mxu0 0
    %545 = vmatpush.bf16.msra.mxu0 0
    %546 = vmatpush.bf16.msra.mxu0 %v537
    %547 = vmatmul.bf16.gmra.mxu0 %v534
    %v548 = vpop.f32.mrf.mxu0
    %v549 = vadd.f32 0.0, %v548
    %v550 = vpop.f32.mrf.mxu0
    %v551 = vadd.f32 0.0, %v550
    %552 = vdwg.mxu0
    %v554 = vsel %vm212, %v314, 0
    %v557 = vsel %vm278, %v315, 0
    %559 = vmatpush.bf16.msra.mxu0 0
    %560 = vmatpush.bf16.msra.mxu0 0
    %561 = vmatpush.bf16.msra.mxu0 0
    %562 = vmatpush.bf16.msra.mxu0 0
    %563 = vmatpush.bf16.msra.mxu0 0
    %564 = vmatpush.bf16.msra.mxu0 0
    %565 = vmatpush.bf16.msra.mxu0 0
    %566 = vmatpush.bf16.msra.mxu0 %v557
    %567 = vmatmul.bf16.gmra.mxu0 %v554
    %v568 = vpop.f32.mrf.mxu0
    %v569 = vadd.f32 %v549, %v568
    %v570 = vpop.f32.mrf.mxu0
    %v571 = vadd.f32 %v551, %v570
    %572 = vdwg.mxu0
    %s573 = scalar_lea.vmem %s4, 32
    %v574 = vld [vmem:[%s573] sm:$0xf]
    %v575 = vld [vmem:[%s573 + $0x4] sm:$0xf]
    %v576 = vld [vmem:[%s573 + $0x8] sm:$0xf]
    %v577 = vld [vmem:[%s573 + $0xc] sm:$0xf]
    %s578 = scalar_lea.vmem %s5, 2
    %v579 = vld [vmem:[%s578] sm:$0x1]
    %v581 = vperm.slane %v579, 0
    %v587 = vunpack.c.l.b16 %v574
    %v588 = vunpack.c.l.b16 %v575
    %v589 = vunpack.c.l.b16 %v576
    %v590 = vunpack.c.l.b16 %v577
    %v591 = vpack.c.b16 %v588, %v587
    %v592 = vpack.c.b16 %v590, %v589
    %595 = vmatpush.bf16.msra.mxu0 0
    %596 = vmatpush.bf16.msra.mxu0 0
    %597 = vmatpush.bf16.msra.mxu0 0
    %598 = vmatpush.bf16.msra.mxu0 0
    %599 = vmatpush.bf16.msra.mxu0 0
    %600 = vmatpush.bf16.msra.mxu0 0
    %601 = vmatpush.bf16.msra.mxu0 %v592
    %602 = vmatpush.bf16.msra.mxu0 %v591
    %603 = vmatmul.bf16.gmra.mxu0 %v119
    %v604 = vpop.f32.mrf.mxu0
    %v605 = vadd.f32 %v581, %v604
    %v606 = vpop.f32.mrf.mxu0
    %v607 = vadd.f32 %v581, %v606
    %608 = vdwg.mxu0
    %v609 = vpack.c.bf16 %v605, %v605
    %v610 = vpack.c.bf16 %v607, %v607
    %s611 = scalar_lea.vmem %s6, 32
    %v612 = vld [vmem:[%s611] sm:$0xf]
    %v613 = vld [vmem:[%s611 + $0x4] sm:$0xf]
    %v614 = vld [vmem:[%s611 + $0x8] sm:$0xf]
    %v615 = vld [vmem:[%s611 + $0xc] sm:$0xf]
    %s616 = scalar_lea.vmem %s7, 2
    %v617 = vld [vmem:[%s616] sm:$0x1]
    %v619 = vperm.slane %v617, 0
    %v625 = vunpack.c.l.b16 %v612
    %v626 = vunpack.c.l.b16 %v613
    %v627 = vunpack.c.l.b16 %v614
    %v628 = vunpack.c.l.b16 %v615
    %v629 = vpack.c.b16 %v626, %v625
    %v630 = vpack.c.b16 %v628, %v627
    %633 = vmatpush.bf16.msra.mxu0 0
    %634 = vmatpush.bf16.msra.mxu0 0
    %635 = vmatpush.bf16.msra.mxu0 0
    %636 = vmatpush.bf16.msra.mxu0 0
    %637 = vmatpush.bf16.msra.mxu0 0
    %638 = vmatpush.bf16.msra.mxu0 0
    %639 = vmatpush.bf16.msra.mxu0 %v630
    %640 = vmatpush.bf16.msra.mxu0 %v629
    %641 = vmatmul.bf16.gmra.mxu0 %v119
    %v642 = vpop.f32.mrf.mxu0
    %v643 = vadd.f32 %v619, %v642
    %v644 = vpop.f32.mrf.mxu0
    %v645 = vadd.f32 %v619, %v644
    %646 = vdwg.mxu0
    %v647 = vpack.c.bf16 %v643, %v643
    %v648 = vpack.c.bf16 %v645, %v645
    %s649 = scalar_lea.vmem %s8, 32
    %v650 = vld [vmem:[%s649] sm:$0xf]
    %v651 = vld [vmem:[%s649 + $0x4] sm:$0xf]
    %v652 = vld [vmem:[%s649 + $0x8] sm:$0xf]
    %v653 = vld [vmem:[%s649 + $0xc] sm:$0xf]
    %s654 = scalar_lea.vmem %s9, 2
    %v655 = vld [vmem:[%s654] sm:$0x1]
    %v657 = vperm.slane %v655, 0
    %v663 = vunpack.c.l.b16 %v650
    %v664 = vunpack.c.l.b16 %v651
    %v665 = vunpack.c.l.b16 %v652
    %v666 = vunpack.c.l.b16 %v653
    %v667 = vpack.c.b16 %v664, %v663
    %v668 = vpack.c.b16 %v666, %v665
    %671 = vmatpush.bf16.msra.mxu0 0
    %672 = vmatpush.bf16.msra.mxu0 0
    %673 = vmatpush.bf16.msra.mxu0 0
    %674 = vmatpush.bf16.msra.mxu0 0
    %675 = vmatpush.bf16.msra.mxu0 0
    %676 = vmatpush.bf16.msra.mxu0 0
    %677 = vmatpush.bf16.msra.mxu0 %v668
    %678 = vmatpush.bf16.msra.mxu0 %v667
    %679 = vmatmul.bf16.gmra.mxu0 %v194
    %v680 = vpop.f32.mrf.mxu0
    %v681 = vadd.f32 %v657, %v680
    %v682 = vpop.f32.mrf.mxu0
    %v683 = vadd.f32 %v657, %v682
    %684 = vdwg.mxu0
    %v685 = vpack.c.bf16 %v681, %v681
    %v686 = vpack.c.bf16 %v683, %v683
    %v688 = vsel %vm212, %v609, 0
    %v691 = vsel %vm212, %v647, 0
    %693 = vmatpush.bf16.xpose.msra.mxu0 0
    %694 = vmatpush.bf16.xpose.msra.mxu0 0
    %695 = vmatpush.bf16.xpose.msra.mxu0 0
    %696 = vmatpush.bf16.xpose.msra.mxu0 0
    %697 = vmatpush.bf16.xpose.msra.mxu0 0
    %698 = vmatpush.bf16.xpose.msra.mxu0 0
    %699 = vmatpush.bf16.xpose.msra.mxu0 0
    %700 = vmatpush.bf16.xpose.msra.mxu0 %v691
    %701 = vmatmul.bf16.gmra.mxu0 %v688
    %v702 = vpop.f32.mrf.mxu0
    %v703 = vadd.f32 0.0, %v702
    %v704 = vpop.f32.mrf.mxu0
    %705 = vdwg.mxu0
    %v707 = vsel %vm212, %v610, 0
    %v710 = vsel %vm212, %v648, 0
    %712 = vmatpush.bf16.xpose.msra.mxu0 0
    %713 = vmatpush.bf16.xpose.msra.mxu0 0
    %714 = vmatpush.bf16.xpose.msra.mxu0 0
    %715 = vmatpush.bf16.xpose.msra.mxu0 0
    %716 = vmatpush.bf16.xpose.msra.mxu0 0
    %717 = vmatpush.bf16.xpose.msra.mxu0 0
    %718 = vmatpush.bf16.xpose.msra.mxu0 0
    %719 = vmatpush.bf16.xpose.msra.mxu0 %v710
    %720 = vmatmul.bf16.gmra.mxu0 %v707
    %v721 = vpop.f32.mrf.mxu0
    %v722 = vadd.f32 0.0, %v721
    %v723 = vpop.f32.mrf.mxu0
    %724 = vdwg.mxu0
    %v725 = vsel %vm212, %v703, -inf
    %726 = vmax.xlane.f32.xlu0 %v725
    %v727 = vpop.xlane.xlu0 %726
    %v728 = vsel %vm212, %v722, -inf
    %729 = vmax.xlane.f32.xlu0 %v728
    %v730 = vpop.xlane.xlu0 %729
    %v731 = vsub.f32 %v703, %v727
    %v732 = vsub.f32 %v722, %v730
    %v733 = vmul.f32 %v731, 1.442695
    %v734 = vpow.pop %v733
    %v735 = vmul.f32 %v732, 1.442695
    %v736 = vpow.pop %v735
    %v737 = vsel %vm212, %v734, 0.0
    %738 = vadd.xlane.f32.xlu0 %v737
    %v739 = vpop.xlane.xlu0 %738
    %v740 = vsel %vm212, %v736, 0.0
    %741 = vadd.xlane.f32.xlu0 %v740
    %v742 = vpop.xlane.xlu0 %741
    %v743 = vrcp.pop %v739
    %v744 = vrcp.pop %v742
    %v745 = vmul.f32 %v734, %v743
    %v746 = vmul.f32 %v736, %v744
    %v747 = vpack.c.bf16 %v745, %v745
    %v748 = vpack.c.bf16 %v746, %v746
    %v750 = vsel %vm212, %v747, 0
    %v753 = vsel %vm278, %v685, 0
    %755 = vmatpush.bf16.msra.mxu0 0
    %756 = vmatpush.bf16.msra.mxu0 0
    %757 = vmatpush.bf16.msra.mxu0 0
    %758 = vmatpush.bf16.msra.mxu0 0
    %759 = vmatpush.bf16.msra.mxu0 0
    %760 = vmatpush.bf16.msra.mxu0 0
    %761 = vmatpush.bf16.msra.mxu0 0
    %762 = vmatpush.bf16.msra.mxu0 %v753
    %763 = vmatmul.bf16.gmra.mxu0 %v750
    %v764 = vpop.f32.mrf.mxu0
    %v765 = vadd.f32 0.0, %v764
    %v766 = vpop.f32.mrf.mxu0
    %767 = vdwg.mxu0
    %v769 = vsel %vm212, %v748, 0
    %v772 = vsel %vm278, %v686, 0
    %774 = vmatpush.bf16.msra.mxu0 0
    %775 = vmatpush.bf16.msra.mxu0 0
    %776 = vmatpush.bf16.msra.mxu0 0
    %777 = vmatpush.bf16.msra.mxu0 0
    %778 = vmatpush.bf16.msra.mxu0 0
    %779 = vmatpush.bf16.msra.mxu0 0
    %780 = vmatpush.bf16.msra.mxu0 0
    %781 = vmatpush.bf16.msra.mxu0 %v772
    %782 = vmatmul.bf16.gmra.mxu0 %v769
    %v783 = vpop.f32.mrf.mxu0
    %v784 = vadd.f32 0.0, %v783
    %v785 = vpop.f32.mrf.mxu0
    %786 = vdwg.mxu0
    %v787 = vpack.c.bf16 %v784, %v765
    %s788 = scalar_lea.vmem %s10, 8
    %v789 = vld [vmem:[%s788] sm:$0xf]
    %v791 = vsel %vm212, %v787, 0
    %v794 = vsel %vm278, %v789, 0
    %796 = vmatpush.bf16.msra.mxu0 0
    %797 = vmatpush.bf16.msra.mxu0 0
    %798 = vmatpush.bf16.msra.mxu0 0
    %799 = vmatpush.bf16.msra.mxu0 0
    %800 = vmatpush.bf16.msra.mxu0 0
    %801 = vmatpush.bf16.msra.mxu0 0
    %802 = vmatpush.bf16.msra.mxu0 0
    %803 = vmatpush.bf16.msra.mxu0 %v794
    %804 = vmatmul.bf16.gmra.mxu0 %v791
    %v805 = vpop.f32.mrf.mxu0
    %v806 = vadd.f32 0.0, %v805
    %v807 = vpop.f32.mrf.mxu0
    %v808 = vadd.f32 0.0, %v807
    %809 = vdwg.mxu0
    %v810 = vadd.f32 %v569, %v806
    %v811 = vadd.f32 %v571, %v808
    %s812 = scalar_lea.vmem %s4, 48
    %v813 = vld [vmem:[%s812] sm:$0xf]
    %v814 = vld [vmem:[%s812 + $0x4] sm:$0xf]
    %v815 = vld [vmem:[%s812 + $0x8] sm:$0xf]
    %v816 = vld [vmem:[%s812 + $0xc] sm:$0xf]
    %s817 = scalar_lea.vmem %s5, 3
    %v818 = vld [vmem:[%s817] sm:$0x1]
    %v820 = vperm.slane %v818, 0
    %v826 = vunpack.c.l.b16 %v813
    %v827 = vunpack.c.l.b16 %v814
    %v828 = vunpack.c.l.b16 %v815
    %v829 = vunpack.c.l.b16 %v816
    %v830 = vpack.c.b16 %v827, %v826
    %v831 = vpack.c.b16 %v829, %v828
    %834 = vmatpush.bf16.msra.mxu0 0
    %835 = vmatpush.bf16.msra.mxu0 0
    %836 = vmatpush.bf16.msra.mxu0 0
    %837 = vmatpush.bf16.msra.mxu0 0
    %838 = vmatpush.bf16.msra.mxu0 0
    %839 = vmatpush.bf16.msra.mxu0 0
    %840 = vmatpush.bf16.msra.mxu0 %v831
    %841 = vmatpush.bf16.msra.mxu0 %v830
    %842 = vmatmul.bf16.gmra.mxu0 %v119
    %v843 = vpop.f32.mrf.mxu0
    %v844 = vadd.f32 %v820, %v843
    %v845 = vpop.f32.mrf.mxu0
    %v846 = vadd.f32 %v820, %v845
    %847 = vdwg.mxu0
    %v848 = vpack.c.bf16 %v844, %v844
    %v849 = vpack.c.bf16 %v846, %v846
    %s850 = scalar_lea.vmem %s6, 48
    %v851 = vld [vmem:[%s850] sm:$0xf]
    %v852 = vld [vmem:[%s850 + $0x4] sm:$0xf]
    %v853 = vld [vmem:[%s850 + $0x8] sm:$0xf]
    %v854 = vld [vmem:[%s850 + $0xc] sm:$0xf]
    %s855 = scalar_lea.vmem %s7, 3
    %v856 = vld [vmem:[%s855] sm:$0x1]
    %v858 = vperm.slane %v856, 0
    %v864 = vunpack.c.l.b16 %v851
    %v865 = vunpack.c.l.b16 %v852
    %v866 = vunpack.c.l.b16 %v853
    %v867 = vunpack.c.l.b16 %v854
    %v868 = vpack.c.b16 %v865, %v864
    %v869 = vpack.c.b16 %v867, %v866
    %872 = vmatpush.bf16.msra.mxu0 0
    %873 = vmatpush.bf16.msra.mxu0 0
    %874 = vmatpush.bf16.msra.mxu0 0
    %875 = vmatpush.bf16.msra.mxu0 0
    %876 = vmatpush.bf16.msra.mxu0 0
    %877 = vmatpush.bf16.msra.mxu0 0
    %878 = vmatpush.bf16.msra.mxu0 %v869
    %879 = vmatpush.bf16.msra.mxu0 %v868
    %880 = vmatmul.bf16.gmra.mxu0 %v119
    %v881 = vpop.f32.mrf.mxu0
    %v882 = vadd.f32 %v858, %v881
    %v883 = vpop.f32.mrf.mxu0
    %v884 = vadd.f32 %v858, %v883
    %885 = vdwg.mxu0
    %v886 = vpack.c.bf16 %v882, %v882
    %v887 = vpack.c.bf16 %v884, %v884
    %s888 = scalar_lea.vmem %s8, 48
    %v889 = vld [vmem:[%s888] sm:$0xf]
    %v890 = vld [vmem:[%s888 + $0x4] sm:$0xf]
    %v891 = vld [vmem:[%s888 + $0x8] sm:$0xf]
    %v892 = vld [vmem:[%s888 + $0xc] sm:$0xf]
    %s893 = scalar_lea.vmem %s9, 3
    %v894 = vld [vmem:[%s893] sm:$0x1]
    %v896 = vperm.slane %v894, 0
    %v902 = vunpack.c.l.b16 %v889
    %v903 = vunpack.c.l.b16 %v890
    %v904 = vunpack.c.l.b16 %v891
    %v905 = vunpack.c.l.b16 %v892
    %v906 = vpack.c.b16 %v903, %v902
    %v907 = vpack.c.b16 %v905, %v904
    %910 = vmatpush.bf16.msra.mxu0 0
    %911 = vmatpush.bf16.msra.mxu0 0
    %912 = vmatpush.bf16.msra.mxu0 0
    %913 = vmatpush.bf16.msra.mxu0 0
    %914 = vmatpush.bf16.msra.mxu0 0
    %915 = vmatpush.bf16.msra.mxu0 0
    %916 = vmatpush.bf16.msra.mxu0 %v907
    %917 = vmatpush.bf16.msra.mxu0 %v906
    %918 = vmatmul.bf16.gmra.mxu0 %v194
    %v919 = vpop.f32.mrf.mxu0
    %v920 = vadd.f32 %v896, %v919
    %v921 = vpop.f32.mrf.mxu0
    %v922 = vadd.f32 %v896, %v921
    %923 = vdwg.mxu0
    %v924 = vpack.c.bf16 %v920, %v920
    %v925 = vpack.c.bf16 %v922, %v922
    %v927 = vsel %vm212, %v848, 0
    %v930 = vsel %vm212, %v886, 0
    %932 = vmatpush.bf16.xpose.msra.mxu0 0
    %933 = vmatpush.bf16.xpose.msra.mxu0 0
    %934 = vmatpush.bf16.xpose.msra.mxu0 0
    %935 = vmatpush.bf16.xpose.msra.mxu0 0
    %936 = vmatpush.bf16.xpose.msra.mxu0 0
    %937 = vmatpush.bf16.xpose.msra.mxu0 0
    %938 = vmatpush.bf16.xpose.msra.mxu0 0
    %939 = vmatpush.bf16.xpose.msra.mxu0 %v930
    %940 = vmatmul.bf16.gmra.mxu0 %v927
    %v941 = vpop.f32.mrf.mxu0
    %v942 = vadd.f32 0.0, %v941
    %v943 = vpop.f32.mrf.mxu0
    %944 = vdwg.mxu0
    %v946 = vsel %vm212, %v849, 0
    %v949 = vsel %vm212, %v887, 0
    %951 = vmatpush.bf16.xpose.msra.mxu0 0
    %952 = vmatpush.bf16.xpose.msra.mxu0 0
    %953 = vmatpush.bf16.xpose.msra.mxu0 0
    %954 = vmatpush.bf16.xpose.msra.mxu0 0
    %955 = vmatpush.bf16.xpose.msra.mxu0 0
    %956 = vmatpush.bf16.xpose.msra.mxu0 0
    %957 = vmatpush.bf16.xpose.msra.mxu0 0
    %958 = vmatpush.bf16.xpose.msra.mxu0 %v949
    %959 = vmatmul.bf16.gmra.mxu0 %v946
    %v960 = vpop.f32.mrf.mxu0
    %v961 = vadd.f32 0.0, %v960
    %v962 = vpop.f32.mrf.mxu0
    %963 = vdwg.mxu0
    %v964 = vsel %vm212, %v942, -inf
    %965 = vmax.xlane.f32.xlu0 %v964
    %v966 = vpop.xlane.xlu0 %965
    %v967 = vsel %vm212, %v961, -inf
    %968 = vmax.xlane.f32.xlu0 %v967
    %v969 = vpop.xlane.xlu0 %968
    %v970 = vsub.f32 %v942, %v966
    %v971 = vsub.f32 %v961, %v969
    %v972 = vmul.f32 %v970, 1.442695
    %v973 = vpow.pop %v972
    %v974 = vmul.f32 %v971, 1.442695
    %v975 = vpow.pop %v974
    %v976 = vsel %vm212, %v973, 0.0
    %977 = vadd.xlane.f32.xlu0 %v976
    %v978 = vpop.xlane.xlu0 %977
    %v979 = vsel %vm212, %v975, 0.0
    %980 = vadd.xlane.f32.xlu0 %v979
    %v981 = vpop.xlane.xlu0 %980
    %v982 = vrcp.pop %v978
    %v983 = vrcp.pop %v981
    %v984 = vmul.f32 %v973, %v982
    %v985 = vmul.f32 %v975, %v983
    %v986 = vpack.c.bf16 %v984, %v984
    %v987 = vpack.c.bf16 %v985, %v985
    %v989 = vsel %vm212, %v986, 0
    %v992 = vsel %vm278, %v924, 0
    %994 = vmatpush.bf16.msra.mxu0 0
    %995 = vmatpush.bf16.msra.mxu0 0
    %996 = vmatpush.bf16.msra.mxu0 0
    %997 = vmatpush.bf16.msra.mxu0 0
    %998 = vmatpush.bf16.msra.mxu0 0
    %999 = vmatpush.bf16.msra.mxu0 0
    %1000 = vmatpush.bf16.msra.mxu0 0
    %1001 = vmatpush.bf16.msra.mxu0 %v992
    %1002 = vmatmul.bf16.gmra.mxu0 %v989
    %v1003 = vpop.f32.mrf.mxu0
    %v1004 = vadd.f32 0.0, %v1003
    %v1005 = vpop.f32.mrf.mxu0
    %1006 = vdwg.mxu0
    %v1008 = vsel %vm212, %v987, 0
    %v1011 = vsel %vm278, %v925, 0
    %1013 = vmatpush.bf16.msra.mxu0 0
    %1014 = vmatpush.bf16.msra.mxu0 0
    %1015 = vmatpush.bf16.msra.mxu0 0
    %1016 = vmatpush.bf16.msra.mxu0 0
    %1017 = vmatpush.bf16.msra.mxu0 0
    %1018 = vmatpush.bf16.msra.mxu0 0
    %1019 = vmatpush.bf16.msra.mxu0 0
    %1020 = vmatpush.bf16.msra.mxu0 %v1011
    %1021 = vmatmul.bf16.gmra.mxu0 %v1008
    %v1022 = vpop.f32.mrf.mxu0
    %v1023 = vadd.f32 0.0, %v1022
    %v1024 = vpop.f32.mrf.mxu0
    %1025 = vdwg.mxu0
    %v1026 = vpack.c.bf16 %v1023, %v1004
    %s1027 = scalar_lea.vmem %s10, 12
    %v1028 = vld [vmem:[%s1027] sm:$0xf]
    %v1030 = vsel %vm212, %v1026, 0
    %v1033 = vsel %vm278, %v1028, 0
    %1035 = vmatpush.bf16.msra.mxu0 0
    %1036 = vmatpush.bf16.msra.mxu0 0
    %1037 = vmatpush.bf16.msra.mxu0 0
    %1038 = vmatpush.bf16.msra.mxu0 0
    %1039 = vmatpush.bf16.msra.mxu0 0
    %1040 = vmatpush.bf16.msra.mxu0 0
    %1041 = vmatpush.bf16.msra.mxu0 0
    %1042 = vmatpush.bf16.msra.mxu0 %v1033
    %1043 = vmatmul.bf16.gmra.mxu0 %v1030
    %v1044 = vpop.f32.mrf.mxu0
    %v1045 = vadd.f32 0.0, %v1044
    %v1046 = vpop.f32.mrf.mxu0
    %v1047 = vadd.f32 0.0, %v1046
    %1048 = vdwg.mxu0
    %v1049 = vadd.f32 %v810, %v1045
    %v1050 = vadd.f32 %v811, %v1047
    %v1051 = vld [vmem:[%s11] sm:$0x1]
    %v1053 = vperm.slane %v1051, 0
    %v1055 = vadd.f32 %v1049, %v1053
    %v1056 = vadd.f32 %v1050, %v1053
    %v1057 = vadd.f32 %v81, %v1055
    %v1058 = vadd.f32 %v82, %v1056
    %v1059 = vadd.f32 %v1057, %v83
    %v1060 = vadd.f32 %v1058, %v84
    %v1061 = vadd.f32 %v85, %v89
    %v1062 = vadd.f32 %v86, %v90
    %v1063 = vadd.f32 %v87, %v91
    %v1064 = vadd.f32 %v88, %v92
    %v1065 = vpack.c.bf16 %v1060, %v1059
    %v1066 = vpack.c.bf16 %v1062, %v1061
    %v1067 = vpack.c.bf16 %v1064, %v1063
    %v1068 = vpack.c.bf16 %v86, %v85
    %v1069 = vpack.c.bf16 %v88, %v87
    %v1070 = vld [vmem:[%s12] sm:$0xf]
    %v1071 = vld [vmem:[%s12 + $0x4] sm:$0xf]
    %v1072 = vld [vmem:[%s12 + $0x8] sm:$0xf]
    %v1073 = vld [vmem:[%s12 + $0xc] sm:$0xf]
    %v1074 = vld [vmem:[%s13] sm:$0x1]
    %v1076 = vperm.slane %v1074, 0
    %v1082 = vunpack.c.l.b16 %v1070
    %v1083 = vunpack.c.l.b16 %v1071
    %v1084 = vunpack.c.l.b16 %v1072
    %v1085 = vunpack.c.l.b16 %v1073
    %v1086 = vpack.c.b16 %v1083, %v1082
    %v1087 = vpack.c.b16 %v1085, %v1084
    %v1091 = vsel %vm117, %v1065, 0
    %1093 = vmatpush.bf16.msra.mxu0 0
    %1094 = vmatpush.bf16.msra.mxu0 0
    %1095 = vmatpush.bf16.msra.mxu0 0
    %1096 = vmatpush.bf16.msra.mxu0 0
    %1097 = vmatpush.bf16.msra.mxu0 0
    %1098 = vmatpush.bf16.msra.mxu0 0
    %1099 = vmatpush.bf16.msra.mxu0 %v1087
    %1100 = vmatpush.bf16.msra.mxu0 %v1086
    %1101 = vmatmul.bf16.gmra.mxu0 %v1091
    %v1102 = vpop.f32.mrf.mxu0
    %v1103 = vadd.f32 %v1076, %v1102
    %v1104 = vpop.f32.mrf.mxu0
    %v1105 = vadd.f32 %v1076, %v1104
    %1106 = vdwg.mxu0
    %v1107 = vpack.c.bf16 %v1103, %v1103
    %v1108 = vpack.c.bf16 %v1105, %v1105
    %v1109 = vld [vmem:[%s14] sm:$0xf]
    %v1110 = vld [vmem:[%s14 + $0x4] sm:$0xf]
    %v1111 = vld [vmem:[%s14 + $0x8] sm:$0xf]
    %v1112 = vld [vmem:[%s14 + $0xc] sm:$0xf]
    %v1113 = vld [vmem:[%s15] sm:$0x1]
    %v1115 = vperm.slane %v1113, 0
    %v1121 = vunpack.c.l.b16 %v1109
    %v1122 = vunpack.c.l.b16 %v1110
    %v1123 = vunpack.c.l.b16 %v1111
    %v1124 = vunpack.c.l.b16 %v1112
    %v1125 = vpack.c.b16 %v1122, %v1121
    %v1126 = vpack.c.b16 %v1124, %v1123
    %v1130 = vsel %vm117, %v1066, 0
    %v1133 = vsel %vm117, %v1067, 0
    %1135 = vmatpush.bf16.msra.mxu0 0
    %1136 = vmatpush.bf16.msra.mxu0 0
    %1137 = vmatpush.bf16.msra.mxu0 0
    %1138 = vmatpush.bf16.msra.mxu0 0
    %1139 = vmatpush.bf16.msra.mxu0 0
    %1140 = vmatpush.bf16.msra.mxu0 0
    %1141 = vmatpush.bf16.msra.mxu0 %v1126
    %1142 = vmatpush.bf16.msra.mxu0 %v1125
    %1143 = vmatmul.bf16.gmra.mxu0 %v1130
    %v1144 = vpop.f32.mrf.mxu0
    %v1145 = vadd.f32 %v1115, %v1144
    %v1146 = vpop.f32.mrf.mxu0
    %v1147 = vadd.f32 %v1115, %v1146
    %1148 = vmatmul.bf16.gmra.mxu0 %v1133
    %v1149 = vpop.f32.mrf.mxu0
    %v1150 = vadd.f32 %v1115, %v1149
    %v1151 = vpop.f32.mrf.mxu0
    %v1152 = vadd.f32 %v1115, %v1151
    %1153 = vdwg.mxu0
    %v1154 = vpack.c.bf16 %v1145, %v1145
    %v1155 = vpack.c.bf16 %v1147, %v1147
    %v1156 = vpack.c.bf16 %v1150, %v1150
    %v1157 = vpack.c.bf16 %v1152, %v1152
    %v1158 = vld [vmem:[%s16] sm:$0xf]
    %v1159 = vld [vmem:[%s16 + $0x4] sm:$0xf]
    %v1160 = vld [vmem:[%s16 + $0x8] sm:$0xf]
    %v1161 = vld [vmem:[%s16 + $0xc] sm:$0xf]
    %v1162 = vld [vmem:[%s17] sm:$0x1]
    %v1164 = vperm.slane %v1162, 0
    %v1170 = vunpack.c.l.b16 %v1158
    %v1171 = vunpack.c.l.b16 %v1159
    %v1172 = vunpack.c.l.b16 %v1160
    %v1173 = vunpack.c.l.b16 %v1161
    %v1174 = vpack.c.b16 %v1171, %v1170
    %v1175 = vpack.c.b16 %v1173, %v1172
    %v1179 = vsel %vm117, %v1068, 0
    %v1182 = vsel %vm117, %v1069, 0
    %1184 = vmatpush.bf16.msra.mxu0 0
    %1185 = vmatpush.bf16.msra.mxu0 0
    %1186 = vmatpush.bf16.msra.mxu0 0
    %1187 = vmatpush.bf16.msra.mxu0 0
    %1188 = vmatpush.bf16.msra.mxu0 0
    %1189 = vmatpush.bf16.msra.mxu0 0
    %1190 = vmatpush.bf16.msra.mxu0 %v1175
    %1191 = vmatpush.bf16.msra.mxu0 %v1174
    %1192 = vmatmul.bf16.gmra.mxu0 %v1179
    %v1193 = vpop.f32.mrf.mxu0
    %v1194 = vadd.f32 %v1164, %v1193
    %v1195 = vpop.f32.mrf.mxu0
    %v1196 = vadd.f32 %v1164, %v1195
    %1197 = vmatmul.bf16.gmra.mxu0 %v1182
    %v1198 = vpop.f32.mrf.mxu0
    %v1199 = vadd.f32 %v1164, %v1198
    %v1200 = vpop.f32.mrf.mxu0
    %v1201 = vadd.f32 %v1164, %v1200
    %1202 = vdwg.mxu0
    %v1203 = vpack.c.bf16 %v1194, %v1194
    %v1204 = vpack.c.bf16 %v1196, %v1196
    %v1205 = vpack.c.bf16 %v1199, %v1199
    %v1206 = vpack.c.bf16 %v1201, %v1201
    %v1209 = vunpack.c.l.b16 %v1154
    %v1210 = vunpack.c.l.b16 %v1155
    %v1211 = vpack.c.b16 %v1210, %v1209
    %v1213 = vsel %vm212, %v1107, 0
    %v1216 = vsel %vm212, %v1211, 0
    %1218 = vmatpush.bf16.xpose.msra.mxu0 0
    %1219 = vmatpush.bf16.xpose.msra.mxu0 0
    %1220 = vmatpush.bf16.xpose.msra.mxu0 0
    %1221 = vmatpush.bf16.xpose.msra.mxu0 0
    %1222 = vmatpush.bf16.xpose.msra.mxu0 0
    %1223 = vmatpush.bf16.xpose.msra.mxu0 0
    %1224 = vmatpush.bf16.xpose.msra.mxu0 0
    %1225 = vmatpush.bf16.xpose.msra.mxu0 %v1216
    %1226 = vmatmul.bf16.gmra.mxu0 %v1213
    %v1227 = vpop.f32.mrf.mxu0
    %v1228 = vadd.f32 0.0, %v1227
    %v1229 = vpop.f32.mrf.mxu0
    %1230 = vdwg.mxu0
    %v1233 = vunpack.c.l.b16 %v1156
    %v1234 = vunpack.c.l.b16 %v1157
    %v1235 = vpack.c.b16 %v1234, %v1233
    %v1237 = vsel %vm212, %v1108, 0
    %v1240 = vsel %vm212, %v1235, 0
    %1242 = vmatpush.bf16.xpose.msra.mxu0 0
    %1243 = vmatpush.bf16.xpose.msra.mxu0 0
    %1244 = vmatpush.bf16.xpose.msra.mxu0 0
    %1245 = vmatpush.bf16.xpose.msra.mxu0 0
    %1246 = vmatpush.bf16.xpose.msra.mxu0 0
    %1247 = vmatpush.bf16.xpose.msra.mxu0 0
    %1248 = vmatpush.bf16.xpose.msra.mxu0 0
    %1249 = vmatpush.bf16.xpose.msra.mxu0 %v1240
    %1250 = vmatmul.bf16.gmra.mxu0 %v1237
    %v1251 = vpop.f32.mrf.mxu0
    %v1252 = vadd.f32 0.0, %v1251
    %v1253 = vpop.f32.mrf.mxu0
    %1254 = vdwg.mxu0
    %vm1255 = vcmask 130048
    %v1256 = vsel %vm1255, %v1228, -inf
    %1257 = vmax.xlane.f32.xlu0 %v1256
    %v1258 = vpop.xlane.xlu0 %1257
    %v1259 = vsel %vm1255, %v1252, -inf
    %1260 = vmax.xlane.f32.xlu0 %v1259
    %v1261 = vpop.xlane.xlu0 %1260
    %v1262 = vsub.f32 %v1228, %v1258
    %v1263 = vsub.f32 %v1252, %v1261
    %v1264 = vmul.f32 %v1262, 1.442695
    %v1265 = vpow.pop %v1264
    %v1266 = vmul.f32 %v1263, 1.442695
    %v1267 = vpow.pop %v1266
    %v1268 = vsel %vm1255, %v1265, 0.0
    %1269 = vadd.xlane.f32.xlu0 %v1268
    %v1270 = vpop.xlane.xlu0 %1269
    %v1271 = vsel %vm1255, %v1267, 0.0
    %1272 = vadd.xlane.f32.xlu0 %v1271
    %v1273 = vpop.xlane.xlu0 %1272
    %v1274 = vrcp.pop %v1270
    %v1275 = vrcp.pop %v1273
    %v1276 = vmul.f32 %v1265, %v1274
    %v1277 = vmul.f32 %v1267, %v1275
    %v1278 = vpack.c.bf16 %v1276, %v1276
    %v1279 = vpack.c.bf16 %v1277, %v1277
    %v1282 = vunpack.c.l.b16 %v1203
    %v1283 = vunpack.c.l.b16 %v1204
    %v1284 = vpack.c.b16 %v1283, %v1282
    %v1287 = vsel %vm1255, %v1278, 0
    %1289 = vmatpush.bf16.msra.mxu0 0
    %1290 = vmatpush.bf16.msra.mxu0 0
    %1291 = vmatpush.bf16.msra.mxu0 0
    %1292 = vmatpush.bf16.msra.mxu0 0
    %1293 = vmatpush.bf16.msra.mxu0 0
    %1294 = vmatpush.bf16.msra.mxu0 0
    %1295 = vmatpush.bf16.msra.mxu0 0
    %1296 = vmatpush.bf16.msra.mxu0 %v1284
    %1297 = vmatmul.bf16.gmra.mxu0 %v1287
    %v1298 = vpop.f32.mrf.mxu0
    %v1299 = vadd.f32 0.0, %v1298
    %v1300 = vpop.f32.mrf.mxu0
    %1301 = vdwg.mxu0
    %v1304 = vunpack.c.l.b16 %v1205
    %v1305 = vunpack.c.l.b16 %v1206
    %v1306 = vpack.c.b16 %v1305, %v1304
    %v1309 = vsel %vm1255, %v1279, 0
    %1311 = vmatpush.bf16.msra.mxu0 0
    %1312 = vmatpush.bf16.msra.mxu0 0
    %1313 = vmatpush.bf16.msra.mxu0 0
    %1314 = vmatpush.bf16.msra.mxu0 0
    %1315 = vmatpush.bf16.msra.mxu0 0
    %1316 = vmatpush.bf16.msra.mxu0 0
    %1317 = vmatpush.bf16.msra.mxu0 0
    %1318 = vmatpush.bf16.msra.mxu0 %v1306
    %1319 = vmatmul.bf16.gmra.mxu0 %v1309
    %v1320 = vpop.f32.mrf.mxu0
    %v1321 = vadd.f32 0.0, %v1320
    %v1322 = vpop.f32.mrf.mxu0
    %1323 = vdwg.mxu0
    %v1324 = vpack.c.bf16 %v1321, %v1299
    %v1325 = vld [vmem:[%s18] sm:$0xf]
    %s1326 = scalar_lea.vmem %s12, 16
    %v1327 = vld [vmem:[%s1326] sm:$0xf]
    %v1328 = vld [vmem:[%s1326 + $0x4] sm:$0xf]
    %v1329 = vld [vmem:[%s1326 + $0x8] sm:$0xf]
    %v1330 = vld [vmem:[%s1326 + $0xc] sm:$0xf]
    %s1331 = scalar_lea.vmem %s13, 1
    %v1332 = vld [vmem:[%s1331] sm:$0x1]
    %v1334 = vperm.slane %v1332, 0
    %v1340 = vunpack.c.l.b16 %v1327
    %v1341 = vunpack.c.l.b16 %v1328
    %v1342 = vunpack.c.l.b16 %v1329
    %v1343 = vunpack.c.l.b16 %v1330
    %v1344 = vpack.c.b16 %v1341, %v1340
    %v1345 = vpack.c.b16 %v1343, %v1342
    %1348 = vmatpush.bf16.msra.mxu0 0
    %1349 = vmatpush.bf16.msra.mxu0 0
    %1350 = vmatpush.bf16.msra.mxu0 0
    %1351 = vmatpush.bf16.msra.mxu0 0
    %1352 = vmatpush.bf16.msra.mxu0 0
    %1353 = vmatpush.bf16.msra.mxu0 0
    %1354 = vmatpush.bf16.msra.mxu0 %v1345
    %1355 = vmatpush.bf16.msra.mxu0 %v1344
    %1356 = vmatmul.bf16.gmra.mxu0 %v1091
    %v1357 = vpop.f32.mrf.mxu0
    %v1358 = vadd.f32 %v1334, %v1357
    %v1359 = vpop.f32.mrf.mxu0
    %v1360 = vadd.f32 %v1334, %v1359
    %1361 = vdwg.mxu0
    %v1362 = vpack.c.bf16 %v1358, %v1358
    %v1363 = vpack.c.bf16 %v1360, %v1360
    %s1364 = scalar_lea.vmem %s14, 16
    %v1365 = vld [vmem:[%s1364] sm:$0xf]
    %v1366 = vld [vmem:[%s1364 + $0x4] sm:$0xf]
    %v1367 = vld [vmem:[%s1364 + $0x8] sm:$0xf]
    %v1368 = vld [vmem:[%s1364 + $0xc] sm:$0xf]
    %s1369 = scalar_lea.vmem %s15, 1
    %v1370 = vld [vmem:[%s1369] sm:$0x1]
    %v1372 = vperm.slane %v1370, 0
    %v1378 = vunpack.c.l.b16 %v1365
    %v1379 = vunpack.c.l.b16 %v1366
    %v1380 = vunpack.c.l.b16 %v1367
    %v1381 = vunpack.c.l.b16 %v1368
    %v1382 = vpack.c.b16 %v1379, %v1378
    %v1383 = vpack.c.b16 %v1381, %v1380
    %1386 = vmatpush.bf16.msra.mxu0 0
    %1387 = vmatpush.bf16.msra.mxu0 0
    %1388 = vmatpush.bf16.msra.mxu0 0
    %1389 = vmatpush.bf16.msra.mxu0 0
    %1390 = vmatpush.bf16.msra.mxu0 0
    %1391 = vmatpush.bf16.msra.mxu0 0
    %1392 = vmatpush.bf16.msra.mxu0 %v1383
    %1393 = vmatpush.bf16.msra.mxu0 %v1382
    %1394 = vmatmul.bf16.gmra.mxu0 %v1130
    %v1395 = vpop.f32.mrf.mxu0
    %v1396 = vadd.f32 %v1372, %v1395
    %v1397 = vpop.f32.mrf.mxu0
    %v1398 = vadd.f32 %v1372, %v1397
    %1399 = vmatmul.bf16.gmra.mxu0 %v1133
    %v1400 = vpop.f32.mrf.mxu0
    %v1401 = vadd.f32 %v1372, %v1400
    %v1402 = vpop.f32.mrf.mxu0
    %v1403 = vadd.f32 %v1372, %v1402
    %1404 = vdwg.mxu0
    %v1405 = vpack.c.bf16 %v1396, %v1396
    %v1406 = vpack.c.bf16 %v1398, %v1398
    %v1407 = vpack.c.bf16 %v1401, %v1401
    %v1408 = vpack.c.bf16 %v1403, %v1403
    %s1409 = scalar_lea.vmem %s16, 16
    %v1410 = vld [vmem:[%s1409] sm:$0xf]
    %v1411 = vld [vmem:[%s1409 + $0x4] sm:$0xf]
    %v1412 = vld [vmem:[%s1409 + $0x8] sm:$0xf]
    %v1413 = vld [vmem:[%s1409 + $0xc] sm:$0xf]
    %s1414 = scalar_lea.vmem %s17, 1
    %v1415 = vld [vmem:[%s1414] sm:$0x1]
    %v1417 = vperm.slane %v1415, 0
    %v1423 = vunpack.c.l.b16 %v1410
    %v1424 = vunpack.c.l.b16 %v1411
    %v1425 = vunpack.c.l.b16 %v1412
    %v1426 = vunpack.c.l.b16 %v1413
    %v1427 = vpack.c.b16 %v1424, %v1423
    %v1428 = vpack.c.b16 %v1426, %v1425
    %1431 = vmatpush.bf16.msra.mxu0 0
    %1432 = vmatpush.bf16.msra.mxu0 0
    %1433 = vmatpush.bf16.msra.mxu0 0
    %1434 = vmatpush.bf16.msra.mxu0 0
    %1435 = vmatpush.bf16.msra.mxu0 0
    %1436 = vmatpush.bf16.msra.mxu0 0
    %1437 = vmatpush.bf16.msra.mxu0 %v1428
    %1438 = vmatpush.bf16.msra.mxu0 %v1427
    %1439 = vmatmul.bf16.gmra.mxu0 %v1179
    %v1440 = vpop.f32.mrf.mxu0
    %v1441 = vadd.f32 %v1417, %v1440
    %v1442 = vpop.f32.mrf.mxu0
    %v1443 = vadd.f32 %v1417, %v1442
    %1444 = vmatmul.bf16.gmra.mxu0 %v1182
    %v1445 = vpop.f32.mrf.mxu0
    %v1446 = vadd.f32 %v1417, %v1445
    %v1447 = vpop.f32.mrf.mxu0
    %v1448 = vadd.f32 %v1417, %v1447
    %1449 = vdwg.mxu0
    %v1450 = vpack.c.bf16 %v1441, %v1441
    %v1451 = vpack.c.bf16 %v1443, %v1443
    %v1452 = vpack.c.bf16 %v1446, %v1446
    %v1453 = vpack.c.bf16 %v1448, %v1448
    %v1456 = vunpack.c.l.b16 %v1405
    %v1457 = vunpack.c.l.b16 %v1406
    %v1458 = vpack.c.b16 %v1457, %v1456
    %v1460 = vsel %vm212, %v1362, 0
    %v1463 = vsel %vm212, %v1458, 0
    %1465 = vmatpush.bf16.xpose.msra.mxu0 0
    %1466 = vmatpush.bf16.xpose.msra.mxu0 0
    %1467 = vmatpush.bf16.xpose.msra.mxu0 0
    %1468 = vmatpush.bf16.xpose.msra.mxu0 0
    %1469 = vmatpush.bf16.xpose.msra.mxu0 0
    %1470 = vmatpush.bf16.xpose.msra.mxu0 0
    %1471 = vmatpush.bf16.xpose.msra.mxu0 0
    %1472 = vmatpush.bf16.xpose.msra.mxu0 %v1463
    %1473 = vmatmul.bf16.gmra.mxu0 %v1460
    %v1474 = vpop.f32.mrf.mxu0
    %v1475 = vadd.f32 0.0, %v1474
    %v1476 = vpop.f32.mrf.mxu0
    %1477 = vdwg.mxu0
    %v1480 = vunpack.c.l.b16 %v1407
    %v1481 = vunpack.c.l.b16 %v1408
    %v1482 = vpack.c.b16 %v1481, %v1480
    %v1484 = vsel %vm212, %v1363, 0
    %v1487 = vsel %vm212, %v1482, 0
    %1489 = vmatpush.bf16.xpose.msra.mxu0 0
    %1490 = vmatpush.bf16.xpose.msra.mxu0 0
    %1491 = vmatpush.bf16.xpose.msra.mxu0 0
    %1492 = vmatpush.bf16.xpose.msra.mxu0 0
    %1493 = vmatpush.bf16.xpose.msra.mxu0 0
    %1494 = vmatpush.bf16.xpose.msra.mxu0 0
    %1495 = vmatpush.bf16.xpose.msra.mxu0 0
    %1496 = vmatpush.bf16.xpose.msra.mxu0 %v1487
    %1497 = vmatmul.bf16.gmra.mxu0 %v1484
    %v1498 = vpop.f32.mrf.mxu0
    %v1499 = vadd.f32 0.0, %v1498
    %v1500 = vpop.f32.mrf.mxu0
    %1501 = vdwg.mxu0
    %v1502 = vsel %vm1255, %v1475, -inf
    %1503 = vmax.xlane.f32.xlu0 %v1502
    %v1504 = vpop.xlane.xlu0 %1503
    %v1505 = vsel %vm1255, %v1499, -inf
    %1506 = vmax.xlane.f32.xlu0 %v1505
    %v1507 = vpop.xlane.xlu0 %1506
    %v1508 = vsub.f32 %v1475, %v1504
    %v1509 = vsub.f32 %v1499, %v1507
    %v1510 = vmul.f32 %v1508, 1.442695
    %v1511 = vpow.pop %v1510
    %v1512 = vmul.f32 %v1509, 1.442695
    %v1513 = vpow.pop %v1512
    %v1514 = vsel %vm1255, %v1511, 0.0
    %1515 = vadd.xlane.f32.xlu0 %v1514
    %v1516 = vpop.xlane.xlu0 %1515
    %v1517 = vsel %vm1255, %v1513, 0.0
    %1518 = vadd.xlane.f32.xlu0 %v1517
    %v1519 = vpop.xlane.xlu0 %1518
    %v1520 = vrcp.pop %v1516
    %v1521 = vrcp.pop %v1519
    %v1522 = vmul.f32 %v1511, %v1520
    %v1523 = vmul.f32 %v1513, %v1521
    %v1524 = vpack.c.bf16 %v1522, %v1522
    %v1525 = vpack.c.bf16 %v1523, %v1523
    %v1528 = vunpack.c.l.b16 %v1450
    %v1529 = vunpack.c.l.b16 %v1451
    %v1530 = vpack.c.b16 %v1529, %v1528
    %v1533 = vsel %vm1255, %v1524, 0
    %1535 = vmatpush.bf16.msra.mxu0 0
    %1536 = vmatpush.bf16.msra.mxu0 0
    %1537 = vmatpush.bf16.msra.mxu0 0
    %1538 = vmatpush.bf16.msra.mxu0 0
    %1539 = vmatpush.bf16.msra.mxu0 0
    %1540 = vmatpush.bf16.msra.mxu0 0
    %1541 = vmatpush.bf16.msra.mxu0 0
    %1542 = vmatpush.bf16.msra.mxu0 %v1530
    %1543 = vmatmul.bf16.gmra.mxu0 %v1533
    %v1544 = vpop.f32.mrf.mxu0
    %v1545 = vadd.f32 0.0, %v1544
    %v1546 = vpop.f32.mrf.mxu0
    %1547 = vdwg.mxu0
    %v1550 = vunpack.c.l.b16 %v1452
    %v1551 = vunpack.c.l.b16 %v1453
    %v1552 = vpack.c.b16 %v1551, %v1550
    %v1555 = vsel %vm1255, %v1525, 0
    %1557 = vmatpush.bf16.msra.mxu0 0
    %1558 = vmatpush.bf16.msra.mxu0 0
    %1559 = vmatpush.bf16.msra.mxu0 0
    %1560 = vmatpush.bf16.msra.mxu0 0
    %1561 = vmatpush.bf16.msra.mxu0 0
    %1562 = vmatpush.bf16.msra.mxu0 0
    %1563 = vmatpush.bf16.msra.mxu0 0
    %1564 = vmatpush.bf16.msra.mxu0 %v1552
    %1565 = vmatmul.bf16.gmra.mxu0 %v1555
    %v1566 = vpop.f32.mrf.mxu0
    %v1567 = vadd.f32 0.0, %v1566
    %v1568 = vpop.f32.mrf.mxu0
    %1569 = vdwg.mxu0
    %v1570 = vpack.c.bf16 %v1567, %v1545
    %s1571 = scalar_lea.vmem %s18, 4
    %v1572 = vld [vmem:[%s1571] sm:$0xf]
    %v1574 = vsel %vm212, %v1570, 0
    %v1577 = vsel %vm278, %v1572, 0
    %1579 = vmatpush.bf16.msra.mxu0 0
    %1580 = vmatpush.bf16.msra.mxu0 0
    %1581 = vmatpush.bf16.msra.mxu0 0
    %1582 = vmatpush.bf16.msra.mxu0 0
    %1583 = vmatpush.bf16.msra.mxu0 0
    %1584 = vmatpush.bf16.msra.mxu0 0
    %1585 = vmatpush.bf16.msra.mxu0 0
    %1586 = vmatpush.bf16.msra.mxu0 %v1577
    %1587 = vmatmul.bf16.gmra.mxu0 %v1574
    %v1588 = vpop.f32.mrf.mxu0
    %v1589 = vadd.f32 0.0, %v1588
    %v1590 = vpop.f32.mrf.mxu0
    %v1591 = vadd.f32 0.0, %v1590
    %1592 = vdwg.mxu0
    %v1594 = vsel %vm212, %v1324, 0
    %v1597 = vsel %vm278, %v1325, 0
    %1599 = vmatpush.bf16.msra.mxu0 0
    %1600 = vmatpush.bf16.msra.mxu0 0
    %1601 = vmatpush.bf16.msra.mxu0 0
    %1602 = vmatpush.bf16.msra.mxu0 0
    %1603 = vmatpush.bf16.msra.mxu0 0
    %1604 = vmatpush.bf16.msra.mxu0 0
    %1605 = vmatpush.bf16.msra.mxu0 0
    %1606 = vmatpush.bf16.msra.mxu0 %v1597
    %1607 = vmatmul.bf16.gmra.mxu0 %v1594
    %v1608 = vpop.f32.mrf.mxu0
    %v1609 = vadd.f32 %v1589, %v1608
    %v1610 = vpop.f32.mrf.mxu0
    %v1611 = vadd.f32 %v1591, %v1610
    %1612 = vdwg.mxu0
    %v1613 = vadd.f32 %v1276, %v1522
    %v1614 = vadd.f32 %v1277, %v1523
    %s1615 = scalar_lea.vmem %s12, 32
    %v1616 = vld [vmem:[%s1615] sm:$0xf]
    %v1617 = vld [vmem:[%s1615 + $0x4] sm:$0xf]
    %v1618 = vld [vmem:[%s1615 + $0x8] sm:$0xf]
    %v1619 = vld [vmem:[%s1615 + $0xc] sm:$0xf]
    %s1620 = scalar_lea.vmem %s13, 2
    %v1621 = vld [vmem:[%s1620] sm:$0x1]
    %v1623 = vperm.slane %v1621, 0
    %v1629 = vunpack.c.l.b16 %v1616
    %v1630 = vunpack.c.l.b16 %v1617
    %v1631 = vunpack.c.l.b16 %v1618
    %v1632 = vunpack.c.l.b16 %v1619
    %v1633 = vpack.c.b16 %v1630, %v1629
    %v1634 = vpack.c.b16 %v1632, %v1631
    %1637 = vmatpush.bf16.msra.mxu0 0
    %1638 = vmatpush.bf16.msra.mxu0 0
    %1639 = vmatpush.bf16.msra.mxu0 0
    %1640 = vmatpush.bf16.msra.mxu0 0
    %1641 = vmatpush.bf16.msra.mxu0 0
    %1642 = vmatpush.bf16.msra.mxu0 0
    %1643 = vmatpush.bf16.msra.mxu0 %v1634
    %1644 = vmatpush.bf16.msra.mxu0 %v1633
    %1645 = vmatmul.bf16.gmra.mxu0 %v1091
    %v1646 = vpop.f32.mrf.mxu0
    %v1647 = vadd.f32 %v1623, %v1646
    %v1648 = vpop.f32.mrf.mxu0
    %v1649 = vadd.f32 %v1623, %v1648
    %1650 = vdwg.mxu0
    %v1651 = vpack.c.bf16 %v1647, %v1647
    %v1652 = vpack.c.bf16 %v1649, %v1649
    %s1653 = scalar_lea.vmem %s14, 32
    %v1654 = vld [vmem:[%s1653] sm:$0xf]
    %v1655 = vld [vmem:[%s1653 + $0x4] sm:$0xf]
    %v1656 = vld [vmem:[%s1653 + $0x8] sm:$0xf]
    %v1657 = vld [vmem:[%s1653 + $0xc] sm:$0xf]
    %s1658 = scalar_lea.vmem %s15, 2
    %v1659 = vld [vmem:[%s1658] sm:$0x1]
    %v1661 = vperm.slane %v1659, 0
    %v1667 = vunpack.c.l.b16 %v1654
    %v1668 = vunpack.c.l.b16 %v1655
    %v1669 = vunpack.c.l.b16 %v1656
    %v1670 = vunpack.c.l.b16 %v1657
    %v1671 = vpack.c.b16 %v1668, %v1667
    %v1672 = vpack.c.b16 %v1670, %v1669
    %1675 = vmatpush.bf16.msra.mxu0 0
    %1676 = vmatpush.bf16.msra.mxu0 0
    %1677 = vmatpush.bf16.msra.mxu0 0
    %1678 = vmatpush.bf16.msra.mxu0 0
    %1679 = vmatpush.bf16.msra.mxu0 0
    %1680 = vmatpush.bf16.msra.mxu0 0
    %1681 = vmatpush.bf16.msra.mxu0 %v1672
    %1682 = vmatpush.bf16.msra.mxu0 %v1671
    %1683 = vmatmul.bf16.gmra.mxu0 %v1130
    %v1684 = vpop.f32.mrf.mxu0
    %v1685 = vadd.f32 %v1661, %v1684
    %v1686 = vpop.f32.mrf.mxu0
    %v1687 = vadd.f32 %v1661, %v1686
    %1688 = vmatmul.bf16.gmra.mxu0 %v1133
    %v1689 = vpop.f32.mrf.mxu0
    %v1690 = vadd.f32 %v1661, %v1689
    %v1691 = vpop.f32.mrf.mxu0
    %v1692 = vadd.f32 %v1661, %v1691
    %1693 = vdwg.mxu0
    %v1694 = vpack.c.bf16 %v1685, %v1685
    %v1695 = vpack.c.bf16 %v1687, %v1687
    %v1696 = vpack.c.bf16 %v1690, %v1690
    %v1697 = vpack.c.bf16 %v1692, %v1692
    %s1698 = scalar_lea.vmem %s16, 32
    %v1699 = vld [vmem:[%s1698] sm:$0xf]
    %v1700 = vld [vmem:[%s1698 + $0x4] sm:$0xf]
    %v1701 = vld [vmem:[%s1698 + $0x8] sm:$0xf]
    %v1702 = vld [vmem:[%s1698 + $0xc] sm:$0xf]
    %s1703 = scalar_lea.vmem %s17, 2
    %v1704 = vld [vmem:[%s1703] sm:$0x1]
    %v1706 = vperm.slane %v1704, 0
    %v1712 = vunpack.c.l.b16 %v1699
    %v1713 = vunpack.c.l.b16 %v1700
    %v1714 = vunpack.c.l.b16 %v1701
    %v1715 = vunpack.c.l.b16 %v1702
    %v1716 = vpack.c.b16 %v1713, %v1712
    %v1717 = vpack.c.b16 %v1715, %v1714
    %1720 = vmatpush.bf16.msra.mxu0 0
    %1721 = vmatpush.bf16.msra.mxu0 0
    %1722 = vmatpush.bf16.msra.mxu0 0
    %1723 = vmatpush.bf16.msra.mxu0 0
    %1724 = vmatpush.bf16.msra.mxu0 0
    %1725 = vmatpush.bf16.msra.mxu0 0
    %1726 = vmatpush.bf16.msra.mxu0 %v1717
    %1727 = vmatpush.bf16.msra.mxu0 %v1716
    %1728 = vmatmul.bf16.gmra.mxu0 %v1179
    %v1729 = vpop.f32.mrf.mxu0
    %v1730 = vadd.f32 %v1706, %v1729
    %v1731 = vpop.f32.mrf.mxu0
    %v1732 = vadd.f32 %v1706, %v1731
    %1733 = vmatmul.bf16.gmra.mxu0 %v1182
    %v1734 = vpop.f32.mrf.mxu0
    %v1735 = vadd.f32 %v1706, %v1734
    %v1736 = vpop.f32.mrf.mxu0
    %v1737 = vadd.f32 %v1706, %v1736
    %1738 = vdwg.mxu0
    %v1739 = vpack.c.bf16 %v1730, %v1730
    %v1740 = vpack.c.bf16 %v1732, %v1732
    %v1741 = vpack.c.bf16 %v1735, %v1735
    %v1742 = vpack.c.bf16 %v1737, %v1737
    %v1745 = vunpack.c.l.b16 %v1694
    %v1746 = vunpack.c.l.b16 %v1695
    %v1747 = vpack.c.b16 %v1746, %v1745
    %v1749 = vsel %vm212, %v1651, 0
    %v1752 = vsel %vm212, %v1747, 0
    %1754 = vmatpush.bf16.xpose.msra.mxu0 0
    %1755 = vmatpush.bf16.xpose.msra.mxu0 0
    %1756 = vmatpush.bf16.xpose.msra.mxu0 0
    %1757 = vmatpush.bf16.xpose.msra.mxu0 0
    %1758 = vmatpush.bf16.xpose.msra.mxu0 0
    %1759 = vmatpush.bf16.xpose.msra.mxu0 0
    %1760 = vmatpush.bf16.xpose.msra.mxu0 0
    %1761 = vmatpush.bf16.xpose.msra.mxu0 %v1752
    %1762 = vmatmul.bf16.gmra.mxu0 %v1749
    %v1763 = vpop.f32.mrf.mxu0
    %v1764 = vadd.f32 0.0, %v1763
    %v1765 = vpop.f32.mrf.mxu0
    %1766 = vdwg.mxu0
    %v1769 = vunpack.c.l.b16 %v1696
    %v1770 = vunpack.c.l.b16 %v1697
    %v1771 = vpack.c.b16 %v1770, %v1769
    %v1773 = vsel %vm212, %v1652, 0
    %v1776 = vsel %vm212, %v1771, 0
    %1778 = vmatpush.bf16.xpose.msra.mxu0 0
    %1779 = vmatpush.bf16.xpose.msra.mxu0 0
    %1780 = vmatpush.bf16.xpose.msra.mxu0 0
    %1781 = vmatpush.bf16.xpose.msra.mxu0 0
    %1782 = vmatpush.bf16.xpose.msra.mxu0 0
    %1783 = vmatpush.bf16.xpose.msra.mxu0 0
    %1784 = vmatpush.bf16.xpose.msra.mxu0 0
    %1785 = vmatpush.bf16.xpose.msra.mxu0 %v1776
    %1786 = vmatmul.bf16.gmra.mxu0 %v1773
    %v1787 = vpop.f32.mrf.mxu0
    %v1788 = vadd.f32 0.0, %v1787
    %v1789 = vpop.f32.mrf.mxu0
    %1790 = vdwg.mxu0
    %v1791 = vsel %vm1255, %v1764, -inf
    %1792 = vmax.xlane.f32.xlu0 %v1791
    %v1793 = vpop.xlane.xlu0 %1792
    %v1794 = vsel %vm1255, %v1788, -inf
    %1795 = vmax.xlane.f32.xlu0 %v1794
    %v1796 = vpop.xlane.xlu0 %1795
    %v1797 = vsub.f32 %v1764, %v1793
    %v1798 = vsub.f32 %v1788, %v1796
    %v1799 = vmul.f32 %v1797, 1.442695
    %v1800 = vpow.pop %v1799
    %v1801 = vmul.f32 %v1798, 1.442695
    %v1802 = vpow.pop %v1801
    %v1803 = vsel %vm1255, %v1800, 0.0
    %1804 = vadd.xlane.f32.xlu0 %v1803
    %v1805 = vpop.xlane.xlu0 %1804
    %v1806 = vsel %vm1255, %v1802, 0.0
    %1807 = vadd.xlane.f32.xlu0 %v1806
    %v1808 = vpop.xlane.xlu0 %1807
    %v1809 = vrcp.pop %v1805
    %v1810 = vrcp.pop %v1808
    %v1811 = vmul.f32 %v1800, %v1809
    %v1812 = vmul.f32 %v1802, %v1810
    %v1813 = vpack.c.bf16 %v1811, %v1811
    %v1814 = vpack.c.bf16 %v1812, %v1812
    %v1817 = vunpack.c.l.b16 %v1739
    %v1818 = vunpack.c.l.b16 %v1740
    %v1819 = vpack.c.b16 %v1818, %v1817
    %v1822 = vsel %vm1255, %v1813, 0
    %1824 = vmatpush.bf16.msra.mxu0 0
    %1825 = vmatpush.bf16.msra.mxu0 0
    %1826 = vmatpush.bf16.msra.mxu0 0
    %1827 = vmatpush.bf16.msra.mxu0 0
    %1828 = vmatpush.bf16.msra.mxu0 0
    %1829 = vmatpush.bf16.msra.mxu0 0
    %1830 = vmatpush.bf16.msra.mxu0 0
    %1831 = vmatpush.bf16.msra.mxu0 %v1819
    %1832 = vmatmul.bf16.gmra.mxu0 %v1822
    %v1833 = vpop.f32.mrf.mxu0
    %v1834 = vadd.f32 0.0, %v1833
    %v1835 = vpop.f32.mrf.mxu0
    %1836 = vdwg.mxu0
    %v1839 = vunpack.c.l.b16 %v1741
    %v1840 = vunpack.c.l.b16 %v1742
    %v1841 = vpack.c.b16 %v1840, %v1839
    %v1844 = vsel %vm1255, %v1814, 0
    %1846 = vmatpush.bf16.msra.mxu0 0
    %1847 = vmatpush.bf16.msra.mxu0 0
    %1848 = vmatpush.bf16.msra.mxu0 0
    %1849 = vmatpush.bf16.msra.mxu0 0
    %1850 = vmatpush.bf16.msra.mxu0 0
    %1851 = vmatpush.bf16.msra.mxu0 0
    %1852 = vmatpush.bf16.msra.mxu0 0
    %1853 = vmatpush.bf16.msra.mxu0 %v1841
    %1854 = vmatmul.bf16.gmra.mxu0 %v1844
    %v1855 = vpop.f32.mrf.mxu0
    %v1856 = vadd.f32 0.0, %v1855
    %v1857 = vpop.f32.mrf.mxu0
    %1858 = vdwg.mxu0
    %v1859 = vpack.c.bf16 %v1856, %v1834
    %s1860 = scalar_lea.vmem %s18, 8
    %v1861 = vld [vmem:[%s1860] sm:$0xf]
    %v1863 = vsel %vm212, %v1859, 0
    %v1866 = vsel %vm278, %v1861, 0
    %1868 = vmatpush.bf16.msra.mxu0 0
    %1869 = vmatpush.bf16.msra.mxu0 0
    %1870 = vmatpush.bf16.msra.mxu0 0
    %1871 = vmatpush.bf16.msra.mxu0 0
    %1872 = vmatpush.bf16.msra.mxu0 0
    %1873 = vmatpush.bf16.msra.mxu0 0
    %1874 = vmatpush.bf16.msra.mxu0 0
    %1875 = vmatpush.bf16.msra.mxu0 %v1866
    %1876 = vmatmul.bf16.gmra.mxu0 %v1863
    %v1877 = vpop.f32.mrf.mxu0
    %v1878 = vadd.f32 0.0, %v1877
    %v1879 = vpop.f32.mrf.mxu0
    %v1880 = vadd.f32 0.0, %v1879
    %1881 = vdwg.mxu0
    %v1882 = vadd.f32 %v1609, %v1878
    %v1883 = vadd.f32 %v1611, %v1880
    %v1884 = vadd.f32 %v1613, %v1811
    %v1885 = vadd.f32 %v1614, %v1812
    %s1886 = scalar_lea.vmem %s12, 48
    %v1887 = vld [vmem:[%s1886] sm:$0xf]
    %v1888 = vld [vmem:[%s1886 + $0x4] sm:$0xf]
    %v1889 = vld [vmem:[%s1886 + $0x8] sm:$0xf]
    %v1890 = vld [vmem:[%s1886 + $0xc] sm:$0xf]
    %s1891 = scalar_lea.vmem %s13, 3
    %v1892 = vld [vmem:[%s1891] sm:$0x1]
    %v1894 = vperm.slane %v1892, 0
    %v1900 = vunpack.c.l.b16 %v1887
    %v1901 = vunpack.c.l.b16 %v1888
    %v1902 = vunpack.c.l.b16 %v1889
    %v1903 = vunpack.c.l.b16 %v1890
    %v1904 = vpack.c.b16 %v1901, %v1900
    %v1905 = vpack.c.b16 %v1903, %v1902
    %1908 = vmatpush.bf16.msra.mxu0 0
    %1909 = vmatpush.bf16.msra.mxu0 0
    %1910 = vmatpush.bf16.msra.mxu0 0
    %1911 = vmatpush.bf16.msra.mxu0 0
    %1912 = vmatpush.bf16.msra.mxu0 0
    %1913 = vmatpush.bf16.msra.mxu0 0
    %1914 = vmatpush.bf16.msra.mxu0 %v1905
    %1915 = vmatpush.bf16.msra.mxu0 %v1904
    %1916 = vmatmul.bf16.gmra.mxu0 %v1091
    %v1917 = vpop.f32.mrf.mxu0
    %v1918 = vadd.f32 %v1894, %v1917
    %v1919 = vpop.f32.mrf.mxu0
    %v1920 = vadd.f32 %v1894, %v1919
    %1921 = vdwg.mxu0
    %v1922 = vpack.c.bf16 %v1918, %v1918
    %v1923 = vpack.c.bf16 %v1920, %v1920
    %s1924 = scalar_lea.vmem %s14, 48
    %v1925 = vld [vmem:[%s1924] sm:$0xf]
    %v1926 = vld [vmem:[%s1924 + $0x4] sm:$0xf]
    %v1927 = vld [vmem:[%s1924 + $0x8] sm:$0xf]
    %v1928 = vld [vmem:[%s1924 + $0xc] sm:$0xf]
    %s1929 = scalar_lea.vmem %s15, 3
    %v1930 = vld [vmem:[%s1929] sm:$0x1]
    %v1932 = vperm.slane %v1930, 0
    %v1938 = vunpack.c.l.b16 %v1925
    %v1939 = vunpack.c.l.b16 %v1926
    %v1940 = vunpack.c.l.b16 %v1927
    %v1941 = vunpack.c.l.b16 %v1928
    %v1942 = vpack.c.b16 %v1939, %v1938
    %v1943 = vpack.c.b16 %v1941, %v1940
    %1946 = vmatpush.bf16.msra.mxu0 0
    %1947 = vmatpush.bf16.msra.mxu0 0
    %1948 = vmatpush.bf16.msra.mxu0 0
    %1949 = vmatpush.bf16.msra.mxu0 0
    %1950 = vmatpush.bf16.msra.mxu0 0
    %1951 = vmatpush.bf16.msra.mxu0 0
    %1952 = vmatpush.bf16.msra.mxu0 %v1943
    %1953 = vmatpush.bf16.msra.mxu0 %v1942
    %1954 = vmatmul.bf16.gmra.mxu0 %v1130
    %v1955 = vpop.f32.mrf.mxu0
    %v1956 = vadd.f32 %v1932, %v1955
    %v1957 = vpop.f32.mrf.mxu0
    %v1958 = vadd.f32 %v1932, %v1957
    %1959 = vmatmul.bf16.gmra.mxu0 %v1133
    %v1960 = vpop.f32.mrf.mxu0
    %v1961 = vadd.f32 %v1932, %v1960
    %v1962 = vpop.f32.mrf.mxu0
    %v1963 = vadd.f32 %v1932, %v1962
    %1964 = vdwg.mxu0
    %v1965 = vpack.c.bf16 %v1956, %v1956
    %v1966 = vpack.c.bf16 %v1958, %v1958
    %v1967 = vpack.c.bf16 %v1961, %v1961
    %v1968 = vpack.c.bf16 %v1963, %v1963
    %s1969 = scalar_lea.vmem %s16, 48
    %v1970 = vld [vmem:[%s1969] sm:$0xf]
    %v1971 = vld [vmem:[%s1969 + $0x4] sm:$0xf]
    %v1972 = vld [vmem:[%s1969 + $0x8] sm:$0xf]
    %v1973 = vld [vmem:[%s1969 + $0xc] sm:$0xf]
    %s1974 = scalar_lea.vmem %s17, 3
    %v1975 = vld [vmem:[%s1974] sm:$0x1]
    %v1977 = vperm.slane %v1975, 0
    %v1983 = vunpack.c.l.b16 %v1970
    %v1984 = vunpack.c.l.b16 %v1971
    %v1985 = vunpack.c.l.b16 %v1972
    %v1986 = vunpack.c.l.b16 %v1973
    %v1987 = vpack.c.b16 %v1984, %v1983
    %v1988 = vpack.c.b16 %v1986, %v1985
    %1991 = vmatpush.bf16.msra.mxu0 0
    %1992 = vmatpush.bf16.msra.mxu0 0
    %1993 = vmatpush.bf16.msra.mxu0 0
    %1994 = vmatpush.bf16.msra.mxu0 0
    %1995 = vmatpush.bf16.msra.mxu0 0
    %1996 = vmatpush.bf16.msra.mxu0 0
    %1997 = vmatpush.bf16.msra.mxu0 %v1988
    %1998 = vmatpush.bf16.msra.mxu0 %v1987
    %1999 = vmatmul.bf16.gmra.mxu0 %v1179
    %v2000 = vpop.f32.mrf.mxu0
    %v2001 = vadd.f32 %v1977, %v2000
    %v2002 = vpop.f32.mrf.mxu0
    %v2003 = vadd.f32 %v1977, %v2002
    %2004 = vmatmul.bf16.gmra.mxu0 %v1182
    %v2005 = vpop.f32.mrf.mxu0
    %v2006 = vadd.f32 %v1977, %v2005
    %v2007 = vpop.f32.mrf.mxu0
    %v2008 = vadd.f32 %v1977, %v2007
    %2009 = vdwg.mxu0
    %v2010 = vpack.c.bf16 %v2001, %v2001
    %v2011 = vpack.c.bf16 %v2003, %v2003
    %v2012 = vpack.c.bf16 %v2006, %v2006
    %v2013 = vpack.c.bf16 %v2008, %v2008
    %v2016 = vunpack.c.l.b16 %v1965
    %v2017 = vunpack.c.l.b16 %v1966
    %v2018 = vpack.c.b16 %v2017, %v2016
    %v2020 = vsel %vm212, %v1922, 0
    %v2023 = vsel %vm212, %v2018, 0
    %2025 = vmatpush.bf16.xpose.msra.mxu0 0
    %2026 = vmatpush.bf16.xpose.msra.mxu0 0
    %2027 = vmatpush.bf16.xpose.msra.mxu0 0
    %2028 = vmatpush.bf16.xpose.msra.mxu0 0
    %2029 = vmatpush.bf16.xpose.msra.mxu0 0
    %2030 = vmatpush.bf16.xpose.msra.mxu0 0
    %2031 = vmatpush.bf16.xpose.msra.mxu0 0
    %2032 = vmatpush.bf16.xpose.msra.mxu0 %v2023
    %2033 = vmatmul.bf16.gmra.mxu0 %v2020
    %v2034 = vpop.f32.mrf.mxu0
    %v2035 = vadd.f32 0.0, %v2034
    %v2036 = vpop.f32.mrf.mxu0
    %2037 = vdwg.mxu0
    %v2040 = vunpack.c.l.b16 %v1967
    %v2041 = vunpack.c.l.b16 %v1968
    %v2042 = vpack.c.b16 %v2041, %v2040
    %v2044 = vsel %vm212, %v1923, 0
    %v2047 = vsel %vm212, %v2042, 0
    %2049 = vmatpush.bf16.xpose.msra.mxu0 0
    %2050 = vmatpush.bf16.xpose.msra.mxu0 0
    %2051 = vmatpush.bf16.xpose.msra.mxu0 0
    %2052 = vmatpush.bf16.xpose.msra.mxu0 0
    %2053 = vmatpush.bf16.xpose.msra.mxu0 0
    %2054 = vmatpush.bf16.xpose.msra.mxu0 0
    %2055 = vmatpush.bf16.xpose.msra.mxu0 0
    %2056 = vmatpush.bf16.xpose.msra.mxu0 %v2047
    %2057 = vmatmul.bf16.gmra.mxu0 %v2044
    %v2058 = vpop.f32.mrf.mxu0
    %v2059 = vadd.f32 0.0, %v2058
    %v2060 = vpop.f32.mrf.mxu0
    %2061 = vdwg.mxu0
    %v2062 = vsel %vm1255, %v2035, -inf
    %2063 = vmax.xlane.f32.xlu0 %v2062
    %v2064 = vpop.xlane.xlu0 %2063
    %v2065 = vsel %vm1255, %v2059, -inf
    %2066 = vmax.xlane.f32.xlu0 %v2065
    %v2067 = vpop.xlane.xlu0 %2066
    %v2068 = vsub.f32 %v2035, %v2064
    %v2069 = vsub.f32 %v2059, %v2067
    %v2070 = vmul.f32 %v2068, 1.442695
    %v2071 = vpow.pop %v2070
    %v2072 = vmul.f32 %v2069, 1.442695
    %v2073 = vpow.pop %v2072
    %v2074 = vsel %vm1255, %v2071, 0.0
    %2075 = vadd.xlane.f32.xlu0 %v2074
    %v2076 = vpop.xlane.xlu0 %2075
    %v2077 = vsel %vm1255, %v2073, 0.0
    %2078 = vadd.xlane.f32.xlu0 %v2077
    %v2079 = vpop.xlane.xlu0 %2078
    %v2080 = vrcp.pop %v2076
    %v2081 = vrcp.pop %v2079
    %v2082 = vmul.f32 %v2071, %v2080
    %v2083 = vmul.f32 %v2073, %v2081
    %v2084 = vpack.c.bf16 %v2082, %v2082
    %v2085 = vpack.c.bf16 %v2083, %v2083
    %v2088 = vunpack.c.l.b16 %v2010
    %v2089 = vunpack.c.l.b16 %v2011
    %v2090 = vpack.c.b16 %v2089, %v2088
    %v2093 = vsel %vm1255, %v2084, 0
    %2095 = vmatpush.bf16.msra.mxu0 0
    %2096 = vmatpush.bf16.msra.mxu0 0
    %2097 = vmatpush.bf16.msra.mxu0 0
    %2098 = vmatpush.bf16.msra.mxu0 0
    %2099 = vmatpush.bf16.msra.mxu0 0
    %2100 = vmatpush.bf16.msra.mxu0 0
    %2101 = vmatpush.bf16.msra.mxu0 0
    %2102 = vmatpush.bf16.msra.mxu0 %v2090
    %2103 = vmatmul.bf16.gmra.mxu0 %v2093
    %v2104 = vpop.f32.mrf.mxu0
    %v2105 = vadd.f32 0.0, %v2104
    %v2106 = vpop.f32.mrf.mxu0
    %2107 = vdwg.mxu0
    %v2110 = vunpack.c.l.b16 %v2012
    %v2111 = vunpack.c.l.b16 %v2013
    %v2112 = vpack.c.b16 %v2111, %v2110
    %v2115 = vsel %vm1255, %v2085, 0
    %2117 = vmatpush.bf16.msra.mxu0 0
    %2118 = vmatpush.bf16.msra.mxu0 0
    %2119 = vmatpush.bf16.msra.mxu0 0
    %2120 = vmatpush.bf16.msra.mxu0 0
    %2121 = vmatpush.bf16.msra.mxu0 0
    %2122 = vmatpush.bf16.msra.mxu0 0
    %2123 = vmatpush.bf16.msra.mxu0 0
    %2124 = vmatpush.bf16.msra.mxu0 %v2112
    %2125 = vmatmul.bf16.gmra.mxu0 %v2115
    %v2126 = vpop.f32.mrf.mxu0
    %v2127 = vadd.f32 0.0, %v2126
    %v2128 = vpop.f32.mrf.mxu0
    %2129 = vdwg.mxu0
    %v2130 = vpack.c.bf16 %v2127, %v2105
    %s2131 = scalar_lea.vmem %s18, 12
    %v2132 = vld [vmem:[%s2131] sm:$0xf]
    %v2134 = vsel %vm212, %v2130, 0
    %v2137 = vsel %vm278, %v2132, 0
    %2139 = vmatpush.bf16.msra.mxu0 0
    %2140 = vmatpush.bf16.msra.mxu0 0
    %2141 = vmatpush.bf16.msra.mxu0 0
    %2142 = vmatpush.bf16.msra.mxu0 0
    %2143 = vmatpush.bf16.msra.mxu0 0
    %2144 = vmatpush.bf16.msra.mxu0 0
    %2145 = vmatpush.bf16.msra.mxu0 0
    %2146 = vmatpush.bf16.msra.mxu0 %v2137
    %2147 = vmatmul.bf16.gmra.mxu0 %v2134
    %v2148 = vpop.f32.mrf.mxu0
    %v2149 = vadd.f32 0.0, %v2148
    %v2150 = vpop.f32.mrf.mxu0
    %v2151 = vadd.f32 0.0, %v2150
    %2152 = vdwg.mxu0
    %v2153 = vadd.f32 %v1882, %v2149
    %v2154 = vadd.f32 %v1883, %v2151
    %v2155 = vadd.f32 %v1884, %v2082
    %v2156 = vadd.f32 %v1885, %v2083
    %v2157 = vld [vmem:[%s19] sm:$0x1]
    %v2159 = vperm.slane %v2157, 0
    %v2161 = vadd.f32 %v2153, %v2159
    %v2162 = vadd.f32 %v2154, %v2159
    %v2163 = vadd.f32 %v1057, %v2161
    %v2164 = vadd.f32 %v1058, %v2162
    %v2165 = vmul.f32 %v2155, 0.25
    %v2166 = vmul.f32 %v2156, 0.25
    %2167 = vst.msk [vmem:[#allocation2] sm:$0xff] %vm1255, %v2165
    %2168 = vst.msk [vmem:[#allocation2 + $0x8] sm:$0xff] %vm1255, %v2166
    %v2169 = vpack.c.bf16 %v2164, %v2163
    %v2170 = vld [vmem:[%s20] sm:$0xf]
    %v2171 = vld [vmem:[%s20 + $0x4] sm:$0xf]
    %v2172 = vld [vmem:[%s20 + $0x8] sm:$0xf]
    %v2173 = vld [vmem:[%s20 + $0xc] sm:$0xf]
    %v2174 = vld [vmem:[%s21] sm:$0x1]
    %v2176 = vperm.slane %v2174, 0
    %v2182 = vunpack.c.l.b16 %v2170
    %v2183 = vunpack.c.l.b16 %v2171
    %v2184 = vunpack.c.l.b16 %v2172
    %v2185 = vunpack.c.l.b16 %v2173
    %v2186 = vpack.c.b16 %v2183, %v2182
    %v2187 = vpack.c.b16 %v2185, %v2184
    %v2191 = vsel %vm117, %v2169, 0
    %2193 = vmatpush.bf16.msra.mxu0 0
    %2194 = vmatpush.bf16.msra.mxu0 0
    %2195 = vmatpush.bf16.msra.mxu0 0
    %2196 = vmatpush.bf16.msra.mxu0 0
    %2197 = vmatpush.bf16.msra.mxu0 0
    %2198 = vmatpush.bf16.msra.mxu0 0
    %2199 = vmatpush.bf16.msra.mxu0 %v2187
    %2200 = vmatpush.bf16.msra.mxu0 %v2186
    %2201 = vmatmul.bf16.gmra.mxu0 %v2191
    %v2202 = vpop.f32.mrf.mxu0
    %v2203 = vadd.f32 %v2176, %v2202
    %v2204 = vpop.f32.mrf.mxu0
    %v2205 = vadd.f32 %v2176, %v2204
    %2206 = vdwg.mxu0
    %v2207 = vmax.f32 %v2203, 0.0
    %v2208 = vmax.f32 %v2205, 0.0
    %v2209 = vpack.c.bf16 %v2208, %v2207
    %v2210 = vld [vmem:[%s22] sm:$0xf]
    %v2211 = vld [vmem:[%s22 + $0x4] sm:$0xf]
    %v2212 = vld [vmem:[%s22 + $0x8] sm:$0xf]
    %v2213 = vld [vmem:[%s22 + $0xc] sm:$0xf]
    %v2214 = vld [vmem:[%s22 + $0x10] sm:$0xf]
    %v2215 = vld [vmem:[%s22 + $0x14] sm:$0xf]
    %v2216 = vld [vmem:[%s22 + $0x18] sm:$0xf]
    %v2217 = vld [vmem:[%s22 + $0x1c] sm:$0xf]
    %v2218 = vld [vmem:[%s23] sm:$0x1]
    %v2220 = vperm.slane %v2218, 0
    %v2230 = vunpack.c.l.b16 %v2210
    %v2231 = vunpack.c.l.b16 %v2211
    %v2232 = vunpack.c.l.b16 %v2212
    %v2233 = vunpack.c.l.b16 %v2213
    %v2234 = vunpack.c.l.b16 %v2214
    %v2235 = vunpack.c.l.b16 %v2215
    %v2236 = vunpack.c.l.b16 %v2216
    %v2237 = vunpack.c.l.b16 %v2217
    %v2238 = vpack.c.b16 %v2231, %v2230
    %v2239 = vpack.c.b16 %v2233, %v2232
    %v2240 = vpack.c.b16 %v2235, %v2234
    %v2241 = vpack.c.b16 %v2237, %v2236
    %vm2246 = vcmask 523264
    %v2248 = vsel %vm2246, %v2209, 0
    %2250 = vmatpush.bf16.msra.mxu0 0
    %2251 = vmatpush.bf16.msra.mxu0 0
    %2252 = vmatpush.bf16.msra.mxu0 0
    %2253 = vmatpush.bf16.msra.mxu0 0
    %2254 = vmatpush.bf16.msra.mxu0 %v2241
    %2255 = vmatpush.bf16.msra.mxu0 %v2240
    %2256 = vmatpush.bf16.msra.mxu0 %v2239
    %2257 = vmatpush.bf16.msra.mxu0 %v2238
    %2258 = vmatmul.bf16.gmra.mxu0 %v2248
    %v2259 = vpop.f32.mrf.mxu0
    %v2260 = vadd.f32 %v2220, %v2259
    %v2261 = vpop.f32.mrf.mxu0
    %v2262 = vadd.f32 %v2220, %v2261
    %2263 = vdwg.mxu0
    %v2264 = vadd.f32 %v2163, %v2260
    %v2265 = vadd.f32 %v2164, %v2262
    %2266 = vst.msk [vmem:[%s24] sm:$0xff] %vm117, %v2264
    %2267 = vst.msk [vmem:[%s24 + $0x8] sm:$0xff] %vm117, %v2265
    // Predicated region
    $region98: #{decoder_layer_forward.1} parent=1 // pred_check
      _
    $region99: #{decoder_layer_forward.1} parent=1 // pred_check_branch
      %2269 = sbr.rel (0) target = $region101
    $region100: #{decoder_layer_forward.1} parent=1 // pred_region
      _
    $region101: #{decoder_layer_forward.1} parent=1 // pred_fallthru
      _
    // Predicated region
    $region102: #{decoder_layer_forward.1} parent=1 // pred_check
      _
    $region103: #{decoder_layer_forward.1} parent=1 // pred_check_branch
      %2271 = sbr.rel (0) target = $region105
    $region104: #{decoder_layer_forward.1} parent=1 // pred_region
      %2273 = vsyncadd [#allocation3], 0
      %s2274 = sshll.u32 [#allocation2], 4
      %s2275 = int_to_ptr.vmem [resolvable:$true] %s2274
      %s2276 = sshll.u32 %s25, 4
      %s2277 = int_to_ptr.hbm [resolvable:$true] %s2276
      %2282 = dma.vmem_to_hbm [thread:$0]  %s2275, 256, %s2277, [#allocation3], 128, 128, 8
    $region105: #{decoder_layer_forward.1} parent=1 // pred_fallthru
      _
    // Predicated region
    $region106: #{decoder_layer_forward.1} parent=1 // pred_check
      _
    $region107: #{decoder_layer_forward.1} parent=1 // pred_check_branch
      %2284 = sbr.rel (0) target = $region109
    $region108: #{decoder_layer_forward.1} parent=1 // pred_region
      _
    $region109: #{decoder_layer_forward.1} parent=1 // pred_fallthru
      _
    // Predicated region
    $region110: #{decoder_layer_forward.1} parent=1 // pred_check
      _
    $region111: #{decoder_layer_forward.1} parent=1 // pred_check_branch
      %2286 = sbr.rel (0) target = $region113
    $region112: #{decoder_layer_forward.1} parent=1 // pred_region
      %2288 = dma.done [#allocation3], 256
    $region113: #{decoder_layer_forward.1} parent=1 // pred_fallthru
      _
    %2289 = vsyncpa [#allocation3], 1

</llo_original>
